<compile_context>
chip_gen: v7x
topology: tpu7x:2x2x1
jax: 0.10.0
libtpu: 0.0.40
codegen_flags: <defaults>
</compile_context>

<pallas_src>
import functools
import math

import jax
import jax.numpy as jnp
from jax import lax
from jax.experimental import pallas as pl
from jax.experimental.pallas import tpu as pltpu


# ----------------------------- kernel helpers -------------------------------


def _layer_norm(x, gamma, beta, eps=1e-5):
    # PyTorch nn.LayerNorm: biased variance over last dim, eps inside rsqrt.
    mu = jnp.mean(x, axis=-1, keepdims=True)
    var = jnp.mean((x - mu) ** 2, axis=-1, keepdims=True)
    return (x - mu) * lax.rsqrt(var + eps) * gamma + beta


def _decoder_kernel(num_heads, head_dim,
                    emb_ref, enc_ref,
                    wqkv1_ref, bqkv1_ref, wo1_ref, bo1_ref,
                    wq2_ref, bq2_ref, wkv2_ref, bkv2_ref, wo2_ref, bo2_ref,
                    g1_ref, be1_ref, g2_ref, be2_ref, g3_ref, be3_ref,
                    wf1_ref, bf1_ref, wf2_ref, bf2_ref,
                    out_ref):
    f32 = jnp.float32
    bf16 = jnp.bfloat16

    x = emb_ref[0]                      # (T, E) f32 (feeds residual path)
    enc = enc_ref[0]                    # (S, E) bf16 (matmul-only operand)
    t, e = x.shape
    h, d = num_heads, head_dim

    # (T, T) additive causal mask, built once per grid step.
    row = lax.broadcasted_iota(jnp.int32, (t, t), 0)
    col = lax.broadcasted_iota(jnp.int32, (t, t), 1)
    causal = jnp.where(col > row, -1e30, 0.0).astype(f32)

    def split_heads(m_t):               # (E, rows) -> (H, rows, d)
        # leading-dim split (d is a sublane multiple) + minor-dims swap
        return jnp.swapaxes(m_t.reshape(h, d, m_t.shape[-1]), 1, 2)

    def merge_heads(ctx):               # (H, rows, d) -> (rows, E)
        rows = ctx.shape[1]
        return jnp.swapaxes(ctx, 1, 2).reshape(e, rows).T

    def attend(q_hrd, k_hrd, v_hrd, mask):
        # single head-batched score / context einsums (no per-head loop)
        s = jnp.einsum('hqd,hkd->hqk', q_hrd.astype(bf16), k_hrd.astype(bf16),
                       preferred_element_type=f32)          # (H, Tq, Tk)
        if mask is not None:
            s = s + mask[None]
        s = s - jnp.max(s, axis=-1, keepdims=True)
        p = jnp.exp(s)
        p = p * pl.reciprocal(jnp.sum(p, axis=-1, keepdims=True), approx=True)
        ctx = jnp.einsum('hqk,hkd->hqd', p.astype(bf16), v_hrd.astype(bf16),
                         preferred_element_type=f32)        # (H, Tq, d)
        return merge_heads(ctx)                             # (Tq, E)

    # ---- masked self-attention (fused QKV) + residual + LN1 ----------------
    x_bf = x.astype(bf16)
    qkv_t = (jnp.dot(x_bf, wqkv1_ref[...], preferred_element_type=f32)
             + bqkv1_ref[...]).T                            # (3E, T)
    q1 = split_heads(qkv_t[:e])
    k1 = split_heads(qkv_t[e:2 * e])
    v1 = split_heads(qkv_t[2 * e:])
    ctx1 = attend(q1, k1, v1, causal)                       # (T, E)
    attn1 = (jnp.dot(ctx1.astype(bf16), wo1_ref[...],
                     preferred_element_type=f32) + bo1_ref[...])
    out1 = _layer_norm(x + attn1, g1_ref[...], be1_ref[...])

    # ---- cross-attention (fused KV on encoder) + residual + LN2 ------------
    q2_t = (jnp.dot(out1.astype(bf16), wq2_ref[...],
                    preferred_element_type=f32) + bq2_ref[...]).T   # (E, T)
    kv2_t = (jnp.dot(enc, wkv2_ref[...],
                     preferred_element_type=f32) + bkv2_ref[...]).T  # (2E, S)
    q2 = split_heads(q2_t)
    k2 = split_heads(kv2_t[:e])
    v2 = split_heads(kv2_t[e:])
    ctx2 = attend(q2, k2, v2, None)                         # (T, E)
    attn2 = (jnp.dot(ctx2.astype(bf16), wo2_ref[...],
                     preferred_element_type=f32) + bo2_ref[...])
    out2 = _layer_norm(out1 + attn2, g2_ref[...], be2_ref[...])

    # ---- FFN (Linear -> ReLU -> Linear; dropouts identity in eval) + LN3 ---
    hid = jnp.maximum(
        jnp.dot(out2.astype(bf16), wf1_ref[...],
                preferred_element_type=f32) + bf1_ref[...], 0.0)
    ffn = (jnp.dot(hid.astype(bf16), wf2_ref[...],
                   preferred_element_type=f32) + bf2_ref[...])
    out3 = _layer_norm(out2 + ffn, g3_ref[...], be3_ref[...])

    out_ref[0] = out3


def _vocab_kernel(x_ref, w_ref, b_ref, o_ref):
    o_ref[...] = (jnp.dot(x_ref[...].astype(jnp.bfloat16), w_ref[...],
                          preferred_element_type=jnp.float32) + b_ref[...])


# ----------------------------- wrapper / glue --------------------------------


def init_params(key, embed_dim, units, num_heads, vocab_size):
    ks = jax.random.split(key, 16)
    n = lambda k, s: (0.02 * jax.random.normal(k, s)).astype(jnp.float32)
    return {
        'embedding': n(ks[0], (vocab_size, embed_dim)),
        'attn1_in_w': n(ks[1], (3 * embed_dim, embed_dim)),
        'attn1_in_b': n(ks[2], (3 * embed_dim,)),
        'attn1_out_w': n(ks[3], (embed_dim, embed_dim)),
        'attn1_out_b': n(ks[4], (embed_dim,)),
        'attn2_in_w': n(ks[5], (3 * embed_dim, embed_dim)),
        'attn2_in_b': n(ks[6], (3 * embed_dim,)),
        'attn2_out_w': n(ks[7], (embed_dim, embed_dim)),
        'attn2_out_b': n(ks[8], (embed_dim,)),
        'ln1_g': jnp.ones((embed_dim,), jnp.float32),
        'ln1_b': jnp.zeros((embed_dim,), jnp.float32),
        'ln2_g': jnp.ones((embed_dim,), jnp.float32),
        'ln2_b': jnp.zeros((embed_dim,), jnp.float32),
        'ln3_g': jnp.ones((embed_dim,), jnp.float32),
        'ln3_b': jnp.zeros((embed_dim,), jnp.float32),
        'ffn_w1': n(ks[9], (units, embed_dim)),
        'ffn_b1': n(ks[10], (units,)),
        'ffn_w2': n(ks[11], (embed_dim, units)),
        'ffn_b2': n(ks[12], (embed_dim,)),
        'out_w': n(ks[13], (vocab_size, embed_dim)),
        'out_b': n(ks[14], (vocab_size,)),
    }


def transformer_decoder_layer(input_ids, encoder_output_sbe, params, num_heads):
    f32, bf16 = jnp.float32, jnp.bfloat16
    E = params['embedding'].shape[1]
    V = params['out_w'].shape[0]
    U = params['ffn_w1'].shape[0]
    d = E // num_heads
    scale = 1.0 / math.sqrt(d)

    # glue: embedding lookup (kept f32 for the residual path); encoder layout
    # change (seq-first -> batch-first) fused with the bf16 matmul-operand cast.
    emb = params['embedding'][input_ids].astype(f32)                    # (B,T,E)
    enc = jnp.transpose(encoder_output_sbe, (1, 0, 2)).astype(bf16)     # (B,S,E)
    B, T, _ = emb.shape
    S = enc.shape[1]

    # --- weight preparation (host-side; matmul weights in bf16) ---
    in_w1, in_b1 = params['attn1_in_w'], params['attn1_in_b']
    wqkv1 = jnp.concatenate([in_w1[:E].T * scale, in_w1[E:].T], axis=1).astype(bf16)
    bqkv1 = jnp.concatenate([in_b1[:E] * scale, in_b1[E:]]).reshape(1, 3 * E)
    wo1 = params['attn1_out_w'].T.astype(bf16)                           # (E,E)
    bo1 = params['attn1_out_b'].reshape(1, E)

    in_w2, in_b2 = params['attn2_in_w'], params['attn2_in_b']
    wq2 = (in_w2[:E].T * scale).astype(bf16)                             # (E,E)
    bq2 = (in_b2[:E] * scale).reshape(1, E)
    wkv2 = in_w2[E:].T.astype(bf16)                                      # (E,2E)
    bkv2 = in_b2[E:].reshape(1, 2 * E)
    wo2 = params['attn2_out_w'].T.astype(bf16)
    bo2 = params['attn2_out_b'].reshape(1, E)

    wf1 = params['ffn_w1'].T.astype(bf16)                                # (E,U)
    bf1 = params['ffn_b1'].reshape(1, U)
    wf2 = params['ffn_w2'].T.astype(bf16)                                # (U,E)
    bf2 = params['ffn_b2'].reshape(1, E)

    weights = [
        wqkv1, bqkv1, wo1, bo1,
        wq2, bq2, wkv2, bkv2, wo2, bo2,
        params['ln1_g'].reshape(1, E), params['ln1_b'].reshape(1, E),
        params['ln2_g'].reshape(1, E), params['ln2_b'].reshape(1, E),
        params['ln3_g'].reshape(1, E), params['ln3_b'].reshape(1, E),
        wf1, bf1, wf2, bf2,
    ]

    def wspec(a):
        nd = a.ndim
        return pl.BlockSpec(a.shape, lambda b, nd=nd: (0,) * nd)

    in_specs = ([pl.BlockSpec((1, T, E), lambda b: (b, 0, 0)),
                 pl.BlockSpec((1, S, E), lambda b: (b, 0, 0))]
                + [wspec(a) for a in weights])
    out_specs = pl.BlockSpec((1, T, E), lambda b: (b, 0, 0))

    # explicit scoped-VMEM budget: double-buffered blocks + in-kernel temps
    wbytes = sum(int(w.size) * w.dtype.itemsize for w in weights)
    actbytes = T * E * 4 + S * E * 2 + T * E * 4
    tmpbytes = 4 * (T * 3 * E * 4 + num_heads * T * max(T, S) * 4 + T * U * 4)
    vmem1 = int(min(max(2 * (wbytes + actbytes) + tmpbytes, 4 << 20), 64 << 20))

    out3 = pl.pallas_call(
        functools.partial(_decoder_kernel, num_heads, d),
        out_shape=jax.ShapeDtypeStruct((B, T, E), f32),
        grid=(B,),
        in_specs=in_specs,
        out_specs=out_specs,
        compiler_params=pltpu.CompilerParams(
            dimension_semantics=("parallel",),
            vmem_limit_bytes=vmem1),
    )(emb, enc, *weights)

    # --- vocab projection: its own (row_tiles, vocab_tiles) grid -------------
    rows = B * T
    x2 = out3.reshape(rows, E)
    tm = rows if rows <= 256 else 256
    rows_p = ((rows + tm - 1) // tm) * tm
    if rows_p != rows:
        x2 = jnp.pad(x2, ((0, rows_p - rows), (0, 0)))

    Vp = ((V + 127) // 128) * 128
    tn = next(t for t in (512, 256, 128) if Vp % t == 0)

    wout = jnp.zeros((E, Vp), bf16).at[:, :V].set(params['out_w'].T.astype(bf16))
    bout = jnp.zeros((1, Vp), f32).at[:, :V].set(params['out_b'][None, :])

    blk2 = tm * E * 4 + E * tn * 2 + tn * 4 + tm * tn * 4
    vmem2 = int(min(max(4 * blk2, 4 << 20), 64 << 20))

    preds_p = pl.pallas_call(
        _vocab_kernel,
        out_shape=jax.ShapeDtypeStruct((rows_p, Vp), f32),
        grid=(rows_p // tm, Vp // tn),
        in_specs=[pl.BlockSpec((tm, E), lambda i, j: (i, 0)),
                  pl.BlockSpec((E, tn), lambda i, j: (0, j)),
                  pl.BlockSpec((1, tn), lambda i, j: (0, j))],
        out_specs=pl.BlockSpec((tm, tn), lambda i, j: (i, j)),
        compiler_params=pltpu.CompilerParams(
            dimension_semantics=("parallel", "parallel"),
            vmem_limit_bytes=vmem2),
    )(x2, wout, bout)

    return preds_p[:rows, :V].reshape(B, T, V)


# ----------------------------- pure-JAX reference ----------------------------


def reference(input_ids, encoder_output_sbe, params, num_heads):
    E = params['embedding'].shape[1]
    d = E // num_heads
    emb = params['embedding'][input_ids]                # (B, T, E)
    x = jnp.transpose(emb, (1, 0, 2))                   # (T, B, E)  seq-first
    enc = encoder_output_sbe                            # (S, B, E)
    T, B, _ = x.shape

    def ln(v, g, b):
        mu = jnp.mean(v, axis=-1, keepdims=True)
        var = jnp.mean((v - mu) ** 2, axis=-1, keepdims=True)
        return (v - mu) / jnp.sqrt(var + 1e-5) * g + b

    def mha(q, k, v, in_w, in_b, out_w, out_b, mask):
        qp = q @ in_w[:E].T + in_b[:E]
        kp = k @ in_w[E:2 * E].T + in_b[E:2 * E]
        vp = v @ in_w[2 * E:].T + in_b[2 * E:]
        def heads(t):
            return t.reshape(t.shape[0], B, num_heads, d).transpose(1, 2, 0, 3)
        qh, kh, vh = heads(qp), heads(kp), heads(vp)
        s = jnp.einsum('bhtd,bhsd->bhts', qh, kh) / math.sqrt(d)
        if mask is not None:
            s = s + mask
        p = jax.nn.softmax(s, axis=-1)
        o = jnp.einsum('bhts,bhsd->bhtd', p, vh).transpose(2, 0, 1, 3).reshape(-1, B, E)
        return o @ out_w.T + out_b

    row = jnp.arange(T)[:, None]
    col = jnp.arange(T)[None, :]
    causal = jnp.where(col > row, -1e30, 0.0).astype(jnp.float32)

    a1 = mha(x, x, x, params['attn1_in_w'], params['attn1_in_b'],
             params['attn1_out_w'], params['attn1_out_b'], causal)
    out1 = ln(x + a1, params['ln1_g'], params['ln1_b'])
    a2 = mha(out1, enc, enc, params['attn2_in_w'], params['attn2_in_b'],
             params['attn2_out_w'], params['attn2_out_b'], None)
    out2 = ln(out1 + a2, params['ln2_g'], params['ln2_b'])
    h = jax.nn.relu(out2 @ params['ffn_w1'].T + params['ffn_b1'])
    ffn = h @ params['ffn_w2'].T + params['ffn_b2']
    out3 = ln(out2 + ffn, params['ln3_g'], params['ln3_b'])
    preds = jnp.transpose(out3, (1, 0, 2)) @ params['out_w'].T + params['out_b']
    return preds                                        # (B, T, vocab)


# --------------------------------- main ---------------------------------------


if __name__ == "__main__":
    embed_dim, units, num_heads, vocab_size = 32, 64, 4, 40
    B, T, S = 2, 8, 10

    key = jax.random.PRNGKey(0)
    k_par, k_ids, k_enc = jax.random.split(key, 3)
    params = init_params(k_par, embed_dim, units, num_heads, vocab_size)
    input_ids = jax.random.randint(k_ids, (B, T), 0, vocab_size)
    encoder_output = (0.1 * jax.random.normal(k_enc, (S, B, embed_dim))).astype(jnp.float32)

    preds = transformer_decoder_layer(input_ids, encoder_output, params, num_heads)
    preds = jax.block_until_ready(preds)

    ref = reference(input_ids, encoder_output, params, num_heads)
    assert preds.shape == (B, T, vocab_size), preds.shape
    # bf16 MXU operands vs f32 reference -> 1e-2 tolerance
    err = float(jnp.max(jnp.abs(preds - ref)))
    assert jnp.allclose(preds, ref, atol=1e-2, rtol=1e-2), err

    print("KERNEL_OK")
</pallas_src>

<mosaic_0001>
module attributes {stable_mosaic.version = 11 : i64} {
  func.func @_decoder_kernel(%arg0: i32, %arg1: memref<1x8x32xf32, #tpu.memory_space<vmem>>, %arg2: memref<1x10x32xbf16, #tpu.memory_space<vmem>>, %arg3: memref<32x96xbf16, #tpu.memory_space<vmem>>, %arg4: memref<1x96xf32, #tpu.memory_space<vmem>>, %arg5: memref<32x32xbf16, #tpu.memory_space<vmem>>, %arg6: memref<1x32xf32, #tpu.memory_space<vmem>>, %arg7: memref<32x32xbf16, #tpu.memory_space<vmem>>, %arg8: memref<1x32xf32, #tpu.memory_space<vmem>>, %arg9: memref<32x64xbf16, #tpu.memory_space<vmem>>, %arg10: memref<1x64xf32, #tpu.memory_space<vmem>>, %arg11: memref<32x32xbf16, #tpu.memory_space<vmem>>, %arg12: memref<1x32xf32, #tpu.memory_space<vmem>>, %arg13: memref<1x32xf32, #tpu.memory_space<vmem>>, %arg14: memref<1x32xf32, #tpu.memory_space<vmem>>, %arg15: memref<1x32xf32, #tpu.memory_space<vmem>>, %arg16: memref<1x32xf32, #tpu.memory_space<vmem>>, %arg17: memref<1x32xf32, #tpu.memory_space<vmem>>, %arg18: memref<1x32xf32, #tpu.memory_space<vmem>>, %arg19: memref<32x64xbf16, #tpu.memory_space<vmem>>, %arg20: memref<1x64xf32, #tpu.memory_space<vmem>>, %arg21: memref<64x32xbf16, #tpu.memory_space<vmem>>, %arg22: memref<1x32xf32, #tpu.memory_space<vmem>>, %arg23: memref<1x8x32xf32, #tpu.memory_space<vmem>>) attributes {dimension_semantics = [#tpu.dimension_semantics<parallel>], iteration_bounds = array<i64: 2>, scalar_prefetch = 0 : i64, scratch_operands = 0 : i64, tpu.core_type = #tpu.core_type<tc>, window_params = [{transform_indices = @transform_0, window_bounds = array<i64: 1, 8, 32>}, {transform_indices = @transform_1, window_bounds = array<i64: 1, 10, 32>}, {pipeline_mode = #tpu.pipeline_mode<synchronous>, transform_indices = @transform_2, window_bounds = array<i64: 32, 96>}, {pipeline_mode = #tpu.pipeline_mode<synchronous>, transform_indices = @transform_3, window_bounds = array<i64: 1, 96>}, {pipeline_mode = #tpu.pipeline_mode<synchronous>, transform_indices = @transform_4, window_bounds = array<i64: 32, 32>}, {pipeline_mode = #tpu.pipeline_mode<synchronous>, transform_indices = @transform_5, window_bounds = array<i64: 1, 32>}, {pipeline_mode = #tpu.pipeline_mode<synchronous>, transform_indices = @transform_6, window_bounds = array<i64: 32, 32>}, {pipeline_mode = #tpu.pipeline_mode<synchronous>, transform_indices = @transform_7, window_bounds = array<i64: 1, 32>}, {pipeline_mode = #tpu.pipeline_mode<synchronous>, transform_indices = @transform_8, window_bounds = array<i64: 32, 64>}, {pipeline_mode = #tpu.pipeline_mode<synchronous>, transform_indices = @transform_9, window_bounds = array<i64: 1, 64>}, {pipeline_mode = #tpu.pipeline_mode<synchronous>, transform_indices = @transform_10, window_bounds = array<i64: 32, 32>}, {pipeline_mode = #tpu.pipeline_mode<synchronous>, transform_indices = @transform_11, window_bounds = array<i64: 1, 32>}, {pipeline_mode = #tpu.pipeline_mode<synchronous>, transform_indices = @transform_12, window_bounds = array<i64: 1, 32>}, {pipeline_mode = #tpu.pipeline_mode<synchronous>, transform_indices = @transform_13, window_bounds = array<i64: 1, 32>}, {pipeline_mode = #tpu.pipeline_mode<synchronous>, transform_indices = @transform_14, window_bounds = array<i64: 1, 32>}, {pipeline_mode = #tpu.pipeline_mode<synchronous>, transform_indices = @transform_15, window_bounds = array<i64: 1, 32>}, {pipeline_mode = #tpu.pipeline_mode<synchronous>, transform_indices = @transform_16, window_bounds = array<i64: 1, 32>}, {pipeline_mode = #tpu.pipeline_mode<synchronous>, transform_indices = @transform_17, window_bounds = array<i64: 1, 32>}, {pipeline_mode = #tpu.pipeline_mode<synchronous>, transform_indices = @transform_18, window_bounds = array<i64: 32, 64>}, {pipeline_mode = #tpu.pipeline_mode<synchronous>, transform_indices = @transform_19, window_bounds = array<i64: 1, 64>}, {pipeline_mode = #tpu.pipeline_mode<synchronous>, transform_indices = @transform_20, window_bounds = array<i64: 64, 32>}, {pipeline_mode = #tpu.pipeline_mode<synchronous>, transform_indices = @transform_21, window_bounds = array<i64: 1, 32>}, {transform_indices = @transform_22, window_bounds = array<i64: 1, 8, 32>}]} {
    %c0 = arith.constant 0 : index
    %c0_0 = arith.constant 0 : index
    %c0_1 = arith.constant 0 : index
    %0 = vector.load %arg1[%c0, %c0_0, %c0_1] : memref<1x8x32xf32, #tpu.memory_space<vmem>>, vector<1x8x32xf32>
    %1 = vector.shape_cast %0 : vector<1x8x32xf32> to vector<8x32xf32>
    %c0_2 = arith.constant 0 : index
    %c0_3 = arith.constant 0 : index
    %c0_4 = arith.constant 0 : index
    %2 = vector.load %arg2[%c0_2, %c0_3, %c0_4] : memref<1x10x32xbf16, #tpu.memory_space<vmem>>, vector<1x10x32xbf16>
    %3 = vector.shape_cast %2 : vector<1x10x32xbf16> to vector<10x32xbf16>
    %4 = tpu.iota {dimensions = array<i32: 0>} : vector<8x8xi32>
    %5 = tpu.iota {dimensions = array<i32: 1>} : vector<8x8xi32>
    %6 = arith.cmpi sgt, %5, %4 : vector<8x8xi32>
    %cst = arith.constant -1.000000e+30 : f32
    %cst_5 = arith.constant 0.000000e+00 : f32
    %7 = vector.broadcast %cst : f32 to vector<8x8xf32>
    %8 = vector.broadcast %cst_5 : f32 to vector<8x8xf32>
    %9 = arith.select %6, %7, %8 : vector<8x8xi1>, vector<8x8xf32>
    %10 = arith.truncf %1 : vector<8x32xf32> to vector<8x32xbf16>
    %c0_6 = arith.constant 0 : index
    %c0_7 = arith.constant 0 : index
    %11 = vector.load %arg3[%c0_6, %c0_7] : memref<32x96xbf16, #tpu.memory_space<vmem>>, vector<32x96xbf16>
    %cst_8 = arith.constant dense<0.000000e+00> : vector<8x96xf32>
    %12 = tpu.matmul %10, %11, %cst_8 {dimension_numbers = #tpu.dot_dimension_numbers<[1], [0], [0], [1], [0, 0, 1, 1], [], []>} : vector<8x32xbf16>, vector<32x96xbf16>, vector<8x96xf32> -> vector<8x96xf32>
    %c0_9 = arith.constant 0 : index
    %c0_10 = arith.constant 0 : index
    %13 = vector.load %arg4[%c0_9, %c0_10] : memref<1x96xf32, #tpu.memory_space<vmem>>, vector<1x96xf32>
    %14 = vector.broadcast %13 : vector<1x96xf32> to vector<8x96xf32>
    %15 = arith.addf %12, %14 : vector<8x96xf32>
    %16 = tpu.transpose %15, [1, 0] : vector<8x96xf32> -> vector<96x8xf32>
    %17 = vector.extract_strided_slice %16 {offsets = [0, 0], sizes = [32, 8], strides = [1, 1]} : vector<96x8xf32> to vector<32x8xf32>
    %18 = vector.shape_cast %17 : vector<32x8xf32> to vector<4x8x8xf32>
    %19 = tpu.transpose %18, [0, 2, 1] : vector<4x8x8xf32> -> vector<4x8x8xf32>
    %20 = vector.extract_strided_slice %16 {offsets = [32, 0], sizes = [32, 8], strides = [1, 1]} : vector<96x8xf32> to vector<32x8xf32>
    %21 = vector.shape_cast %20 : vector<32x8xf32> to vector<4x8x8xf32>
    %22 = tpu.transpose %21, [0, 2, 1] : vector<4x8x8xf32> -> vector<4x8x8xf32>
    %23 = vector.extract_strided_slice %16 {offsets = [64, 0], sizes = [32, 8], strides = [1, 1]} : vector<96x8xf32> to vector<32x8xf32>
    %24 = vector.shape_cast %23 : vector<32x8xf32> to vector<4x8x8xf32>
    %25 = tpu.transpose %24, [0, 2, 1] : vector<4x8x8xf32> -> vector<4x8x8xf32>
    %26 = arith.truncf %19 : vector<4x8x8xf32> to vector<4x8x8xbf16>
    %27 = arith.truncf %22 : vector<4x8x8xf32> to vector<4x8x8xbf16>
    "tpu.trace_start"() <{level = 10 : i32, message = "hqd,hkd->hqk"}> : () -> ()
    %cst_11 = arith.constant dense<0.000000e+00> : vector<4x8x8xf32>
    %28 = tpu.matmul %26, %27, %cst_11 {dimension_numbers = #tpu.dot_dimension_numbers<[2], [2], [1], [1], [0, 0, 0, 1, 1, 1], [0], [0]>} : vector<4x8x8xbf16>, vector<4x8x8xbf16>, vector<4x8x8xf32> -> vector<4x8x8xf32>
    "tpu.trace_stop"() : () -> ()
    %29 = vector.shape_cast %9 : vector<8x8xf32> to vector<1x8x8xf32>
    %30 = vector.broadcast %29 : vector<1x8x8xf32> to vector<4x8x8xf32>
    %31 = arith.addf %28, %30 : vector<4x8x8xf32>
    %cst_12 = arith.constant dense<0xFF800000> : vector<4x8xf32>
    %32 = vector.multi_reduction <maximumf>, %31, %cst_12 [2] : vector<4x8x8xf32> to vector<4x8xf32>
    %33 = vector.shape_cast %32 : vector<4x8xf32> to vector<4x8x1xf32>
    %34 = vector.broadcast %33 : vector<4x8x1xf32> to vector<4x8x8xf32>
    %35 = arith.subf %31, %34 : vector<4x8x8xf32>
    %36 = math.exp %35 : vector<4x8x8xf32>
    %cst_13 = arith.constant dense<0.000000e+00> : vector<4x8xf32>
    %37 = vector.multi_reduction <add>, %36, %cst_13 [2] : vector<4x8x8xf32> to vector<4x8xf32>
    %38 = vector.shape_cast %37 : vector<4x8xf32> to vector<4x8x1xf32>
    %39 = tpu.reciprocal %38 {approx = true} : vector<4x8x1xf32> -> vector<4x8x1xf32>
    %40 = vector.broadcast %39 : vector<4x8x1xf32> to vector<4x8x8xf32>
    %41 = arith.mulf %36, %40 : vector<4x8x8xf32>
    %42 = arith.truncf %41 : vector<4x8x8xf32> to vector<4x8x8xbf16>
    %43 = arith.truncf %25 : vector<4x8x8xf32> to vector<4x8x8xbf16>
    "tpu.trace_start"() <{level = 10 : i32, message = "hqk,hkd->hqd"}> : () -> ()
    %cst_14 = arith.constant dense<0.000000e+00> : vector<4x8x8xf32>
    %44 = tpu.matmul %42, %43, %cst_14 {dimension_numbers = #tpu.dot_dimension_numbers<[2], [1], [1], [2], [0, 0, 0, 1, 1, 2], [0], [0]>} : vector<4x8x8xbf16>, vector<4x8x8xbf16>, vector<4x8x8xf32> -> vector<4x8x8xf32>
    "tpu.trace_stop"() : () -> ()
    %45 = tpu.transpose %44, [0, 2, 1] : vector<4x8x8xf32> -> vector<4x8x8xf32>
    %46 = vector.shape_cast %45 : vector<4x8x8xf32> to vector<32x8xf32>
    %47 = tpu.transpose %46, [1, 0] : vector<32x8xf32> -> vector<8x32xf32>
    %48 = arith.truncf %47 : vector<8x32xf32> to vector<8x32xbf16>
    %c0_15 = arith.constant 0 : index
    %c0_16 = arith.constant 0 : index
    %49 = vector.load %arg5[%c0_15, %c0_16] : memref<32x32xbf16, #tpu.memory_space<vmem>>, vector<32x32xbf16>
    %cst_17 = arith.constant dense<0.000000e+00> : vector<8x32xf32>
    %50 = tpu.matmul %48, %49, %cst_17 {dimension_numbers = #tpu.dot_dimension_numbers<[1], [0], [0], [1], [0, 0, 1, 1], [], []>} : vector<8x32xbf16>, vector<32x32xbf16>, vector<8x32xf32> -> vector<8x32xf32>
    %c0_18 = arith.constant 0 : index
    %c0_19 = arith.constant 0 : index
    %51 = vector.load %arg6[%c0_18, %c0_19] : memref<1x32xf32, #tpu.memory_space<vmem>>, vector<1x32xf32>
    %52 = vector.broadcast %51 : vector<1x32xf32> to vector<8x32xf32>
    %53 = arith.addf %50, %52 : vector<8x32xf32>
    %54 = arith.addf %1, %53 : vector<8x32xf32>
    %c0_20 = arith.constant 0 : index
    %c0_21 = arith.constant 0 : index
    %55 = vector.load %arg13[%c0_20, %c0_21] : memref<1x32xf32, #tpu.memory_space<vmem>>, vector<1x32xf32>
    %c0_22 = arith.constant 0 : index
    %c0_23 = arith.constant 0 : index
    %56 = vector.load %arg14[%c0_22, %c0_23] : memref<1x32xf32, #tpu.memory_space<vmem>>, vector<1x32xf32>
    %cst_24 = arith.constant dense<0.000000e+00> : vector<8xf32>
    %57 = vector.multi_reduction <add>, %54, %cst_24 [1] : vector<8x32xf32> to vector<8xf32>
    %58 = vector.shape_cast %57 : vector<8xf32> to vector<8x1xf32>
    %cst_25 = arith.constant 3.200000e+01 : f32
    %59 = vector.broadcast %cst_25 : f32 to vector<8x1xf32>
    %60 = arith.divf %58, %59 : vector<8x1xf32>
    %61 = vector.broadcast %60 : vector<8x1xf32> to vector<8x32xf32>
    %62 = arith.subf %54, %61 : vector<8x32xf32>
    %63 = arith.mulf %62, %62 : vector<8x32xf32>
    %cst_26 = arith.constant dense<0.000000e+00> : vector<8xf32>
    %64 = vector.multi_reduction <add>, %63, %cst_26 [1] : vector<8x32xf32> to vector<8xf32>
    %65 = vector.shape_cast %64 : vector<8xf32> to vector<8x1xf32>
    %cst_27 = arith.constant 3.200000e+01 : f32
    %66 = vector.broadcast %cst_27 : f32 to vector<8x1xf32>
    %67 = arith.divf %65, %66 : vector<8x1xf32>
    %68 = vector.broadcast %60 : vector<8x1xf32> to vector<8x32xf32>
    %69 = arith.subf %54, %68 : vector<8x32xf32>
    %cst_28 = arith.constant 9.99999974E-6 : f32
    %70 = vector.broadcast %cst_28 : f32 to vector<8x1xf32>
    %71 = arith.addf %67, %70 : vector<8x1xf32>
    %72 = math.rsqrt %71 : vector<8x1xf32>
    %73 = vector.broadcast %72 : vector<8x1xf32> to vector<8x32xf32>
    %74 = arith.mulf %69, %73 : vector<8x32xf32>
    %75 = vector.broadcast %55 : vector<1x32xf32> to vector<8x32xf32>
    %76 = arith.mulf %74, %75 : vector<8x32xf32>
    %77 = vector.broadcast %56 : vector<1x32xf32> to vector<8x32xf32>
    %78 = arith.addf %76, %77 : vector<8x32xf32>
    %79 = arith.truncf %78 : vector<8x32xf32> to vector<8x32xbf16>
    %c0_29 = arith.constant 0 : index
    %c0_30 = arith.constant 0 : index
    %80 = vector.load %arg7[%c0_29, %c0_30] : memref<32x32xbf16, #tpu.memory_space<vmem>>, vector<32x32xbf16>
    %cst_31 = arith.constant dense<0.000000e+00> : vector<8x32xf32>
    %81 = tpu.matmul %79, %80, %cst_31 {dimension_numbers = #tpu.dot_dimension_numbers<[1], [0], [0], [1], [0, 0, 1, 1], [], []>} : vector<8x32xbf16>, vector<32x32xbf16>, vector<8x32xf32> -> vector<8x32xf32>
    %c0_32 = arith.constant 0 : index
    %c0_33 = arith.constant 0 : index
    %82 = vector.load %arg8[%c0_32, %c0_33] : memref<1x32xf32, #tpu.memory_space<vmem>>, vector<1x32xf32>
    %83 = vector.broadcast %82 : vector<1x32xf32> to vector<8x32xf32>
    %84 = arith.addf %81, %83 : vector<8x32xf32>
    %85 = tpu.transpose %84, [1, 0] : vector<8x32xf32> -> vector<32x8xf32>
    %c0_34 = arith.constant 0 : index
    %c0_35 = arith.constant 0 : index
    %86 = vector.load %arg9[%c0_34, %c0_35] : memref<32x64xbf16, #tpu.memory_space<vmem>>, vector<32x64xbf16>
    %cst_36 = arith.constant dense<0.000000e+00> : vector<10x64xf32>
    %87 = tpu.matmul %3, %86, %cst_36 {dimension_numbers = #tpu.dot_dimension_numbers<[1], [0], [0], [1], [0, 0, 1, 1], [], []>} : vector<10x32xbf16>, vector<32x64xbf16>, vector<10x64xf32> -> vector<10x64xf32>
    %c0_37 = arith.constant 0 : index
    %c0_38 = arith.constant 0 : index
    %88 = vector.load %arg10[%c0_37, %c0_38] : memref<1x64xf32, #tpu.memory_space<vmem>>, vector<1x64xf32>
    %89 = vector.broadcast %88 : vector<1x64xf32> to vector<10x64xf32>
    %90 = arith.addf %87, %89 : vector<10x64xf32>
    %91 = tpu.transpose %90, [1, 0] : vector<10x64xf32> -> vector<64x10xf32>
    %92 = vector.shape_cast %85 : vector<32x8xf32> to vector<4x8x8xf32>
    %93 = tpu.transpose %92, [0, 2, 1] : vector<4x8x8xf32> -> vector<4x8x8xf32>
    %94 = vector.extract_strided_slice %91 {offsets = [0, 0], sizes = [32, 10], strides = [1, 1]} : vector<64x10xf32> to vector<32x10xf32>
    %95 = vector.shape_cast %94 : vector<32x10xf32> to vector<4x8x10xf32>
    %96 = tpu.transpose %95, [0, 2, 1] : vector<4x8x10xf32> -> vector<4x10x8xf32>
    %97 = vector.extract_strided_slice %91 {offsets = [32, 0], sizes = [32, 10], strides = [1, 1]} : vector<64x10xf32> to vector<32x10xf32>
    %98 = vector.shape_cast %97 : vector<32x10xf32> to vector<4x8x10xf32>
    %99 = tpu.transpose %98, [0, 2, 1] : vector<4x8x10xf32> -> vector<4x10x8xf32>
    %100 = arith.truncf %93 : vector<4x8x8xf32> to vector<4x8x8xbf16>
    %101 = arith.truncf %96 : vector<4x10x8xf32> to vector<4x10x8xbf16>
    "tpu.trace_start"() <{level = 10 : i32, message = "hqd,hkd->hqk"}> : () -> ()
    %cst_39 = arith.constant dense<0.000000e+00> : vector<4x8x10xf32>
    %102 = tpu.matmul %100, %101, %cst_39 {dimension_numbers = #tpu.dot_dimension_numbers<[2], [2], [1], [1], [0, 0, 0, 1, 1, 1], [0], [0]>} : vector<4x8x8xbf16>, vector<4x10x8xbf16>, vector<4x8x10xf32> -> vector<4x8x10xf32>
    "tpu.trace_stop"() : () -> ()
    %cst_40 = arith.constant dense<0xFF800000> : vector<4x8xf32>
    %103 = vector.multi_reduction <maximumf>, %102, %cst_40 [2] : vector<4x8x10xf32> to vector<4x8xf32>
    %104 = vector.shape_cast %103 : vector<4x8xf32> to vector<4x8x1xf32>
    %105 = vector.broadcast %104 : vector<4x8x1xf32> to vector<4x8x10xf32>
    %106 = arith.subf %102, %105 : vector<4x8x10xf32>
    %107 = math.exp %106 : vector<4x8x10xf32>
    %cst_41 = arith.constant dense<0.000000e+00> : vector<4x8xf32>
    %108 = vector.multi_reduction <add>, %107, %cst_41 [2] : vector<4x8x10xf32> to vector<4x8xf32>
    %109 = vector.shape_cast %108 : vector<4x8xf32> to vector<4x8x1xf32>
    %110 = tpu.reciprocal %109 {approx = true} : vector<4x8x1xf32> -> vector<4x8x1xf32>
    %111 = vector.broadcast %110 : vector<4x8x1xf32> to vector<4x8x10xf32>
    %112 = arith.mulf %107, %111 : vector<4x8x10xf32>
    %113 = arith.truncf %112 : vector<4x8x10xf32> to vector<4x8x10xbf16>
    %114 = arith.truncf %99 : vector<4x10x8xf32> to vector<4x10x8xbf16>
    "tpu.trace_start"() <{level = 10 : i32, message = "hqk,hkd->hqd"}> : () -> ()
    %cst_42 = arith.constant dense<0.000000e+00> : vector<4x8x8xf32>
    %115 = tpu.matmul %113, %114, %cst_42 {dimension_numbers = #tpu.dot_dimension_numbers<[2], [1], [1], [2], [0, 0, 0, 1, 1, 2], [0], [0]>} : vector<4x8x10xbf16>, vector<4x10x8xbf16>, vector<4x8x8xf32> -> vector<4x8x8xf32>
    "tpu.trace_stop"() : () -> ()
    %116 = tpu.transpose %115, [0, 2, 1] : vector<4x8x8xf32> -> vector<4x8x8xf32>
    %117 = vector.shape_cast %116 : vector<4x8x8xf32> to vector<32x8xf32>
    %118 = tpu.transpose %117, [1, 0] : vector<32x8xf32> -> vector<8x32xf32>
    %119 = arith.truncf %118 : vector<8x32xf32> to vector<8x32xbf16>
    %c0_43 = arith.constant 0 : index
    %c0_44 = arith.constant 0 : index
    %120 = vector.load %arg11[%c0_43, %c0_44] : memref<32x32xbf16, #tpu.memory_space<vmem>>, vector<32x32xbf16>
    %cst_45 = arith.constant dense<0.000000e+00> : vector<8x32xf32>
    %121 = tpu.matmul %119, %120, %cst_45 {dimension_numbers = #tpu.dot_dimension_numbers<[1], [0], [0], [1], [0, 0, 1, 1], [], []>} : vector<8x32xbf16>, vector<32x32xbf16>, vector<8x32xf32> -> vector<8x32xf32>
    %c0_46 = arith.constant 0 : index
    %c0_47 = arith.constant 0 : index
    %122 = vector.load %arg12[%c0_46, %c0_47] : memref<1x32xf32, #tpu.memory_space<vmem>>, vector<1x32xf32>
    %123 = vector.broadcast %122 : vector<1x32xf32> to vector<8x32xf32>
    %124 = arith.addf %121, %123 : vector<8x32xf32>
    %125 = arith.addf %78, %124 : vector<8x32xf32>
    %c0_48 = arith.constant 0 : index
    %c0_49 = arith.constant 0 : index
    %126 = vector.load %arg15[%c0_48, %c0_49] : memref<1x32xf32, #tpu.memory_space<vmem>>, vector<1x32xf32>
    %c0_50 = arith.constant 0 : index
    %c0_51 = arith.constant 0 : index
    %127 = vector.load %arg16[%c0_50, %c0_51] : memref<1x32xf32, #tpu.memory_space<vmem>>, vector<1x32xf32>
    %cst_52 = arith.constant dense<0.000000e+00> : vector<8xf32>
    %128 = vector.multi_reduction <add>, %125, %cst_52 [1] : vector<8x32xf32> to vector<8xf32>
    %129 = vector.shape_cast %128 : vector<8xf32> to vector<8x1xf32>
    %cst_53 = arith.constant 3.200000e+01 : f32
    %130 = vector.broadcast %cst_53 : f32 to vector<8x1xf32>
    %131 = arith.divf %129, %130 : vector<8x1xf32>
    %132 = vector.broadcast %131 : vector<8x1xf32> to vector<8x32xf32>
    %133 = arith.subf %125, %132 : vector<8x32xf32>
    %134 = arith.mulf %133, %133 : vector<8x32xf32>
    %cst_54 = arith.constant dense<0.000000e+00> : vector<8xf32>
    %135 = vector.multi_reduction <add>, %134, %cst_54 [1] : vector<8x32xf32> to vector<8xf32>
    %136 = vector.shape_cast %135 : vector<8xf32> to vector<8x1xf32>
    %cst_55 = arith.constant 3.200000e+01 : f32
    %137 = vector.broadcast %cst_55 : f32 to vector<8x1xf32>
    %138 = arith.divf %136, %137 : vector<8x1xf32>
    %139 = vector.broadcast %131 : vector<8x1xf32> to vector<8x32xf32>
    %140 = arith.subf %125, %139 : vector<8x32xf32>
    %cst_56 = arith.constant 9.99999974E-6 : f32
    %141 = vector.broadcast %cst_56 : f32 to vector<8x1xf32>
    %142 = arith.addf %138, %141 : vector<8x1xf32>
    %143 = math.rsqrt %142 : vector<8x1xf32>
    %144 = vector.broadcast %143 : vector<8x1xf32> to vector<8x32xf32>
    %145 = arith.mulf %140, %144 : vector<8x32xf32>
    %146 = vector.broadcast %126 : vector<1x32xf32> to vector<8x32xf32>
    %147 = arith.mulf %145, %146 : vector<8x32xf32>
    %148 = vector.broadcast %127 : vector<1x32xf32> to vector<8x32xf32>
    %149 = arith.addf %147, %148 : vector<8x32xf32>
    %150 = arith.truncf %149 : vector<8x32xf32> to vector<8x32xbf16>
    %c0_57 = arith.constant 0 : index
    %c0_58 = arith.constant 0 : index
    %151 = vector.load %arg19[%c0_57, %c0_58] : memref<32x64xbf16, #tpu.memory_space<vmem>>, vector<32x64xbf16>
    %cst_59 = arith.constant dense<0.000000e+00> : vector<8x64xf32>
    %152 = tpu.matmul %150, %151, %cst_59 {dimension_numbers = #tpu.dot_dimension_numbers<[1], [0], [0], [1], [0, 0, 1, 1], [], []>} : vector<8x32xbf16>, vector<32x64xbf16>, vector<8x64xf32> -> vector<8x64xf32>
    %c0_60 = arith.constant 0 : index
    %c0_61 = arith.constant 0 : index
    %153 = vector.load %arg20[%c0_60, %c0_61] : memref<1x64xf32, #tpu.memory_space<vmem>>, vector<1x64xf32>
    %154 = vector.broadcast %153 : vector<1x64xf32> to vector<8x64xf32>
    %155 = arith.addf %152, %154 : vector<8x64xf32>
    %cst_62 = arith.constant 0.000000e+00 : f32
    %156 = vector.broadcast %cst_62 : f32 to vector<8x64xf32>
    %157 = arith.maximumf %155, %156 : vector<8x64xf32>
    %158 = arith.truncf %157 : vector<8x64xf32> to vector<8x64xbf16>
    %c0_63 = arith.constant 0 : index
    %c0_64 = arith.constant 0 : index
    %159 = vector.load %arg21[%c0_63, %c0_64] : memref<64x32xbf16, #tpu.memory_space<vmem>>, vector<64x32xbf16>
    %cst_65 = arith.constant dense<0.000000e+00> : vector<8x32xf32>
    %160 = tpu.matmul %158, %159, %cst_65 {dimension_numbers = #tpu.dot_dimension_numbers<[1], [0], [0], [1], [0, 0, 1, 1], [], []>} : vector<8x64xbf16>, vector<64x32xbf16>, vector<8x32xf32> -> vector<8x32xf32>
    %c0_66 = arith.constant 0 : index
    %c0_67 = arith.constant 0 : index
    %161 = vector.load %arg22[%c0_66, %c0_67] : memref<1x32xf32, #tpu.memory_space<vmem>>, vector<1x32xf32>
    %162 = vector.broadcast %161 : vector<1x32xf32> to vector<8x32xf32>
    %163 = arith.addf %160, %162 : vector<8x32xf32>
    %164 = arith.addf %149, %163 : vector<8x32xf32>
    %c0_68 = arith.constant 0 : index
    %c0_69 = arith.constant 0 : index
    %165 = vector.load %arg17[%c0_68, %c0_69] : memref<1x32xf32, #tpu.memory_space<vmem>>, vector<1x32xf32>
    %c0_70 = arith.constant 0 : index
    %c0_71 = arith.constant 0 : index
    %166 = vector.load %arg18[%c0_70, %c0_71] : memref<1x32xf32, #tpu.memory_space<vmem>>, vector<1x32xf32>
    %cst_72 = arith.constant dense<0.000000e+00> : vector<8xf32>
    %167 = vector.multi_reduction <add>, %164, %cst_72 [1] : vector<8x32xf32> to vector<8xf32>
    %168 = vector.shape_cast %167 : vector<8xf32> to vector<8x1xf32>
    %cst_73 = arith.constant 3.200000e+01 : f32
    %169 = vector.broadcast %cst_73 : f32 to vector<8x1xf32>
    %170 = arith.divf %168, %169 : vector<8x1xf32>
    %171 = vector.broadcast %170 : vector<8x1xf32> to vector<8x32xf32>
    %172 = arith.subf %164, %171 : vector<8x32xf32>
    %173 = arith.mulf %172, %172 : vector<8x32xf32>
    %cst_74 = arith.constant dense<0.000000e+00> : vector<8xf32>
    %174 = vector.multi_reduction <add>, %173, %cst_74 [1] : vector<8x32xf32> to vector<8xf32>
    %175 = vector.shape_cast %174 : vector<8xf32> to vector<8x1xf32>
    %cst_75 = arith.constant 3.200000e+01 : f32
    %176 = vector.broadcast %cst_75 : f32 to vector<8x1xf32>
    %177 = arith.divf %175, %176 : vector<8x1xf32>
    %178 = vector.broadcast %170 : vector<8x1xf32> to vector<8x32xf32>
    %179 = arith.subf %164, %178 : vector<8x32xf32>
    %cst_76 = arith.constant 9.99999974E-6 : f32
    %180 = vector.broadcast %cst_76 : f32 to vector<8x1xf32>
    %181 = arith.addf %177, %180 : vector<8x1xf32>
    %182 = math.rsqrt %181 : vector<8x1xf32>
    %183 = vector.broadcast %182 : vector<8x1xf32> to vector<8x32xf32>
    %184 = arith.mulf %179, %183 : vector<8x32xf32>
    %185 = vector.broadcast %165 : vector<1x32xf32> to vector<8x32xf32>
    %186 = arith.mulf %184, %185 : vector<8x32xf32>
    %187 = vector.broadcast %166 : vector<1x32xf32> to vector<8x32xf32>
    %188 = arith.addf %186, %187 : vector<8x32xf32>
    %c0_77 = arith.constant 0 : index
    %c0_78 = arith.constant 0 : index
    %c0_79 = arith.constant 0 : index
    %189 = vector.load %arg23[%c0_77, %c0_78, %c0_79] : memref<1x8x32xf32, #tpu.memory_space<vmem>>, vector<1x8x32xf32>
    %190 = vector.shape_cast %189 : vector<1x8x32xf32> to vector<8x32xf32>
    %191 = vector.shape_cast %188 : vector<8x32xf32> to vector<1x8x32xf32>
    tpu.vector_store %arg23[%c0_77, %c0_78, %c0_79], %191 {strides = array<i32>} : memref<1x8x32xf32, #tpu.memory_space<vmem>>, vector<1x8x32xf32>,
    return
  }
  func.func @transform_0(%arg0: i32) -> (i32, i32, i32) {
    %c0_i32 = arith.constant 0 : i32
    %c0_i32_0 = arith.constant 0 : i32
    %c0_i32_1 = arith.constant 0 : i32
    return %arg0, %c0_i32, %c0_i32_0 : i32, i32, i32
  }
  func.func @transform_1(%arg0: i32) -> (i32, i32, i32) {
    %c0_i32 = arith.constant 0 : i32
    %c0_i32_0 = arith.constant 0 : i32
    %c0_i32_1 = arith.constant 0 : i32
    return %arg0, %c0_i32, %c0_i32_0 : i32, i32, i32
  }
  func.func @transform_2(%arg0: i32) -> (i32, i32) {
    %c0_i32 = arith.constant 0 : i32
    %c0_i32_0 = arith.constant 0 : i32
    %c0_i32_1 = arith.constant 0 : i32
    return %c0_i32, %c0_i32_0 : i32, i32
  }
  func.func @transform_3(%arg0: i32) -> (i32, i32) {
    %c0_i32 = arith.constant 0 : i32
    %c0_i32_0 = arith.constant 0 : i32
    %c0_i32_1 = arith.constant 0 : i32
    return %c0_i32, %c0_i32_0 : i32, i32
  }
  func.func @transform_4(%arg0: i32) -> (i32, i32) {
    %c0_i32 = arith.constant 0 : i32
    %c0_i32_0 = arith.constant 0 : i32
    %c0_i32_1 = arith.constant 0 : i32
    return %c0_i32, %c0_i32_0 : i32, i32
  }
  func.func @transform_5(%arg0: i32) -> (i32, i32) {
    %c0_i32 = arith.constant 0 : i32
    %c0_i32_0 = arith.constant 0 : i32
    %c0_i32_1 = arith.constant 0 : i32
    return %c0_i32, %c0_i32_0 : i32, i32
  }
  func.func @transform_6(%arg0: i32) -> (i32, i32) {
    %c0_i32 = arith.constant 0 : i32
    %c0_i32_0 = arith.constant 0 : i32
    %c0_i32_1 = arith.constant 0 : i32
    return %c0_i32, %c0_i32_0 : i32, i32
  }
  func.func @transform_7(%arg0: i32) -> (i32, i32) {
    %c0_i32 = arith.constant 0 : i32
    %c0_i32_0 = arith.constant 0 : i32
    %c0_i32_1 = arith.constant 0 : i32
    return %c0_i32, %c0_i32_0 : i32, i32
  }
  func.func @transform_8(%arg0: i32) -> (i32, i32) {
    %c0_i32 = arith.constant 0 : i32
    %c0_i32_0 = arith.constant 0 : i32
    %c0_i32_1 = arith.constant 0 : i32
    return %c0_i32, %c0_i32_0 : i32, i32
  }
  func.func @transform_9(%arg0: i32) -> (i32, i32) {
    %c0_i32 = arith.constant 0 : i32
    %c0_i32_0 = arith.constant 0 : i32
    %c0_i32_1 = arith.constant 0 : i32
    return %c0_i32, %c0_i32_0 : i32, i32
  }
  func.func @transform_10(%arg0: i32) -> (i32, i32) {
    %c0_i32 = arith.constant 0 : i32
    %c0_i32_0 = arith.constant 0 : i32
    %c0_i32_1 = arith.constant 0 : i32
    return %c0_i32, %c0_i32_0 : i32, i32
  }
  func.func @transform_11(%arg0: i32) -> (i32, i32) {
    %c0_i32 = arith.constant 0 : i32
    %c0_i32_0 = arith.constant 0 : i32
    %c0_i32_1 = arith.constant 0 : i32
    return %c0_i32, %c0_i32_0 : i32, i32
  }
  func.func @transform_12(%arg0: i32) -> (i32, i32) {
    %c0_i32 = arith.constant 0 : i32
    %c0_i32_0 = arith.constant 0 : i32
    %c0_i32_1 = arith.constant 0 : i32
    return %c0_i32, %c0_i32_0 : i32, i32
  }
  func.func @transform_13(%arg0: i32) -> (i32, i32) {
    %c0_i32 = arith.constant 0 : i32
    %c0_i32_0 = arith.constant 0 : i32
    %c0_i32_1 = arith.constant 0 : i32
    return %c0_i32, %c0_i32_0 : i32, i32
  }
  func.func @transform_14(%arg0: i32) -> (i32, i32) {
    %c0_i32 = arith.constant 0 : i32
    %c0_i32_0 = arith.constant 0 : i32
    %c0_i32_1 = arith.constant 0 : i32
    return %c0_i32, %c0_i32_0 : i32, i32
  }
  func.func @transform_15(%arg0: i32) -> (i32, i32) {
    %c0_i32 = arith.constant 0 : i32
    %c0_i32_0 = arith.constant 0 : i32
    %c0_i32_1 = arith.constant 0 : i32
    return %c0_i32, %c0_i32_0 : i32, i32
  }
  func.func @transform_16(%arg0: i32) -> (i32, i32) {
    %c0_i32 = arith.constant 0 : i32
    %c0_i32_0 = arith.constant 0 : i32
    %c0_i32_1 = arith.constant 0 : i32
    return %c0_i32, %c0_i32_0 : i32, i32
  }
  func.func @transform_17(%arg0: i32) -> (i32, i32) {
    %c0_i32 = arith.constant 0 : i32
    %c0_i32_0 = arith.constant 0 : i32
    %c0_i32_1 = arith.constant 0 : i32
    return %c0_i32, %c0_i32_0 : i32, i32
  }
  func.func @transform_18(%arg0: i32) -> (i32, i32) {
    %c0_i32 = arith.constant 0 : i32
    %c0_i32_0 = arith.constant 0 : i32
    %c0_i32_1 = arith.constant 0 : i32
    return %c0_i32, %c0_i32_0 : i32, i32
  }
  func.func @transform_19(%arg0: i32) -> (i32, i32) {
    %c0_i32 = arith.constant 0 : i32
    %c0_i32_0 = arith.constant 0 : i32
    %c0_i32_1 = arith.constant 0 : i32
    return %c0_i32, %c0_i32_0 : i32, i32
  }
  func.func @transform_20(%arg0: i32) -> (i32, i32) {
    %c0_i32 = arith.constant 0 : i32
    %c0_i32_0 = arith.constant 0 : i32
    %c0_i32_1 = arith.constant 0 : i32
    return %c0_i32, %c0_i32_0 : i32, i32
  }
  func.func @transform_21(%arg0: i32) -> (i32, i32) {
    %c0_i32 = arith.constant 0 : i32
    %c0_i32_0 = arith.constant 0 : i32
    %c0_i32_1 = arith.constant 0 : i32
    return %c0_i32, %c0_i32_0 : i32, i32
  }
  func.func @transform_22(%arg0: i32) -> (i32, i32, i32) {
    %c0_i32 = arith.constant 0 : i32
    %c0_i32_0 = arith.constant 0 : i32
    %c0_i32_1 = arith.constant 0 : i32
    return %arg0, %c0_i32, %c0_i32_0 : i32, i32, i32
  }
}

</mosaic_0001>

<llo_original>
// kernel: tpu_custom_call.1
$region0: #{tpu_custom_call.1}
  #allocation0 [shape = 'u32[]', space=smem, size = 0x4, offset = 0x4, fixed_abs, tag = 'smem constant byte address 0x4 - core index']
  #allocation1 [shape = 'u32[144,128]{1,0:T(1,128)}', space=vmem, size = 0x12000, scoped, tag = 'internal scratch']
  %s0 = inlined_call_operand.vmem [shape: f32[2,8,32], index: 0, kind: input, shape index: {}]
  %s1 = inlined_call_operand.vmem [shape: bf16[2,10,32], index: 1, kind: input, shape index: {}]
  %s2 = inlined_call_operand.vmem [shape: bf16[32,96], index: 2, kind: input, shape index: {}]
  %s3 = inlined_call_operand.hbm [shape: f32[1,96], index: 3, kind: input, shape index: {}]
  %s4 = inlined_call_operand.vmem [shape: bf16[32,32], index: 4, kind: input, shape index: {}]
  %s5 = inlined_call_operand.hbm [shape: f32[1,32], index: 5, kind: input, shape index: {}]
  %s6 = inlined_call_operand.vmem [shape: bf16[32,32], index: 6, kind: input, shape index: {}]
  %s7 = inlined_call_operand.vmem [shape: f32[1,32], index: 7, kind: input, shape index: {}]
  %s8 = inlined_call_operand.vmem [shape: bf16[32,64], index: 8, kind: input, shape index: {}]
  %s9 = inlined_call_operand.vmem [shape: f32[1,64], index: 9, kind: input, shape index: {}]
  %s10 = inlined_call_operand.hbm [shape: bf16[32,32], index: 10, kind: input, shape index: {}]
  %s11 = inlined_call_operand.vmem [shape: f32[1,32], index: 11, kind: input, shape index: {}]
  %s12 = inlined_call_operand.vmem [shape: f32[1,32], index: 12, kind: input, shape index: {}]
  %s13 = inlined_call_operand.vmem [shape: f32[1,32], index: 13, kind: input, shape index: {}]
  %s14 = inlined_call_operand.vmem [shape: f32[1,32], index: 14, kind: input, shape index: {}]
  %s15 = inlined_call_operand.vmem [shape: f32[1,32], index: 15, kind: input, shape index: {}]
  %s16 = inlined_call_operand.vmem [shape: f32[1,32], index: 16, kind: input, shape index: {}]
  %s17 = inlined_call_operand.vmem [shape: f32[1,32], index: 17, kind: input, shape index: {}]
  %s18 = inlined_call_operand.vmem [shape: bf16[32,64], index: 18, kind: input, shape index: {}]
  %s19 = inlined_call_operand.vmem [shape: f32[1,64], index: 19, kind: input, shape index: {}]
  %s20 = inlined_call_operand.vmem [shape: bf16[64,32], index: 20, kind: input, shape index: {}]
  %s21 = inlined_call_operand.vmem [shape: f32[1,32], index: 21, kind: input, shape index: {}]
  %s22 = inlined_call_operand.hbm [shape: f32[2,8,32], index: 22, kind: output, shape index: {}]
  %s23 = sld [smem:[#allocation0]]
  $region133: #{tpu_custom_call.1} parent=0
    _
  %s25 = ssub.s32 1, %s23
  %s26 = scalar_select 0, %s25, %s23
  $region1: #{tpu_custom_call.1} parent=0
    #allocation2 [shape = 'u8[512]{0}', space=vmem, size = 0x400, scoped, tag = 'input window, operand 3, single buffered']
    #allocation3 [shape = 's32[2]{0}', space=sflag, size = 0x8, scoped, tag = 'scoped memory for tpu_custom_call.1']
    #allocation4 [shape = 's32[2]{0}', space=sflag, size = 0x8, scoped, tag = 'scoped memory for tpu_custom_call.1']
    #allocation5 [shape = 'u8[512]{0}', space=vmem, size = 0x400, scoped, tag = 'input window, operand 5, single buffered']
    #allocation6 [shape = 's32[1]{0}', space=sflag, size = 0x4, scoped, tag = 'scoped memory for tpu_custom_call.1']
    #allocation7 [shape = 'u8[8192]{0}', space=vmem, size = 0x2000, scoped, tag = 'input window, operand 10, single buffered']
    #allocation8 [shape = 'u8[8192]{0}', space=vmem, size = 0x2000, scoped, tag = 'output window, operand 0']
    %27 = vsyncpa [#allocation3], 0
    %28 = vsyncpa [#allocation6], 0
    %29 = vsyncpa [#allocation4], 0
    %s30 = scalar_lea.sflag [#allocation4], 1
    %31 = vsyncpa %s30, 0
    loop: start=0, step=1, limit=4
    $region2: #{tpu_custom_call.1} parent=1 // loop_pre_header
      _
    $region3: #{tpu_custom_call.1} parent=1 // loop_header
      %s33 = sphi 0, %s37
      %p34 = scmp.ge.s32.totalorder %s33, 4
      %s43 = sphi 0, %s45
      %s46 = sphi 0, %s43
      %s47 = sphi 0, %s46
      %s63 = sphi 0, %s47
      %s69 = sphi 0, %s71
      %s72 = sphi 0, %s69
      %s73 = sphi 0, %s72
      %s89 = sphi 0, %s73
      %s93 = sphi 0, %s93
      %s95 = sphi 0, %s93
      %s96 = sphi 0, %s95
      %s110 = sphi 0, %s96
      %s114 = sphi 0, %s114
      %s116 = sphi 0, %s114
      %s117 = sphi 0, %s116
      %s131 = sphi 0, %s117
      %s135 = sphi 0, %s135
      %s137 = sphi 0, %s135
      %s138 = sphi 0, %s137
      %s152 = sphi 0, %s138
      %s156 = sphi 0, %s156
      %s158 = sphi 0, %s156
      %s159 = sphi 0, %s158
      %s173 = sphi 0, %s159
      %s177 = sphi 0, %s177
      %s179 = sphi 0, %s177
      %s180 = sphi 0, %s179
      %s194 = sphi 0, %s180
      %s198 = sphi 0, %s198
      %s200 = sphi 0, %s198
      %s201 = sphi 0, %s200
      %s215 = sphi 0, %s201
      %s219 = sphi 0, %s219
      %s221 = sphi 0, %s219
      %s222 = sphi 0, %s221
      %s236 = sphi 0, %s222
      %s240 = sphi 0, %s240
      %s242 = sphi 0, %s240
      %s243 = sphi 0, %s242
      %s257 = sphi 0, %s243
      %s261 = sphi 0, %s261
      %s263 = sphi 0, %s261
      %s264 = sphi 0, %s263
      %s278 = sphi 0, %s264
      %s282 = sphi 0, %s282
      %s284 = sphi 0, %s282
      %s285 = sphi 0, %s284
      %s299 = sphi 0, %s285
      %s303 = sphi 0, %s303
      %s305 = sphi 0, %s303
      %s306 = sphi 0, %s305
      %s320 = sphi 0, %s306
      %s324 = sphi 0, %s324
      %s326 = sphi 0, %s324
      %s327 = sphi 0, %s326
      %s341 = sphi 0, %s327
      %s345 = sphi 0, %s345
      %s347 = sphi 0, %s345
      %s348 = sphi 0, %s347
      %s362 = sphi 0, %s348
      %s366 = sphi 0, %s366
      %s368 = sphi 0, %s366
      %s369 = sphi 0, %s368
      %s383 = sphi 0, %s369
      %s387 = sphi 0, %s387
      %s389 = sphi 0, %s387
      %s390 = sphi 0, %s389
      %s404 = sphi 0, %s390
      %s408 = sphi 0, %s408
      %s410 = sphi 0, %s408
      %s411 = sphi 0, %s410
      %s425 = sphi 0, %s411
      %s429 = sphi 0, %s429
      %s431 = sphi 0, %s429
      %s432 = sphi 0, %s431
      %s446 = sphi 0, %s432
      %s450 = sphi 0, %s450
      %s452 = sphi 0, %s450
      %s453 = sphi 0, %s452
      %s467 = sphi 0, %s453
      %s471 = sphi 0, %s471
      %s473 = sphi 0, %s471
      %s474 = sphi 0, %s473
      %s488 = sphi 0, %s474
      %s492 = sphi 0, %s492
      %s494 = sphi 0, %s492
      %s495 = sphi 0, %s494
      %s509 = sphi 0, %s495
      %s515 = sphi 0, %s517
      %s518 = sphi 0, %s515
      %s519 = sphi 0, %s518
      %s535 = sphi 0, %s519
    $region4: #{tpu_custom_call.1} parent=1 // loop_header_branch
      %36 = sbr.rel (%p34) target = $region8
    $region5: #{tpu_custom_call.1} parent=1 // loop_body
      %s38 = ssub.s32 %s33, 1
      %s39 = ssub.s32 %s33, 2
      %s40 = sadd.s32 %s33, 1
      %s41 = ssub.s32 %s33, %s40
      %p42 = scmp.eq.s32.totalorder %s41, 0
      %s44 = sadd.s32 %s43, 1
      %s45 = scalar_select %p42, %s43, %s44
      %p48 = pneg %p42
      %p49 = scmp.eq.s32.totalorder %s33, 1
      %p50 = por %p48, %p49
      %p51 = scmp.ne.s32.totalorder %s43, %s46
      %p52 = scmp.eq.s32.totalorder %s33, 0
      %p53 = por %p51, %p52
      %p54 = scmp.ne.s32.totalorder %s43, %s46
      %p55 = scmp.eq.s32.totalorder %s38, 1
      %p56 = por %p54, %p55
      %p57 = scmp.ne.s32.totalorder %s46, %s47
      %p58 = scmp.eq.s32.totalorder %s38, 0
      %p59 = por %p57, %p58
      %p60 = scmp.ne.s32.totalorder %s46, %s47
      %p61 = scmp.eq.s32.totalorder %s39, 1
      %p62 = por %p60, %p61
      %p64 = scmp.ne.s32.totalorder %s47, %s63
      %p65 = scmp.eq.s32.totalorder %s39, 0
      %p66 = por %p64, %p65
      %s67 = ssub.s32 %s33, %s40
      %p68 = scmp.eq.s32.totalorder %s67, 0
      %s70 = sadd.s32 %s69, 1
      %s71 = scalar_select %p68, %s69, %s70
      %p74 = pneg %p68
      %p75 = scmp.eq.s32.totalorder %s33, 1
      %p76 = por %p74, %p75
      %p77 = scmp.ne.s32.totalorder %s69, %s72
      %p78 = scmp.eq.s32.totalorder %s33, 0
      %p79 = por %p77, %p78
      %p80 = scmp.ne.s32.totalorder %s69, %s72
      %p81 = scmp.eq.s32.totalorder %s38, 1
      %p82 = por %p80, %p81
      %p83 = scmp.ne.s32.totalorder %s72, %s73
      %p84 = scmp.eq.s32.totalorder %s38, 0
      %p85 = por %p83, %p84
      %p86 = scmp.ne.s32.totalorder %s72, %s73
      %p87 = scmp.eq.s32.totalorder %s39, 1
      %p88 = por %p86, %p87
      %p90 = scmp.ne.s32.totalorder %s73, %s89
      %p91 = scmp.eq.s32.totalorder %s39, 0
      %p92 = por %p90, %p91
      %s94 = sadd.s32 %s93, 1
      %p97 = scmp.eq.s32.totalorder %s33, 1
      %p98 = scmp.ne.s32.totalorder %s93, %s95
      %p99 = scmp.eq.s32.totalorder %s33, 0
      %p100 = por %p98, %p99
      %p101 = scmp.ne.s32.totalorder %s93, %s95
      %p102 = scmp.eq.s32.totalorder %s38, 1
      %p103 = por %p101, %p102
      %p104 = scmp.ne.s32.totalorder %s95, %s96
      %p105 = scmp.eq.s32.totalorder %s38, 0
      %p106 = por %p104, %p105
      %p107 = scmp.ne.s32.totalorder %s95, %s96
      %p108 = scmp.eq.s32.totalorder %s39, 1
      %p109 = por %p107, %p108
      %p111 = scmp.ne.s32.totalorder %s96, %s110
      %p112 = scmp.eq.s32.totalorder %s39, 0
      %p113 = por %p111, %p112
      %s115 = sadd.s32 %s114, 1
      %p118 = scmp.eq.s32.totalorder %s33, 1
      %p119 = scmp.ne.s32.totalorder %s114, %s116
      %p120 = scmp.eq.s32.totalorder %s33, 0
      %p121 = por %p119, %p120
      %p122 = scmp.ne.s32.totalorder %s114, %s116
      %p123 = scmp.eq.s32.totalorder %s38, 1
      %p124 = por %p122, %p123
      %p125 = scmp.ne.s32.totalorder %s116, %s117
      %p126 = scmp.eq.s32.totalorder %s38, 0
      %p127 = por %p125, %p126
      %p128 = scmp.ne.s32.totalorder %s116, %s117
      %p129 = scmp.eq.s32.totalorder %s39, 1
      %p130 = por %p128, %p129
      %p132 = scmp.ne.s32.totalorder %s117, %s131
      %p133 = scmp.eq.s32.totalorder %s39, 0
      %p134 = por %p132, %p133
      %s136 = sadd.s32 %s135, 1
      %p139 = scmp.eq.s32.totalorder %s33, 1
      %p140 = scmp.ne.s32.totalorder %s135, %s137
      %p141 = scmp.eq.s32.totalorder %s33, 0
      %p142 = por %p140, %p141
      %p143 = scmp.ne.s32.totalorder %s135, %s137
      %p144 = scmp.eq.s32.totalorder %s38, 1
      %p145 = por %p143, %p144
      %p146 = scmp.ne.s32.totalorder %s137, %s138
      %p147 = scmp.eq.s32.totalorder %s38, 0
      %p148 = por %p146, %p147
      %p149 = scmp.ne.s32.totalorder %s137, %s138
      %p150 = scmp.eq.s32.totalorder %s39, 1
      %p151 = por %p149, %p150
      %p153 = scmp.ne.s32.totalorder %s138, %s152
      %p154 = scmp.eq.s32.totalorder %s39, 0
      %p155 = por %p153, %p154
      %s157 = sadd.s32 %s156, 1
      %p160 = scmp.eq.s32.totalorder %s33, 1
      %p161 = scmp.ne.s32.totalorder %s156, %s158
      %p162 = scmp.eq.s32.totalorder %s33, 0
      %p163 = por %p161, %p162
      %p164 = scmp.ne.s32.totalorder %s156, %s158
      %p165 = scmp.eq.s32.totalorder %s38, 1
      %p166 = por %p164, %p165
      %p167 = scmp.ne.s32.totalorder %s158, %s159
      %p168 = scmp.eq.s32.totalorder %s38, 0
      %p169 = por %p167, %p168
      %p170 = scmp.ne.s32.totalorder %s158, %s159
      %p171 = scmp.eq.s32.totalorder %s39, 1
      %p172 = por %p170, %p171
      %p174 = scmp.ne.s32.totalorder %s159, %s173
      %p175 = scmp.eq.s32.totalorder %s39, 0
      %p176 = por %p174, %p175
      %s178 = sadd.s32 %s177, 1
      %p181 = scmp.eq.s32.totalorder %s33, 1
      %p182 = scmp.ne.s32.totalorder %s177, %s179
      %p183 = scmp.eq.s32.totalorder %s33, 0
      %p184 = por %p182, %p183
      %p185 = scmp.ne.s32.totalorder %s177, %s179
      %p186 = scmp.eq.s32.totalorder %s38, 1
      %p187 = por %p185, %p186
      %p188 = scmp.ne.s32.totalorder %s179, %s180
      %p189 = scmp.eq.s32.totalorder %s38, 0
      %p190 = por %p188, %p189
      %p191 = scmp.ne.s32.totalorder %s179, %s180
      %p192 = scmp.eq.s32.totalorder %s39, 1
      %p193 = por %p191, %p192
      %p195 = scmp.ne.s32.totalorder %s180, %s194
      %p196 = scmp.eq.s32.totalorder %s39, 0
      %p197 = por %p195, %p196
      %s199 = sadd.s32 %s198, 1
      %p202 = scmp.eq.s32.totalorder %s33, 1
      %p203 = scmp.ne.s32.totalorder %s198, %s200
      %p204 = scmp.eq.s32.totalorder %s33, 0
      %p205 = por %p203, %p204
      %p206 = scmp.ne.s32.totalorder %s198, %s200
      %p207 = scmp.eq.s32.totalorder %s38, 1
      %p208 = por %p206, %p207
      %p209 = scmp.ne.s32.totalorder %s200, %s201
      %p210 = scmp.eq.s32.totalorder %s38, 0
      %p211 = por %p209, %p210
      %p212 = scmp.ne.s32.totalorder %s200, %s201
      %p213 = scmp.eq.s32.totalorder %s39, 1
      %p214 = por %p212, %p213
      %p216 = scmp.ne.s32.totalorder %s201, %s215
      %p217 = scmp.eq.s32.totalorder %s39, 0
      %p218 = por %p216, %p217
      %s220 = sadd.s32 %s219, 1
      %p223 = scmp.eq.s32.totalorder %s33, 1
      %p224 = scmp.ne.s32.totalorder %s219, %s221
      %p225 = scmp.eq.s32.totalorder %s33, 0
      %p226 = por %p224, %p225
      %p227 = scmp.ne.s32.totalorder %s219, %s221
      %p228 = scmp.eq.s32.totalorder %s38, 1
      %p229 = por %p227, %p228
      %p230 = scmp.ne.s32.totalorder %s221, %s222
      %p231 = scmp.eq.s32.totalorder %s38, 0
      %p232 = por %p230, %p231
      %p233 = scmp.ne.s32.totalorder %s221, %s222
      %p234 = scmp.eq.s32.totalorder %s39, 1
      %p235 = por %p233, %p234
      %p237 = scmp.ne.s32.totalorder %s222, %s236
      %p238 = scmp.eq.s32.totalorder %s39, 0
      %p239 = por %p237, %p238
      %s241 = sadd.s32 %s240, 1
      %p244 = scmp.eq.s32.totalorder %s33, 1
      %p245 = scmp.ne.s32.totalorder %s240, %s242
      %p246 = scmp.eq.s32.totalorder %s33, 0
      %p247 = por %p245, %p246
      %p248 = scmp.ne.s32.totalorder %s240, %s242
      %p249 = scmp.eq.s32.totalorder %s38, 1
      %p250 = por %p248, %p249
      %p251 = scmp.ne.s32.totalorder %s242, %s243
      %p252 = scmp.eq.s32.totalorder %s38, 0
      %p253 = por %p251, %p252
      %p254 = scmp.ne.s32.totalorder %s242, %s243
      %p255 = scmp.eq.s32.totalorder %s39, 1
      %p256 = por %p254, %p255
      %p258 = scmp.ne.s32.totalorder %s243, %s257
      %p259 = scmp.eq.s32.totalorder %s39, 0
      %p260 = por %p258, %p259
      %s262 = sadd.s32 %s261, 1
      %p265 = scmp.eq.s32.totalorder %s33, 1
      %p266 = scmp.ne.s32.totalorder %s261, %s263
      %p267 = scmp.eq.s32.totalorder %s33, 0
      %p268 = por %p266, %p267
      %p269 = scmp.ne.s32.totalorder %s261, %s263
      %p270 = scmp.eq.s32.totalorder %s38, 1
      %p271 = por %p269, %p270
      %p272 = scmp.ne.s32.totalorder %s263, %s264
      %p273 = scmp.eq.s32.totalorder %s38, 0
      %p274 = por %p272, %p273
      %p275 = scmp.ne.s32.totalorder %s263, %s264
      %p276 = scmp.eq.s32.totalorder %s39, 1
      %p277 = por %p275, %p276
      %p279 = scmp.ne.s32.totalorder %s264, %s278
      %p280 = scmp.eq.s32.totalorder %s39, 0
      %p281 = por %p279, %p280
      %s283 = sadd.s32 %s282, 1
      %p286 = scmp.eq.s32.totalorder %s33, 1
      %p287 = scmp.ne.s32.totalorder %s282, %s284
      %p288 = scmp.eq.s32.totalorder %s33, 0
      %p289 = por %p287, %p288
      %p290 = scmp.ne.s32.totalorder %s282, %s284
      %p291 = scmp.eq.s32.totalorder %s38, 1
      %p292 = por %p290, %p291
      %p293 = scmp.ne.s32.totalorder %s284, %s285
      %p294 = scmp.eq.s32.totalorder %s38, 0
      %p295 = por %p293, %p294
      %p296 = scmp.ne.s32.totalorder %s284, %s285
      %p297 = scmp.eq.s32.totalorder %s39, 1
      %p298 = por %p296, %p297
      %p300 = scmp.ne.s32.totalorder %s285, %s299
      %p301 = scmp.eq.s32.totalorder %s39, 0
      %p302 = por %p300, %p301
      %s304 = sadd.s32 %s303, 1
      %p307 = scmp.eq.s32.totalorder %s33, 1
      %p308 = scmp.ne.s32.totalorder %s303, %s305
      %p309 = scmp.eq.s32.totalorder %s33, 0
      %p310 = por %p308, %p309
      %p311 = scmp.ne.s32.totalorder %s303, %s305
      %p312 = scmp.eq.s32.totalorder %s38, 1
      %p313 = por %p311, %p312
      %p314 = scmp.ne.s32.totalorder %s305, %s306
      %p315 = scmp.eq.s32.totalorder %s38, 0
      %p316 = por %p314, %p315
      %p317 = scmp.ne.s32.totalorder %s305, %s306
      %p318 = scmp.eq.s32.totalorder %s39, 1
      %p319 = por %p317, %p318
      %p321 = scmp.ne.s32.totalorder %s306, %s320
      %p322 = scmp.eq.s32.totalorder %s39, 0
      %p323 = por %p321, %p322
      %s325 = sadd.s32 %s324, 1
      %p328 = scmp.eq.s32.totalorder %s33, 1
      %p329 = scmp.ne.s32.totalorder %s324, %s326
      %p330 = scmp.eq.s32.totalorder %s33, 0
      %p331 = por %p329, %p330
      %p332 = scmp.ne.s32.totalorder %s324, %s326
      %p333 = scmp.eq.s32.totalorder %s38, 1
      %p334 = por %p332, %p333
      %p335 = scmp.ne.s32.totalorder %s326, %s327
      %p336 = scmp.eq.s32.totalorder %s38, 0
      %p337 = por %p335, %p336
      %p338 = scmp.ne.s32.totalorder %s326, %s327
      %p339 = scmp.eq.s32.totalorder %s39, 1
      %p340 = por %p338, %p339
      %p342 = scmp.ne.s32.totalorder %s327, %s341
      %p343 = scmp.eq.s32.totalorder %s39, 0
      %p344 = por %p342, %p343
      %s346 = sadd.s32 %s345, 1
      %p349 = scmp.eq.s32.totalorder %s33, 1
      %p350 = scmp.ne.s32.totalorder %s345, %s347
      %p351 = scmp.eq.s32.totalorder %s33, 0
      %p352 = por %p350, %p351
      %p353 = scmp.ne.s32.totalorder %s345, %s347
      %p354 = scmp.eq.s32.totalorder %s38, 1
      %p355 = por %p353, %p354
      %p356 = scmp.ne.s32.totalorder %s347, %s348
      %p357 = scmp.eq.s32.totalorder %s38, 0
      %p358 = por %p356, %p357
      %p359 = scmp.ne.s32.totalorder %s347, %s348
      %p360 = scmp.eq.s32.totalorder %s39, 1
      %p361 = por %p359, %p360
      %p363 = scmp.ne.s32.totalorder %s348, %s362
      %p364 = scmp.eq.s32.totalorder %s39, 0
      %p365 = por %p363, %p364
      %s367 = sadd.s32 %s366, 1
      %p370 = scmp.eq.s32.totalorder %s33, 1
      %p371 = scmp.ne.s32.totalorder %s366, %s368
      %p372 = scmp.eq.s32.totalorder %s33, 0
      %p373 = por %p371, %p372
      %p374 = scmp.ne.s32.totalorder %s366, %s368
      %p375 = scmp.eq.s32.totalorder %s38, 1
      %p376 = por %p374, %p375
      %p377 = scmp.ne.s32.totalorder %s368, %s369
      %p378 = scmp.eq.s32.totalorder %s38, 0
      %p379 = por %p377, %p378
      %p380 = scmp.ne.s32.totalorder %s368, %s369
      %p381 = scmp.eq.s32.totalorder %s39, 1
      %p382 = por %p380, %p381
      %p384 = scmp.ne.s32.totalorder %s369, %s383
      %p385 = scmp.eq.s32.totalorder %s39, 0
      %p386 = por %p384, %p385
      %s388 = sadd.s32 %s387, 1
      %p391 = scmp.eq.s32.totalorder %s33, 1
      %p392 = scmp.ne.s32.totalorder %s387, %s389
      %p393 = scmp.eq.s32.totalorder %s33, 0
      %p394 = por %p392, %p393
      %p395 = scmp.ne.s32.totalorder %s387, %s389
      %p396 = scmp.eq.s32.totalorder %s38, 1
      %p397 = por %p395, %p396
      %p398 = scmp.ne.s32.totalorder %s389, %s390
      %p399 = scmp.eq.s32.totalorder %s38, 0
      %p400 = por %p398, %p399
      %p401 = scmp.ne.s32.totalorder %s389, %s390
      %p402 = scmp.eq.s32.totalorder %s39, 1
      %p403 = por %p401, %p402
      %p405 = scmp.ne.s32.totalorder %s390, %s404
      %p406 = scmp.eq.s32.totalorder %s39, 0
      %p407 = por %p405, %p406
      %s409 = sadd.s32 %s408, 1
      %p412 = scmp.eq.s32.totalorder %s33, 1
      %p413 = scmp.ne.s32.totalorder %s408, %s410
      %p414 = scmp.eq.s32.totalorder %s33, 0
      %p415 = por %p413, %p414
      %p416 = scmp.ne.s32.totalorder %s408, %s410
      %p417 = scmp.eq.s32.totalorder %s38, 1
      %p418 = por %p416, %p417
      %p419 = scmp.ne.s32.totalorder %s410, %s411
      %p420 = scmp.eq.s32.totalorder %s38, 0
      %p421 = por %p419, %p420
      %p422 = scmp.ne.s32.totalorder %s410, %s411
      %p423 = scmp.eq.s32.totalorder %s39, 1
      %p424 = por %p422, %p423
      %p426 = scmp.ne.s32.totalorder %s411, %s425
      %p427 = scmp.eq.s32.totalorder %s39, 0
      %p428 = por %p426, %p427
      %s430 = sadd.s32 %s429, 1
      %p433 = scmp.eq.s32.totalorder %s33, 1
      %p434 = scmp.ne.s32.totalorder %s429, %s431
      %p435 = scmp.eq.s32.totalorder %s33, 0
      %p436 = por %p434, %p435
      %p437 = scmp.ne.s32.totalorder %s429, %s431
      %p438 = scmp.eq.s32.totalorder %s38, 1
      %p439 = por %p437, %p438
      %p440 = scmp.ne.s32.totalorder %s431, %s432
      %p441 = scmp.eq.s32.totalorder %s38, 0
      %p442 = por %p440, %p441
      %p443 = scmp.ne.s32.totalorder %s431, %s432
      %p444 = scmp.eq.s32.totalorder %s39, 1
      %p445 = por %p443, %p444
      %p447 = scmp.ne.s32.totalorder %s432, %s446
      %p448 = scmp.eq.s32.totalorder %s39, 0
      %p449 = por %p447, %p448
      %s451 = sadd.s32 %s450, 1
      %p454 = scmp.eq.s32.totalorder %s33, 1
      %p455 = scmp.ne.s32.totalorder %s450, %s452
      %p456 = scmp.eq.s32.totalorder %s33, 0
      %p457 = por %p455, %p456
      %p458 = scmp.ne.s32.totalorder %s450, %s452
      %p459 = scmp.eq.s32.totalorder %s38, 1
      %p460 = por %p458, %p459
      %p461 = scmp.ne.s32.totalorder %s452, %s453
      %p462 = scmp.eq.s32.totalorder %s38, 0
      %p463 = por %p461, %p462
      %p464 = scmp.ne.s32.totalorder %s452, %s453
      %p465 = scmp.eq.s32.totalorder %s39, 1
      %p466 = por %p464, %p465
      %p468 = scmp.ne.s32.totalorder %s453, %s467
      %p469 = scmp.eq.s32.totalorder %s39, 0
      %p470 = por %p468, %p469
      %s472 = sadd.s32 %s471, 1
      %p475 = scmp.eq.s32.totalorder %s33, 1
      %p476 = scmp.ne.s32.totalorder %s471, %s473
      %p477 = scmp.eq.s32.totalorder %s33, 0
      %p478 = por %p476, %p477
      %p479 = scmp.ne.s32.totalorder %s471, %s473
      %p480 = scmp.eq.s32.totalorder %s38, 1
      %p481 = por %p479, %p480
      %p482 = scmp.ne.s32.totalorder %s473, %s474
      %p483 = scmp.eq.s32.totalorder %s38, 0
      %p484 = por %p482, %p483
      %p485 = scmp.ne.s32.totalorder %s473, %s474
      %p486 = scmp.eq.s32.totalorder %s39, 1
      %p487 = por %p485, %p486
      %p489 = scmp.ne.s32.totalorder %s474, %s488
      %p490 = scmp.eq.s32.totalorder %s39, 0
      %p491 = por %p489, %p490
      %s493 = sadd.s32 %s492, 1
      %p496 = scmp.eq.s32.totalorder %s33, 1
      %p497 = scmp.ne.s32.totalorder %s492, %s494
      %p498 = scmp.eq.s32.totalorder %s33, 0
      %p499 = por %p497, %p498
      %p500 = scmp.ne.s32.totalorder %s492, %s494
      %p501 = scmp.eq.s32.totalorder %s38, 1
      %p502 = por %p500, %p501
      %p503 = scmp.ne.s32.totalorder %s494, %s495
      %p504 = scmp.eq.s32.totalorder %s38, 0
      %p505 = por %p503, %p504
      %p506 = scmp.ne.s32.totalorder %s494, %s495
      %p507 = scmp.eq.s32.totalorder %s39, 1
      %p508 = por %p506, %p507
      %p510 = scmp.ne.s32.totalorder %s495, %s509
      %p511 = scmp.eq.s32.totalorder %s39, 0
      %p512 = por %p510, %p511
      %s513 = ssub.s32 %s33, %s40
      %p514 = scmp.eq.s32.totalorder %s513, 0
      %s516 = sadd.s32 %s515, 1
      %s517 = scalar_select %p514, %s515, %s516
      %p520 = pneg %p514
      %p521 = scmp.eq.s32.totalorder %s33, 1
      %p522 = por %p520, %p521
      %p523 = scmp.ne.s32.totalorder %s515, %s518
      %p524 = scmp.eq.s32.totalorder %s33, 0
      %p525 = por %p523, %p524
      %p526 = scmp.ne.s32.totalorder %s515, %s518
      %p527 = scmp.eq.s32.totalorder %s38, 1
      %p528 = por %p526, %p527
      %p529 = scmp.ne.s32.totalorder %s518, %s519
      %p530 = scmp.eq.s32.totalorder %s38, 0
      %p531 = por %p529, %p530
      %p532 = scmp.ne.s32.totalorder %s518, %s519
      %p533 = scmp.eq.s32.totalorder %s39, 1
      %p534 = por %p532, %p533
      %p536 = scmp.ne.s32.totalorder %s519, %s535
      %p537 = scmp.eq.s32.totalorder %s39, 0
      %p538 = por %p536, %p537
      %p539 = scmp.le.s32.totalorder 1, %s33
      %p540 = scmp.lt.s32.totalorder %s33, 3
      %p541 = pnand %p539, %p540
      %p542 = pneg %p541
      // Predicated region
      $region9: #{tpu_custom_call.1} parent=5 // pred_check
        _
      $region10: #{tpu_custom_call.1} parent=5 // pred_check_branch
        %544 = sbr.rel (%p541) target = $region12
      $region11: #{tpu_custom_call.1} parent=5 // pred_region
        %s545 = ssub.s32 %s33, 1
        // Predicated region
        $region13: #{tpu_custom_call.1} parent=11 // pred_check
          %p546 = pneg %p106
        $region14: #{tpu_custom_call.1} parent=11 // pred_check_branch
          %548 = sbr.rel (%p546) target = $region16
        $region15: #{tpu_custom_call.1} parent=11 // pred_region
          _
        $region16: #{tpu_custom_call.1} parent=11 // pred_fallthru
          _
        // Predicated region
        $region17: #{tpu_custom_call.1} parent=11 // pred_check
          %p549 = pneg %p127
        $region18: #{tpu_custom_call.1} parent=11 // pred_check_branch
          %551 = sbr.rel (%p549) target = $region20
        $region19: #{tpu_custom_call.1} parent=11 // pred_region
          %s553 = ssub.s32 16, 16
          %554 = vsyncadd [#allocation3], %s553
          %s556 = sshll.u32 [#allocation2], 4
          %s557 = int_to_ptr.vmem [resolvable:$true] %s556
          %559 = dma.hbm_to_vmem [thread:$0]  %s3, 16, %s557, [#allocation3]
        $region20: #{tpu_custom_call.1} parent=11 // pred_fallthru
          _
        // Predicated region
        $region21: #{tpu_custom_call.1} parent=11 // pred_check
          %p560 = pneg %p148
        $region22: #{tpu_custom_call.1} parent=11 // pred_check_branch
          %562 = sbr.rel (%p560) target = $region24
        $region23: #{tpu_custom_call.1} parent=11 // pred_region
          _
        $region24: #{tpu_custom_call.1} parent=11 // pred_fallthru
          _
        // Predicated region
        $region25: #{tpu_custom_call.1} parent=11 // pred_check
          %p563 = pneg %p169
        $region26: #{tpu_custom_call.1} parent=11 // pred_check_branch
          %565 = sbr.rel (%p563) target = $region28
        $region27: #{tpu_custom_call.1} parent=11 // pred_region
          %s567 = ssub.s32 16, 16
          %568 = vsyncadd [#allocation6], %s567
          %s570 = sshll.u32 [#allocation5], 4
          %s571 = int_to_ptr.vmem [resolvable:$true] %s570
          %573 = dma.hbm_to_vmem [thread:$0]  %s5, 16, %s571, [#allocation6]
        $region28: #{tpu_custom_call.1} parent=11 // pred_fallthru
          _
        // Predicated region
        $region29: #{tpu_custom_call.1} parent=11 // pred_check
          %p574 = pneg %p190
        $region30: #{tpu_custom_call.1} parent=11 // pred_check_branch
          %576 = sbr.rel (%p574) target = $region32
        $region31: #{tpu_custom_call.1} parent=11 // pred_region
          _
        $region32: #{tpu_custom_call.1} parent=11 // pred_fallthru
          _
        // Predicated region
        $region33: #{tpu_custom_call.1} parent=11 // pred_check
          %p577 = pneg %p211
        $region34: #{tpu_custom_call.1} parent=11 // pred_check_branch
          %579 = sbr.rel (%p577) target = $region36
        $region35: #{tpu_custom_call.1} parent=11 // pred_region
          _
        $region36: #{tpu_custom_call.1} parent=11 // pred_fallthru
          _
        // Predicated region
        $region37: #{tpu_custom_call.1} parent=11 // pred_check
          %p580 = pneg %p232
        $region38: #{tpu_custom_call.1} parent=11 // pred_check_branch
          %582 = sbr.rel (%p580) target = $region40
        $region39: #{tpu_custom_call.1} parent=11 // pred_region
          _
        $region40: #{tpu_custom_call.1} parent=11 // pred_fallthru
          _
        // Predicated region
        $region41: #{tpu_custom_call.1} parent=11 // pred_check
          %p583 = pneg %p253
        $region42: #{tpu_custom_call.1} parent=11 // pred_check_branch
          %585 = sbr.rel (%p583) target = $region44
        $region43: #{tpu_custom_call.1} parent=11 // pred_region
          _
        $region44: #{tpu_custom_call.1} parent=11 // pred_fallthru
          _
        // Predicated region
        $region45: #{tpu_custom_call.1} parent=11 // pred_check
          %p586 = pneg %p274
        $region46: #{tpu_custom_call.1} parent=11 // pred_check_branch
          %588 = sbr.rel (%p586) target = $region48
        $region47: #{tpu_custom_call.1} parent=11 // pred_region
          %s590 = ssub.s32 256, 256
          %591 = vsyncadd [#allocation6], %s590
          %s592 = sshll.u32 [#allocation7], 4
          %s593 = int_to_ptr.vmem [resolvable:$true] %s592
          %598 = dma.hbm_to_vmem [thread:$0]  %s10, 256, %s593, [#allocation6], 64, 64, 4
        $region48: #{tpu_custom_call.1} parent=11 // pred_fallthru
          _
        // Predicated region
        $region49: #{tpu_custom_call.1} parent=11 // pred_check
          %p599 = pneg %p295
        $region50: #{tpu_custom_call.1} parent=11 // pred_check_branch
          %601 = sbr.rel (%p599) target = $region52
        $region51: #{tpu_custom_call.1} parent=11 // pred_region
          _
        $region52: #{tpu_custom_call.1} parent=11 // pred_fallthru
          _
        // Predicated region
        $region53: #{tpu_custom_call.1} parent=11 // pred_check
          %p602 = pneg %p316
        $region54: #{tpu_custom_call.1} parent=11 // pred_check_branch
          %604 = sbr.rel (%p602) target = $region56
        $region55: #{tpu_custom_call.1} parent=11 // pred_region
          _
        $region56: #{tpu_custom_call.1} parent=11 // pred_fallthru
          _
        // Predicated region
        $region57: #{tpu_custom_call.1} parent=11 // pred_check
          %p605 = pneg %p337
        $region58: #{tpu_custom_call.1} parent=11 // pred_check_branch
          %607 = sbr.rel (%p605) target = $region60
        $region59: #{tpu_custom_call.1} parent=11 // pred_region
          _
        $region60: #{tpu_custom_call.1} parent=11 // pred_fallthru
          _
        // Predicated region
        $region61: #{tpu_custom_call.1} parent=11 // pred_check
          %p608 = pneg %p358
        $region62: #{tpu_custom_call.1} parent=11 // pred_check_branch
          %610 = sbr.rel (%p608) target = $region64
        $region63: #{tpu_custom_call.1} parent=11 // pred_region
          _
        $region64: #{tpu_custom_call.1} parent=11 // pred_fallthru
          _
        // Predicated region
        $region65: #{tpu_custom_call.1} parent=11 // pred_check
          %p611 = pneg %p379
        $region66: #{tpu_custom_call.1} parent=11 // pred_check_branch
          %613 = sbr.rel (%p611) target = $region68
        $region67: #{tpu_custom_call.1} parent=11 // pred_region
          _
        $region68: #{tpu_custom_call.1} parent=11 // pred_fallthru
          _
        // Predicated region
        $region69: #{tpu_custom_call.1} parent=11 // pred_check
          %p614 = pneg %p400
        $region70: #{tpu_custom_call.1} parent=11 // pred_check_branch
          %616 = sbr.rel (%p614) target = $region72
        $region71: #{tpu_custom_call.1} parent=11 // pred_region
          _
        $region72: #{tpu_custom_call.1} parent=11 // pred_fallthru
          _
        // Predicated region
        $region73: #{tpu_custom_call.1} parent=11 // pred_check
          %p617 = pneg %p421
        $region74: #{tpu_custom_call.1} parent=11 // pred_check_branch
          %619 = sbr.rel (%p617) target = $region76
        $region75: #{tpu_custom_call.1} parent=11 // pred_region
          _
        $region76: #{tpu_custom_call.1} parent=11 // pred_fallthru
          _
        // Predicated region
        $region77: #{tpu_custom_call.1} parent=11 // pred_check
          %p620 = pneg %p442
        $region78: #{tpu_custom_call.1} parent=11 // pred_check_branch
          %622 = sbr.rel (%p620) target = $region80
        $region79: #{tpu_custom_call.1} parent=11 // pred_region
          _
        $region80: #{tpu_custom_call.1} parent=11 // pred_fallthru
          _
        // Predicated region
        $region81: #{tpu_custom_call.1} parent=11 // pred_check
          %p623 = pneg %p463
        $region82: #{tpu_custom_call.1} parent=11 // pred_check_branch
          %625 = sbr.rel (%p623) target = $region84
        $region83: #{tpu_custom_call.1} parent=11 // pred_region
          _
        $region84: #{tpu_custom_call.1} parent=11 // pred_fallthru
          _
        // Predicated region
        $region85: #{tpu_custom_call.1} parent=11 // pred_check
          %p626 = pneg %p484
        $region86: #{tpu_custom_call.1} parent=11 // pred_check_branch
          %628 = sbr.rel (%p626) target = $region88
        $region87: #{tpu_custom_call.1} parent=11 // pred_region
          _
        $region88: #{tpu_custom_call.1} parent=11 // pred_fallthru
          _
        // Predicated region
        $region89: #{tpu_custom_call.1} parent=11 // pred_check
          %p629 = pneg %p505
        $region90: #{tpu_custom_call.1} parent=11 // pred_check_branch
          %631 = sbr.rel (%p629) target = $region92
        $region91: #{tpu_custom_call.1} parent=11 // pred_region
          _
        $region92: #{tpu_custom_call.1} parent=11 // pred_fallthru
          _
      $region12: #{tpu_custom_call.1} parent=5 // pred_fallthru
        _
      %p632 = scmp.lt.s32.totalorder %s33, 2
      // Predicated region
      $region93: #{tpu_custom_call.1} parent=5 // pred_check
        %p633 = pneg %p632
      $region94: #{tpu_custom_call.1} parent=5 // pred_check_branch
        %635 = sbr.rel (%p633) target = $region96
      $region95: #{tpu_custom_call.1} parent=5 // pred_region
        // Predicated region
        $region97: #{tpu_custom_call.1} parent=95 // pred_check
          %p636 = pneg %p53
        $region98: #{tpu_custom_call.1} parent=95 // pred_check_branch
          %638 = sbr.rel (%p636) target = $region100
        $region99: #{tpu_custom_call.1} parent=95 // pred_region
          %p639 = scmp.lt.s32.totalorder %s33, 1
          %s640 = scalar_select %p639, %s33, 1
          %s641 = smul.addr %s640, 8
          %s642 = scalar_lea.vmem %s0, %s641
        $region100: #{tpu_custom_call.1} parent=95 // pred_fallthru
          _
        // Predicated region
        $region101: #{tpu_custom_call.1} parent=95 // pred_check
          %p643 = pneg %p79
        $region102: #{tpu_custom_call.1} parent=95 // pred_check_branch
          %645 = sbr.rel (%p643) target = $region104
        $region103: #{tpu_custom_call.1} parent=95 // pred_region
          %p646 = scmp.lt.s32.totalorder %s33, 1
          %s647 = scalar_select %p646, %s33, 1
          %s648 = smul.addr %s647, 2
          %s649 = smul.addr %s648, 4
          %s650 = scalar_lea.vmem %s1, %s649
        $region104: #{tpu_custom_call.1} parent=95 // pred_fallthru
          _
      $region96: #{tpu_custom_call.1} parent=5 // pred_fallthru
        _
      %p651 = scmp.le.s32.totalorder 1, %s33
      %p652 = scmp.lt.s32.totalorder %s33, 3
      %p653 = pnand %p651, %p652
      %p654 = pneg %p653
      // Predicated region
      $region105: #{tpu_custom_call.1} parent=5 // pred_check
        _
      $region106: #{tpu_custom_call.1} parent=5 // pred_check_branch
        %656 = sbr.rel (%p653) target = $region108
      $region107: #{tpu_custom_call.1} parent=5 // pred_region
        %s657 = ssub.s32 %s33, 1
        // Predicated region
        $region109: #{tpu_custom_call.1} parent=107 // pred_check
          %p658 = pneg %p127
        $region110: #{tpu_custom_call.1} parent=107 // pred_check_branch
          %660 = sbr.rel (%p658) target = $region112
        $region111: #{tpu_custom_call.1} parent=107 // pred_region
          %661 = dma.done [#allocation3], 16
        $region112: #{tpu_custom_call.1} parent=107 // pred_fallthru
          _
        // Predicated region
        $region113: #{tpu_custom_call.1} parent=107 // pred_check
          %p662 = pneg %p169
        $region114: #{tpu_custom_call.1} parent=107 // pred_check_branch
          %664 = sbr.rel (%p662) target = $region116
        $region115: #{tpu_custom_call.1} parent=107 // pred_region
          %665 = dma.done [#allocation6], 16
        $region116: #{tpu_custom_call.1} parent=107 // pred_fallthru
          _
        // Predicated region
        $region117: #{tpu_custom_call.1} parent=107 // pred_check
          %p666 = pneg %p274
        $region118: #{tpu_custom_call.1} parent=107 // pred_check_branch
          %668 = sbr.rel (%p666) target = $region120
        $region119: #{tpu_custom_call.1} parent=107 // pred_region
          %669 = dma.done [#allocation6], 256
        $region120: #{tpu_custom_call.1} parent=107 // pred_fallthru
          _
        %p670 = scmp.lt.s32.totalorder %s38, 1
        %s671 = scalar_select %p670, %s38, 1
        %s672 = smul.addr %s671, 8
        %s673 = scalar_lea.vmem %s0, %s672
        %p674 = pneg %p59
        %p675 = pneg %p56
        %p676 = scmp.lt.s32.totalorder %s38, 1
        %s677 = scalar_select %p676, %s38, 1
        %s678 = smul.addr %s677, 2
        %s679 = smul.addr %s678, 4
        %s680 = scalar_lea.vmem %s1, %s679
        %p681 = pneg %p85
        %p682 = pneg %p82
        %p683 = pneg %p106
        %p684 = pneg %p103
        %p685 = pneg %p127
        %p686 = pneg %p124
        %p687 = pneg %p148
        %p688 = pneg %p145
        %p689 = pneg %p169
        %p690 = pneg %p166
        %p691 = pneg %p190
        %p692 = pneg %p187
        %p693 = pneg %p211
        %p694 = pneg %p208
        %p695 = pneg %p232
        %p696 = pneg %p229
        %p697 = pneg %p253
        %p698 = pneg %p250
        %p699 = pneg %p274
        %p700 = pneg %p271
        %p701 = pneg %p295
        %p702 = pneg %p292
        %p703 = pneg %p316
        %p704 = pneg %p313
        %p705 = pneg %p337
        %p706 = pneg %p334
        %p707 = pneg %p358
        %p708 = pneg %p355
        %p709 = pneg %p379
        %p710 = pneg %p376
        %p711 = pneg %p400
        %p712 = pneg %p397
        %p713 = pneg %p421
        %p714 = pneg %p418
        %p715 = pneg %p442
        %p716 = pneg %p439
        %p717 = pneg %p463
        %p718 = pneg %p460
        %p719 = pneg %p484
        %p720 = pneg %p481
        %p721 = pneg %p505
        %p722 = pneg %p502
        %p723 = pneg %p531
        %p724 = pneg %p528
        %s725 = sand.u32 %s518, 1
        %s726 = scalar_lea.sflag [#allocation4], %s725
        %s727 = sand.u32 %s518, 1
        %s728 = smul.addr %s727, 8
        %s729 = scalar_lea.vmem [#allocation8], %s728
        %p730 = scmp.lt.s32.totalorder %s38, 1
        %s731 = scalar_select %p730, %s38, 1
        %s732 = smul.addr %s731, 8
        %s733 = scalar_lea.vmem %s0, %s732
        %p734 = scmp.lt.s32.totalorder %s38, 1
        %s735 = scalar_select %p734, %s38, 1
        %s736 = smul.addr %s735, 2
        %s737 = smul.addr %s736, 4
        %s738 = scalar_lea.vmem %s1, %s737
        %v740 = vld [vmem:[%s733] sm:$0xff]
        %v741 = vld [vmem:[%s738] sm:$0xf]
        %v742 = vld [vmem:[%s738 + $0x4] sm:$0x1]
        %v743 = vlaneseq
        %v744 = vshrl.u32 %v743, 7
        %v745 = vlaneseq
        %v746 = vand.u32 %v745, 127
        %vm747 = vcmp.gt.s32.totalorder %v746, %v744
        %v748 = vsel %vm747, -1e+30, 0.0
        %v749 = vpack.c.bf16 %v740, %v740
        %v750 = vld [vmem:[%s2] sm:$0xf]
        %v751 = vld [vmem:[%s2 + $0x4] sm:$0xf]
        %v752 = vld [vmem:[%s2 + $0x8] sm:$0xf]
        %v753 = vld [vmem:[%s2 + $0xc] sm:$0xf]
        %v754 = vld [vmem:[#allocation2] sm:$0x1]
        %v756 = vlaneseq
        %v757 = vshrl.u32 %v756, 7
        %v758 = vsub.s32 0, %v757
        %v759 = vrot.slane %v754, %v758
        %v765 = vunpack.c.l.b16 %v750
        %v766 = vunpack.c.l.b16 %v751
        %v767 = vunpack.c.l.b16 %v752
        %v768 = vunpack.c.l.b16 %v753
        %v769 = vpack.c.b16 %v766, %v765
        %v770 = vpack.c.b16 %v768, %v767
        %vm773 = vcmask 261120
        %v775 = vsel %vm773, %v749, 0
        %777 = vmatprep.subr.bf16.mxu0 0
        %778 = vmatpush1.bf16.msra.mxu0 %v769
        %779 = vmatprep.subr.bf16.mxu0 0
        %780 = vmatpush1.bf16.msra.mxu0 %v770
        %781 = vmatprep.subr.bf16.mxu0 0
        %782 = vmatpush1.bf16.msra.mxu0 0
        %783 = vmatprep.subr.bf16.mxu0 0
        %784 = vmatpush1.bf16.msra.mxu0 0
        %785 = vmatprep.subr.bf16.mxu0 0
        %786 = vmatpush1.bf16.msra.mxu0 0
        %787 = vmatprep.subr.bf16.mxu0 0
        %788 = vmatpush1.bf16.msra.mxu0 0
        %789 = vmatprep.subr.bf16.mxu0 0
        %790 = vmatpush1.bf16.msra.mxu0 0
        %791 = vmatprep.subr.bf16.mxu0 0
        %792 = vmatpush1.bf16.msra.mxu0 0
        %793 = vmatprep.subr.bf16.mxu0 0
        %794 = vmatpush1.bf16.msra.mxu0 0
        %795 = vmatprep.subr.bf16.mxu0 0
        %796 = vmatpush1.bf16.msra.mxu0 0
        %797 = vmatprep.subr.bf16.mxu0 0
        %798 = vmatpush1.bf16.msra.mxu0 0
        %799 = vmatprep.subr.bf16.mxu0 0
        %800 = vmatpush1.bf16.msra.mxu0 0
        %801 = vmatprep.subr.bf16.mxu0 0
        %802 = vmatpush1.bf16.msra.mxu0 0
        %803 = vmatprep.subr.bf16.mxu0 0
        %804 = vmatpush1.bf16.msra.mxu0 0
        %805 = vmatprep.subr.bf16.mxu0 0
        %806 = vmatpush1.bf16.msra.mxu0 0
        %807 = vmatprep.subr.bf16.mxu0 0
        %808 = vmatpush1.bf16.msra.mxu0 0
        %809 = vmatprep.mubr.bf16.mxu0 0
        %810 = vmatmul.mubr.bf16.gmra.mrb[0].mxu0 %v775
        %v811 = vpop.f32.mrb[0].mxu0
        %v812 = vadd.f32 %v759, %v811
        %v813 = vpop.f32.mrb[0].mxu0
        %v814 = vpop.f32.mrb[0].mxu0
        %v815 = vpop.f32.mrb[0].mxu0
        %816 = vdwg.mxu0
        %817 = vxpose.xlu0.b32.start [1/16] %v812, 128
        %818 = vxpose.xlu0.b32.cont [2/16] 0.0, 128
        %819 = vxpose.xlu0.b32.cont [3/16] 0.0, 128
        %820 = vxpose.xlu0.b32.cont [4/16] 0.0, 128
        %821 = vxpose.xlu0.b32.cont [5/16] 0.0, 128
        %822 = vxpose.xlu0.b32.cont [6/16] 0.0, 128
        %823 = vxpose.xlu0.b32.cont [7/16] 0.0, 128
        %824 = vxpose.xlu0.b32.cont [8/16] 0.0, 128
        %825 = vxpose.xlu0.b32.cont [9/16] 0.0, 128
        %826 = vxpose.xlu0.b32.cont [10/16] 0.0, 128
        %827 = vxpose.xlu0.b32.cont [11/16] 0.0, 128
        %828 = vxpose.xlu0.b32.cont [12/16] 0.0, 128
        %829 = vxpose.xlu0.b32.cont [13/16] 0.0, 128
        %830 = vxpose.xlu0.b32.cont [14/16] 0.0, 128
        %831 = vxpose.xlu0.b32.cont [15/16] 0.0, 128
        %832 = vxpose.xlu0.b32.end [16/16] 0.0, 128
        %v833 = vpop.trf.xlu0
        %v834 = vpop.trf.xlu0
        %v835 = vpop.trf.xlu0
        %v836 = vpop.trf.xlu0
        %v837 = vpop.trf.xlu0
        %v838 = vpop.trf.xlu0
        %v839 = vpop.trf.xlu0
        %v840 = vpop.trf.xlu0
        %v841 = vpop.trf.xlu0
        %v842 = vpop.trf.xlu0
        %v843 = vpop.trf.xlu0
        %v844 = vpop.trf.xlu0
        %v845 = vpop.trf.xlu0
        %v846 = vpop.trf.xlu0
        %v847 = vpop.trf.xlu0
        %v848 = vpop.trf.xlu0
        %849 = vxpose.xlu0.b32.start [1/16] %v833, 128
        %850 = vxpose.xlu0.b32.cont [2/16] 0.0, 128
        %851 = vxpose.xlu0.b32.cont [3/16] 0.0, 128
        %852 = vxpose.xlu0.b32.cont [4/16] 0.0, 128
        %853 = vxpose.xlu0.b32.cont [5/16] 0.0, 128
        %854 = vxpose.xlu0.b32.cont [6/16] 0.0, 128
        %855 = vxpose.xlu0.b32.cont [7/16] 0.0, 128
        %856 = vxpose.xlu0.b32.cont [8/16] 0.0, 128
        %857 = vxpose.xlu0.b32.cont [9/16] 0.0, 128
        %858 = vxpose.xlu0.b32.cont [10/16] 0.0, 128
        %859 = vxpose.xlu0.b32.cont [11/16] 0.0, 128
        %860 = vxpose.xlu0.b32.cont [12/16] 0.0, 128
        %861 = vxpose.xlu0.b32.cont [13/16] 0.0, 128
        %862 = vxpose.xlu0.b32.cont [14/16] 0.0, 128
        %863 = vxpose.xlu0.b32.cont [15/16] 0.0, 128
        %864 = vxpose.xlu0.b32.end [16/16] 0.0, 128
        %v865 = vpop.trf.xlu0
        %v866 = vpop.trf.xlu0
        %v867 = vpop.trf.xlu0
        %v868 = vpop.trf.xlu0
        %v869 = vpop.trf.xlu0
        %v870 = vpop.trf.xlu0
        %v871 = vpop.trf.xlu0
        %v872 = vpop.trf.xlu0
        %v873 = vpop.trf.xlu0
        %v874 = vpop.trf.xlu0
        %v875 = vpop.trf.xlu0
        %v876 = vpop.trf.xlu0
        %v877 = vpop.trf.xlu0
        %v878 = vpop.trf.xlu0
        %v879 = vpop.trf.xlu0
        %v880 = vpop.trf.xlu0
        %881 = vxpose.xlu0.b32.start [1/16] %v834, 128
        %882 = vxpose.xlu0.b32.cont [2/16] 0.0, 128
        %883 = vxpose.xlu0.b32.cont [3/16] 0.0, 128
        %884 = vxpose.xlu0.b32.cont [4/16] 0.0, 128
        %885 = vxpose.xlu0.b32.cont [5/16] 0.0, 128
        %886 = vxpose.xlu0.b32.cont [6/16] 0.0, 128
        %887 = vxpose.xlu0.b32.cont [7/16] 0.0, 128
        %888 = vxpose.xlu0.b32.cont [8/16] 0.0, 128
        %889 = vxpose.xlu0.b32.cont [9/16] 0.0, 128
        %890 = vxpose.xlu0.b32.cont [10/16] 0.0, 128
        %891 = vxpose.xlu0.b32.cont [11/16] 0.0, 128
        %892 = vxpose.xlu0.b32.cont [12/16] 0.0, 128
        %893 = vxpose.xlu0.b32.cont [13/16] 0.0, 128
        %894 = vxpose.xlu0.b32.cont [14/16] 0.0, 128
        %895 = vxpose.xlu0.b32.cont [15/16] 0.0, 128
        %896 = vxpose.xlu0.b32.end [16/16] 0.0, 128
        %v897 = vpop.trf.xlu0
        %v898 = vpop.trf.xlu0
        %v899 = vpop.trf.xlu0
        %v900 = vpop.trf.xlu0
        %v901 = vpop.trf.xlu0
        %v902 = vpop.trf.xlu0
        %v903 = vpop.trf.xlu0
        %v904 = vpop.trf.xlu0
        %v905 = vpop.trf.xlu0
        %v906 = vpop.trf.xlu0
        %v907 = vpop.trf.xlu0
        %v908 = vpop.trf.xlu0
        %v909 = vpop.trf.xlu0
        %v910 = vpop.trf.xlu0
        %v911 = vpop.trf.xlu0
        %v912 = vpop.trf.xlu0
        %913 = vxpose.xlu0.b32.start [1/16] %v835, 128
        %914 = vxpose.xlu0.b32.cont [2/16] 0.0, 128
        %915 = vxpose.xlu0.b32.cont [3/16] 0.0, 128
        %916 = vxpose.xlu0.b32.cont [4/16] 0.0, 128
        %917 = vxpose.xlu0.b32.cont [5/16] 0.0, 128
        %918 = vxpose.xlu0.b32.cont [6/16] 0.0, 128
        %919 = vxpose.xlu0.b32.cont [7/16] 0.0, 128
        %920 = vxpose.xlu0.b32.cont [8/16] 0.0, 128
        %921 = vxpose.xlu0.b32.cont [9/16] 0.0, 128
        %922 = vxpose.xlu0.b32.cont [10/16] 0.0, 128
        %923 = vxpose.xlu0.b32.cont [11/16] 0.0, 128
        %924 = vxpose.xlu0.b32.cont [12/16] 0.0, 128
        %925 = vxpose.xlu0.b32.cont [13/16] 0.0, 128
        %926 = vxpose.xlu0.b32.cont [14/16] 0.0, 128
        %927 = vxpose.xlu0.b32.cont [15/16] 0.0, 128
        %928 = vxpose.xlu0.b32.end [16/16] 0.0, 128
        %v929 = vpop.trf.xlu0
        %v930 = vpop.trf.xlu0
        %v931 = vpop.trf.xlu0
        %v932 = vpop.trf.xlu0
        %v933 = vpop.trf.xlu0
        %v934 = vpop.trf.xlu0
        %v935 = vpop.trf.xlu0
        %v936 = vpop.trf.xlu0
        %v937 = vpop.trf.xlu0
        %v938 = vpop.trf.xlu0
        %v939 = vpop.trf.xlu0
        %v940 = vpop.trf.xlu0
        %v941 = vpop.trf.xlu0
        %v942 = vpop.trf.xlu0
        %v943 = vpop.trf.xlu0
        %v944 = vpop.trf.xlu0
        %945 = vxpose.xlu0.b32.start [1/16] %v836, 128
        %946 = vxpose.xlu0.b32.cont [2/16] 0.0, 128
        %947 = vxpose.xlu0.b32.cont [3/16] 0.0, 128
        %948 = vxpose.xlu0.b32.cont [4/16] 0.0, 128
        %949 = vxpose.xlu0.b32.cont [5/16] 0.0, 128
        %950 = vxpose.xlu0.b32.cont [6/16] 0.0, 128
        %951 = vxpose.xlu0.b32.cont [7/16] 0.0, 128
        %952 = vxpose.xlu0.b32.cont [8/16] 0.0, 128
        %953 = vxpose.xlu0.b32.cont [9/16] 0.0, 128
        %954 = vxpose.xlu0.b32.cont [10/16] 0.0, 128
        %955 = vxpose.xlu0.b32.cont [11/16] 0.0, 128
        %956 = vxpose.xlu0.b32.cont [12/16] 0.0, 128
        %957 = vxpose.xlu0.b32.cont [13/16] 0.0, 128
        %958 = vxpose.xlu0.b32.cont [14/16] 0.0, 128
        %959 = vxpose.xlu0.b32.cont [15/16] 0.0, 128
        %960 = vxpose.xlu0.b32.end [16/16] 0.0, 128
        %v961 = vpop.trf.xlu0
        %v962 = vpop.trf.xlu0
        %v963 = vpop.trf.xlu0
        %v964 = vpop.trf.xlu0
        %v965 = vpop.trf.xlu0
        %v966 = vpop.trf.xlu0
        %v967 = vpop.trf.xlu0
        %v968 = vpop.trf.xlu0
        %v969 = vpop.trf.xlu0
        %v970 = vpop.trf.xlu0
        %v971 = vpop.trf.xlu0
        %v972 = vpop.trf.xlu0
        %v973 = vpop.trf.xlu0
        %v974 = vpop.trf.xlu0
        %v975 = vpop.trf.xlu0
        %v976 = vpop.trf.xlu0
        %977 = vxpose.xlu0.b32.start [1/16] %v837, 128
        %978 = vxpose.xlu0.b32.cont [2/16] 0.0, 128
        %979 = vxpose.xlu0.b32.cont [3/16] 0.0, 128
        %980 = vxpose.xlu0.b32.cont [4/16] 0.0, 128
        %981 = vxpose.xlu0.b32.cont [5/16] 0.0, 128
        %982 = vxpose.xlu0.b32.cont [6/16] 0.0, 128
        %983 = vxpose.xlu0.b32.cont [7/16] 0.0, 128
        %984 = vxpose.xlu0.b32.cont [8/16] 0.0, 128
        %985 = vxpose.xlu0.b32.cont [9/16] 0.0, 128
        %986 = vxpose.xlu0.b32.cont [10/16] 0.0, 128
        %987 = vxpose.xlu0.b32.cont [11/16] 0.0, 128
        %988 = vxpose.xlu0.b32.cont [12/16] 0.0, 128
        %989 = vxpose.xlu0.b32.cont [13/16] 0.0, 128
        %990 = vxpose.xlu0.b32.cont [14/16] 0.0, 128
        %991 = vxpose.xlu0.b32.cont [15/16] 0.0, 128
        %992 = vxpose.xlu0.b32.end [16/16] 0.0, 128
        %v993 = vpop.trf.xlu0
        %v994 = vpop.trf.xlu0
        %v995 = vpop.trf.xlu0
        %v996 = vpop.trf.xlu0
        %v997 = vpop.trf.xlu0
        %v998 = vpop.trf.xlu0
        %v999 = vpop.trf.xlu0
        %v1000 = vpop.trf.xlu0
        %v1001 = vpop.trf.xlu0
        %v1002 = vpop.trf.xlu0
        %v1003 = vpop.trf.xlu0
        %v1004 = vpop.trf.xlu0
        %v1005 = vpop.trf.xlu0
        %v1006 = vpop.trf.xlu0
        %v1007 = vpop.trf.xlu0
        %v1008 = vpop.trf.xlu0
        %1009 = vxpose.xlu0.b32.start [1/16] %v838, 128
        %1010 = vxpose.xlu0.b32.cont [2/16] 0.0, 128
        %1011 = vxpose.xlu0.b32.cont [3/16] 0.0, 128
        %1012 = vxpose.xlu0.b32.cont [4/16] 0.0, 128
        %1013 = vxpose.xlu0.b32.cont [5/16] 0.0, 128
        %1014 = vxpose.xlu0.b32.cont [6/16] 0.0, 128
        %1015 = vxpose.xlu0.b32.cont [7/16] 0.0, 128
        %1016 = vxpose.xlu0.b32.cont [8/16] 0.0, 128
        %1017 = vxpose.xlu0.b32.cont [9/16] 0.0, 128
        %1018 = vxpose.xlu0.b32.cont [10/16] 0.0, 128
        %1019 = vxpose.xlu0.b32.cont [11/16] 0.0, 128
        %1020 = vxpose.xlu0.b32.cont [12/16] 0.0, 128
        %1021 = vxpose.xlu0.b32.cont [13/16] 0.0, 128
        %1022 = vxpose.xlu0.b32.cont [14/16] 0.0, 128
        %1023 = vxpose.xlu0.b32.cont [15/16] 0.0, 128
        %1024 = vxpose.xlu0.b32.end [16/16] 0.0, 128
        %v1025 = vpop.trf.xlu0
        %v1026 = vpop.trf.xlu0
        %v1027 = vpop.trf.xlu0
        %v1028 = vpop.trf.xlu0
        %v1029 = vpop.trf.xlu0
        %v1030 = vpop.trf.xlu0
        %v1031 = vpop.trf.xlu0
        %v1032 = vpop.trf.xlu0
        %v1033 = vpop.trf.xlu0
        %v1034 = vpop.trf.xlu0
        %v1035 = vpop.trf.xlu0
        %v1036 = vpop.trf.xlu0
        %v1037 = vpop.trf.xlu0
        %v1038 = vpop.trf.xlu0
        %v1039 = vpop.trf.xlu0
        %v1040 = vpop.trf.xlu0
        %1041 = vxpose.xlu0.b32.start [1/16] %v839, 128
        %1042 = vxpose.xlu0.b32.cont [2/16] 0.0, 128
        %1043 = vxpose.xlu0.b32.cont [3/16] 0.0, 128
        %1044 = vxpose.xlu0.b32.cont [4/16] 0.0, 128
        %1045 = vxpose.xlu0.b32.cont [5/16] 0.0, 128
        %1046 = vxpose.xlu0.b32.cont [6/16] 0.0, 128
        %1047 = vxpose.xlu0.b32.cont [7/16] 0.0, 128
        %1048 = vxpose.xlu0.b32.cont [8/16] 0.0, 128
        %1049 = vxpose.xlu0.b32.cont [9/16] 0.0, 128
        %1050 = vxpose.xlu0.b32.cont [10/16] 0.0, 128
        %1051 = vxpose.xlu0.b32.cont [11/16] 0.0, 128
        %1052 = vxpose.xlu0.b32.cont [12/16] 0.0, 128
        %1053 = vxpose.xlu0.b32.cont [13/16] 0.0, 128
        %1054 = vxpose.xlu0.b32.cont [14/16] 0.0, 128
        %1055 = vxpose.xlu0.b32.cont [15/16] 0.0, 128
        %1056 = vxpose.xlu0.b32.end [16/16] 0.0, 128
        %v1057 = vpop.trf.xlu0
        %v1058 = vpop.trf.xlu0
        %v1059 = vpop.trf.xlu0
        %v1060 = vpop.trf.xlu0
        %v1061 = vpop.trf.xlu0
        %v1062 = vpop.trf.xlu0
        %v1063 = vpop.trf.xlu0
        %v1064 = vpop.trf.xlu0
        %v1065 = vpop.trf.xlu0
        %v1066 = vpop.trf.xlu0
        %v1067 = vpop.trf.xlu0
        %v1068 = vpop.trf.xlu0
        %v1069 = vpop.trf.xlu0
        %v1070 = vpop.trf.xlu0
        %v1071 = vpop.trf.xlu0
        %v1072 = vpop.trf.xlu0
        %1073 = vxpose.xlu0.b32.start [1/16] %v840, 128
        %1074 = vxpose.xlu0.b32.cont [2/16] 0.0, 128
        %1075 = vxpose.xlu0.b32.cont [3/16] 0.0, 128
        %1076 = vxpose.xlu0.b32.cont [4/16] 0.0, 128
        %1077 = vxpose.xlu0.b32.cont [5/16] 0.0, 128
        %1078 = vxpose.xlu0.b32.cont [6/16] 0.0, 128
        %1079 = vxpose.xlu0.b32.cont [7/16] 0.0, 128
        %1080 = vxpose.xlu0.b32.cont [8/16] 0.0, 128
        %1081 = vxpose.xlu0.b32.cont [9/16] 0.0, 128
        %1082 = vxpose.xlu0.b32.cont [10/16] 0.0, 128
        %1083 = vxpose.xlu0.b32.cont [11/16] 0.0, 128
        %1084 = vxpose.xlu0.b32.cont [12/16] 0.0, 128
        %1085 = vxpose.xlu0.b32.cont [13/16] 0.0, 128
        %1086 = vxpose.xlu0.b32.cont [14/16] 0.0, 128
        %1087 = vxpose.xlu0.b32.cont [15/16] 0.0, 128
        %1088 = vxpose.xlu0.b32.end [16/16] 0.0, 128
        %v1089 = vpop.trf.xlu0
        %v1090 = vpop.trf.xlu0
        %v1091 = vpop.trf.xlu0
        %v1092 = vpop.trf.xlu0
        %v1093 = vpop.trf.xlu0
        %v1094 = vpop.trf.xlu0
        %v1095 = vpop.trf.xlu0
        %v1096 = vpop.trf.xlu0
        %v1097 = vpop.trf.xlu0
        %v1098 = vpop.trf.xlu0
        %v1099 = vpop.trf.xlu0
        %v1100 = vpop.trf.xlu0
        %v1101 = vpop.trf.xlu0
        %v1102 = vpop.trf.xlu0
        %v1103 = vpop.trf.xlu0
        %v1104 = vpop.trf.xlu0
        %1105 = vxpose.xlu0.b32.start [1/16] %v841, 128
        %1106 = vxpose.xlu0.b32.cont [2/16] 0.0, 128
        %1107 = vxpose.xlu0.b32.cont [3/16] 0.0, 128
        %1108 = vxpose.xlu0.b32.cont [4/16] 0.0, 128
        %1109 = vxpose.xlu0.b32.cont [5/16] 0.0, 128
        %1110 = vxpose.xlu0.b32.cont [6/16] 0.0, 128
        %1111 = vxpose.xlu0.b32.cont [7/16] 0.0, 128
        %1112 = vxpose.xlu0.b32.cont [8/16] 0.0, 128
        %1113 = vxpose.xlu0.b32.cont [9/16] 0.0, 128
        %1114 = vxpose.xlu0.b32.cont [10/16] 0.0, 128
        %1115 = vxpose.xlu0.b32.cont [11/16] 0.0, 128
        %1116 = vxpose.xlu0.b32.cont [12/16] 0.0, 128
        %1117 = vxpose.xlu0.b32.cont [13/16] 0.0, 128
        %1118 = vxpose.xlu0.b32.cont [14/16] 0.0, 128
        %1119 = vxpose.xlu0.b32.cont [15/16] 0.0, 128
        %1120 = vxpose.xlu0.b32.end [16/16] 0.0, 128
        %v1121 = vpop.trf.xlu0
        %v1122 = vpop.trf.xlu0
        %v1123 = vpop.trf.xlu0
        %v1124 = vpop.trf.xlu0
        %v1125 = vpop.trf.xlu0
        %v1126 = vpop.trf.xlu0
        %v1127 = vpop.trf.xlu0
        %v1128 = vpop.trf.xlu0
        %v1129 = vpop.trf.xlu0
        %v1130 = vpop.trf.xlu0
        %v1131 = vpop.trf.xlu0
        %v1132 = vpop.trf.xlu0
        %v1133 = vpop.trf.xlu0
        %v1134 = vpop.trf.xlu0
        %v1135 = vpop.trf.xlu0
        %v1136 = vpop.trf.xlu0
        %1137 = vxpose.xlu0.b32.start [1/16] %v842, 128
        %1138 = vxpose.xlu0.b32.cont [2/16] 0.0, 128
        %1139 = vxpose.xlu0.b32.cont [3/16] 0.0, 128
        %1140 = vxpose.xlu0.b32.cont [4/16] 0.0, 128
        %1141 = vxpose.xlu0.b32.cont [5/16] 0.0, 128
        %1142 = vxpose.xlu0.b32.cont [6/16] 0.0, 128
        %1143 = vxpose.xlu0.b32.cont [7/16] 0.0, 128
        %1144 = vxpose.xlu0.b32.cont [8/16] 0.0, 128
        %1145 = vxpose.xlu0.b32.cont [9/16] 0.0, 128
        %1146 = vxpose.xlu0.b32.cont [10/16] 0.0, 128
        %1147 = vxpose.xlu0.b32.cont [11/16] 0.0, 128
        %1148 = vxpose.xlu0.b32.cont [12/16] 0.0, 128
        %1149 = vxpose.xlu0.b32.cont [13/16] 0.0, 128
        %1150 = vxpose.xlu0.b32.cont [14/16] 0.0, 128
        %1151 = vxpose.xlu0.b32.cont [15/16] 0.0, 128
        %1152 = vxpose.xlu0.b32.end [16/16] 0.0, 128
        %v1153 = vpop.trf.xlu0
        %v1154 = vpop.trf.xlu0
        %v1155 = vpop.trf.xlu0
        %v1156 = vpop.trf.xlu0
        %v1157 = vpop.trf.xlu0
        %v1158 = vpop.trf.xlu0
        %v1159 = vpop.trf.xlu0
        %v1160 = vpop.trf.xlu0
        %v1161 = vpop.trf.xlu0
        %v1162 = vpop.trf.xlu0
        %v1163 = vpop.trf.xlu0
        %v1164 = vpop.trf.xlu0
        %v1165 = vpop.trf.xlu0
        %v1166 = vpop.trf.xlu0
        %v1167 = vpop.trf.xlu0
        %v1168 = vpop.trf.xlu0
        %1169 = vxpose.xlu0.b32.start [1/16] %v843, 128
        %1170 = vxpose.xlu0.b32.cont [2/16] 0.0, 128
        %1171 = vxpose.xlu0.b32.cont [3/16] 0.0, 128
        %1172 = vxpose.xlu0.b32.cont [4/16] 0.0, 128
        %1173 = vxpose.xlu0.b32.cont [5/16] 0.0, 128
        %1174 = vxpose.xlu0.b32.cont [6/16] 0.0, 128
        %1175 = vxpose.xlu0.b32.cont [7/16] 0.0, 128
        %1176 = vxpose.xlu0.b32.cont [8/16] 0.0, 128
        %1177 = vxpose.xlu0.b32.cont [9/16] 0.0, 128
        %1178 = vxpose.xlu0.b32.cont [10/16] 0.0, 128
        %1179 = vxpose.xlu0.b32.cont [11/16] 0.0, 128
        %1180 = vxpose.xlu0.b32.cont [12/16] 0.0, 128
        %1181 = vxpose.xlu0.b32.cont [13/16] 0.0, 128
        %1182 = vxpose.xlu0.b32.cont [14/16] 0.0, 128
        %1183 = vxpose.xlu0.b32.cont [15/16] 0.0, 128
        %1184 = vxpose.xlu0.b32.end [16/16] 0.0, 128
        %v1185 = vpop.trf.xlu0
        %v1186 = vpop.trf.xlu0
        %v1187 = vpop.trf.xlu0
        %v1188 = vpop.trf.xlu0
        %v1189 = vpop.trf.xlu0
        %v1190 = vpop.trf.xlu0
        %v1191 = vpop.trf.xlu0
        %v1192 = vpop.trf.xlu0
        %v1193 = vpop.trf.xlu0
        %v1194 = vpop.trf.xlu0
        %v1195 = vpop.trf.xlu0
        %v1196 = vpop.trf.xlu0
        %v1197 = vpop.trf.xlu0
        %v1198 = vpop.trf.xlu0
        %v1199 = vpop.trf.xlu0
        %v1200 = vpop.trf.xlu0
        %1201 = vxpose.xlu0.b32.start [1/16] %v844, 128
        %1202 = vxpose.xlu0.b32.cont [2/16] 0.0, 128
        %1203 = vxpose.xlu0.b32.cont [3/16] 0.0, 128
        %1204 = vxpose.xlu0.b32.cont [4/16] 0.0, 128
        %1205 = vxpose.xlu0.b32.cont [5/16] 0.0, 128
        %1206 = vxpose.xlu0.b32.cont [6/16] 0.0, 128
        %1207 = vxpose.xlu0.b32.cont [7/16] 0.0, 128
        %1208 = vxpose.xlu0.b32.cont [8/16] 0.0, 128
        %1209 = vxpose.xlu0.b32.cont [9/16] 0.0, 128
        %1210 = vxpose.xlu0.b32.cont [10/16] 0.0, 128
        %1211 = vxpose.xlu0.b32.cont [11/16] 0.0, 128
        %1212 = vxpose.xlu0.b32.cont [12/16] 0.0, 128
        %1213 = vxpose.xlu0.b32.cont [13/16] 0.0, 128
        %1214 = vxpose.xlu0.b32.cont [14/16] 0.0, 128
        %1215 = vxpose.xlu0.b32.cont [15/16] 0.0, 128
        %1216 = vxpose.xlu0.b32.end [16/16] 0.0, 128
        %v1217 = vpop.trf.xlu0
        %v1218 = vpop.trf.xlu0
        %v1219 = vpop.trf.xlu0
        %v1220 = vpop.trf.xlu0
        %v1221 = vpop.trf.xlu0
        %v1222 = vpop.trf.xlu0
        %v1223 = vpop.trf.xlu0
        %v1224 = vpop.trf.xlu0
        %v1225 = vpop.trf.xlu0
        %v1226 = vpop.trf.xlu0
        %v1227 = vpop.trf.xlu0
        %v1228 = vpop.trf.xlu0
        %v1229 = vpop.trf.xlu0
        %v1230 = vpop.trf.xlu0
        %v1231 = vpop.trf.xlu0
        %v1232 = vpop.trf.xlu0
        %v1233 = vpack.c.bf16 %v865, %v865
        %v1234 = vpack.c.bf16 %v897, %v897
        %v1235 = vpack.c.bf16 %v929, %v929
        %v1236 = vpack.c.bf16 %v961, %v961
        %v1237 = vpack.c.bf16 %v993, %v993
        %v1238 = vpack.c.bf16 %v1025, %v1025
        %v1239 = vpack.c.bf16 %v1057, %v1057
        %v1240 = vpack.c.bf16 %v1089, %v1089
        %vm1241 = vcmask 64512
        %v1243 = vsel %vm1241, %v1233, 0
        %v1246 = vsel %vm1241, %v1237, 0
        %1248 = vmatprep.subr.bf16.mxu0 0
        %1249 = vmatpush1.bf16.xpose.msra.mxu0 %v1246
        %1250 = vmatprep.subr.bf16.mxu0 0
        %1251 = vmatpush1.bf16.xpose.msra.mxu0 0
        %1252 = vmatprep.subr.bf16.mxu0 0
        %1253 = vmatpush1.bf16.xpose.msra.mxu0 0
        %1254 = vmatprep.subr.bf16.mxu0 0
        %1255 = vmatpush1.bf16.xpose.msra.mxu0 0
        %1256 = vmatprep.subr.bf16.mxu0 0
        %1257 = vmatpush1.bf16.xpose.msra.mxu0 0
        %1258 = vmatprep.subr.bf16.mxu0 0
        %1259 = vmatpush1.bf16.xpose.msra.mxu0 0
        %1260 = vmatprep.subr.bf16.mxu0 0
        %1261 = vmatpush1.bf16.xpose.msra.mxu0 0
        %1262 = vmatprep.subr.bf16.mxu0 0
        %1263 = vmatpush1.bf16.xpose.msra.mxu0 0
        %1264 = vmatprep.subr.bf16.mxu0 0
        %1265 = vmatpush1.bf16.xpose.msra.mxu0 0
        %1266 = vmatprep.subr.bf16.mxu0 0
        %1267 = vmatpush1.bf16.xpose.msra.mxu0 0
        %1268 = vmatprep.subr.bf16.mxu0 0
        %1269 = vmatpush1.bf16.xpose.msra.mxu0 0
        %1270 = vmatprep.subr.bf16.mxu0 0
        %1271 = vmatpush1.bf16.xpose.msra.mxu0 0
        %1272 = vmatprep.subr.bf16.mxu0 0
        %1273 = vmatpush1.bf16.xpose.msra.mxu0 0
        %1274 = vmatprep.subr.bf16.mxu0 0
        %1275 = vmatpush1.bf16.xpose.msra.mxu0 0
        %1276 = vmatprep.subr.bf16.mxu0 0
        %1277 = vmatpush1.bf16.xpose.msra.mxu0 0
        %1278 = vmatprep.subr.bf16.mxu0 0
        %1279 = vmatpush1.bf16.xpose.msra.mxu0 0
        %1280 = vmatprep.mubr.bf16.mxu0 0
        %1281 = vmatmul.mubr.bf16.gmra.mrb[0].mxu0 %v1243
        %v1282 = vpop.f32.mrb[0].mxu0
        %v1283 = vadd.f32 %v748, %v1282
        %v1284 = vpop.f32.mrb[0].mxu0
        %v1285 = vpop.f32.mrb[0].mxu0
        %v1286 = vpop.f32.mrb[0].mxu0
        %1287 = vdwg.mxu0
        %v1289 = vsel %vm1241, %v1234, 0
        %v1292 = vsel %vm1241, %v1238, 0
        %1294 = vmatprep.subr.bf16.mxu0 0
        %1295 = vmatpush1.bf16.xpose.msra.mxu0 %v1292
        %1296 = vmatprep.subr.bf16.mxu0 0
        %1297 = vmatpush1.bf16.xpose.msra.mxu0 0
        %1298 = vmatprep.subr.bf16.mxu0 0
        %1299 = vmatpush1.bf16.xpose.msra.mxu0 0
        %1300 = vmatprep.subr.bf16.mxu0 0
        %1301 = vmatpush1.bf16.xpose.msra.mxu0 0
        %1302 = vmatprep.subr.bf16.mxu0 0
        %1303 = vmatpush1.bf16.xpose.msra.mxu0 0
        %1304 = vmatprep.subr.bf16.mxu0 0
        %1305 = vmatpush1.bf16.xpose.msra.mxu0 0
        %1306 = vmatprep.subr.bf16.mxu0 0
        %1307 = vmatpush1.bf16.xpose.msra.mxu0 0
        %1308 = vmatprep.subr.bf16.mxu0 0
        %1309 = vmatpush1.bf16.xpose.msra.mxu0 0
        %1310 = vmatprep.subr.bf16.mxu0 0
        %1311 = vmatpush1.bf16.xpose.msra.mxu0 0
        %1312 = vmatprep.subr.bf16.mxu0 0
        %1313 = vmatpush1.bf16.xpose.msra.mxu0 0
        %1314 = vmatprep.subr.bf16.mxu0 0
        %1315 = vmatpush1.bf16.xpose.msra.mxu0 0
        %1316 = vmatprep.subr.bf16.mxu0 0
        %1317 = vmatpush1.bf16.xpose.msra.mxu0 0
        %1318 = vmatprep.subr.bf16.mxu0 0
        %1319 = vmatpush1.bf16.xpose.msra.mxu0 0
        %1320 = vmatprep.subr.bf16.mxu0 0
        %1321 = vmatpush1.bf16.xpose.msra.mxu0 0
        %1322 = vmatprep.subr.bf16.mxu0 0
        %1323 = vmatpush1.bf16.xpose.msra.mxu0 0
        %1324 = vmatprep.subr.bf16.mxu0 0
        %1325 = vmatpush1.bf16.xpose.msra.mxu0 0
        %1326 = vmatprep.mubr.bf16.mxu0 0
        %1327 = vmatmul.mubr.bf16.gmra.mrb[0].mxu0 %v1289
        %v1328 = vpop.f32.mrb[0].mxu0
        %v1329 = vadd.f32 %v748, %v1328
        %v1330 = vpop.f32.mrb[0].mxu0
        %v1331 = vpop.f32.mrb[0].mxu0
        %v1332 = vpop.f32.mrb[0].mxu0
        %1333 = vdwg.mxu0
        %v1335 = vsel %vm1241, %v1235, 0
        %v1338 = vsel %vm1241, %v1239, 0
        %1340 = vmatprep.subr.bf16.mxu0 0
        %1341 = vmatpush1.bf16.xpose.msra.mxu0 %v1338
        %1342 = vmatprep.subr.bf16.mxu0 0
        %1343 = vmatpush1.bf16.xpose.msra.mxu0 0
        %1344 = vmatprep.subr.bf16.mxu0 0
        %1345 = vmatpush1.bf16.xpose.msra.mxu0 0
        %1346 = vmatprep.subr.bf16.mxu0 0
        %1347 = vmatpush1.bf16.xpose.msra.mxu0 0
        %1348 = vmatprep.subr.bf16.mxu0 0
        %1349 = vmatpush1.bf16.xpose.msra.mxu0 0
        %1350 = vmatprep.subr.bf16.mxu0 0
        %1351 = vmatpush1.bf16.xpose.msra.mxu0 0
        %1352 = vmatprep.subr.bf16.mxu0 0
        %1353 = vmatpush1.bf16.xpose.msra.mxu0 0
        %1354 = vmatprep.subr.bf16.mxu0 0
        %1355 = vmatpush1.bf16.xpose.msra.mxu0 0
        %1356 = vmatprep.subr.bf16.mxu0 0
        %1357 = vmatpush1.bf16.xpose.msra.mxu0 0
        %1358 = vmatprep.subr.bf16.mxu0 0
        %1359 = vmatpush1.bf16.xpose.msra.mxu0 0
        %1360 = vmatprep.subr.bf16.mxu0 0
        %1361 = vmatpush1.bf16.xpose.msra.mxu0 0
        %1362 = vmatprep.subr.bf16.mxu0 0
        %1363 = vmatpush1.bf16.xpose.msra.mxu0 0
        %1364 = vmatprep.subr.bf16.mxu0 0
        %1365 = vmatpush1.bf16.xpose.msra.mxu0 0
        %1366 = vmatprep.subr.bf16.mxu0 0
        %1367 = vmatpush1.bf16.xpose.msra.mxu0 0
        %1368 = vmatprep.subr.bf16.mxu0 0
        %1369 = vmatpush1.bf16.xpose.msra.mxu0 0
        %1370 = vmatprep.subr.bf16.mxu0 0
        %1371 = vmatpush1.bf16.xpose.msra.mxu0 0
        %1372 = vmatprep.mubr.bf16.mxu0 0
        %1373 = vmatmul.mubr.bf16.gmra.mrb[0].mxu0 %v1335
        %v1374 = vpop.f32.mrb[0].mxu0
        %v1375 = vadd.f32 %v748, %v1374
        %v1376 = vpop.f32.mrb[0].mxu0
        %v1377 = vpop.f32.mrb[0].mxu0
        %v1378 = vpop.f32.mrb[0].mxu0
        %1379 = vdwg.mxu0
        %v1381 = vsel %vm1241, %v1236, 0
        %v1384 = vsel %vm1241, %v1240, 0
        %1386 = vmatprep.subr.bf16.mxu0 0
        %1387 = vmatpush1.bf16.xpose.msra.mxu0 %v1384
        %1388 = vmatprep.subr.bf16.mxu0 0
        %1389 = vmatpush1.bf16.xpose.msra.mxu0 0
        %1390 = vmatprep.subr.bf16.mxu0 0
        %1391 = vmatpush1.bf16.xpose.msra.mxu0 0
        %1392 = vmatprep.subr.bf16.mxu0 0
        %1393 = vmatpush1.bf16.xpose.msra.mxu0 0
        %1394 = vmatprep.subr.bf16.mxu0 0
        %1395 = vmatpush1.bf16.xpose.msra.mxu0 0
        %1396 = vmatprep.subr.bf16.mxu0 0
        %1397 = vmatpush1.bf16.xpose.msra.mxu0 0
        %1398 = vmatprep.subr.bf16.mxu0 0
        %1399 = vmatpush1.bf16.xpose.msra.mxu0 0
        %1400 = vmatprep.subr.bf16.mxu0 0
        %1401 = vmatpush1.bf16.xpose.msra.mxu0 0
        %1402 = vmatprep.subr.bf16.mxu0 0
        %1403 = vmatpush1.bf16.xpose.msra.mxu0 0
        %1404 = vmatprep.subr.bf16.mxu0 0
        %1405 = vmatpush1.bf16.xpose.msra.mxu0 0
        %1406 = vmatprep.subr.bf16.mxu0 0
        %1407 = vmatpush1.bf16.xpose.msra.mxu0 0
        %1408 = vmatprep.subr.bf16.mxu0 0
        %1409 = vmatpush1.bf16.xpose.msra.mxu0 0
        %1410 = vmatprep.subr.bf16.mxu0 0
        %1411 = vmatpush1.bf16.xpose.msra.mxu0 0
        %1412 = vmatprep.subr.bf16.mxu0 0
        %1413 = vmatpush1.bf16.xpose.msra.mxu0 0
        %1414 = vmatprep.subr.bf16.mxu0 0
        %1415 = vmatpush1.bf16.xpose.msra.mxu0 0
        %1416 = vmatprep.subr.bf16.mxu0 0
        %1417 = vmatpush1.bf16.xpose.msra.mxu0 0
        %1418 = vmatprep.mubr.bf16.mxu0 0
        %1419 = vmatmul.mubr.bf16.gmra.mrb[0].mxu0 %v1381
        %v1420 = vpop.f32.mrb[0].mxu0
        %v1421 = vadd.f32 %v748, %v1420
        %v1422 = vpop.f32.mrb[0].mxu0
        %v1423 = vpop.f32.mrb[0].mxu0
        %v1424 = vpop.f32.mrb[0].mxu0
        %1425 = vdwg.mxu0
        %v1426 = vsel %vm1241, %v1283, -inf
        %1427 = vmax.xlane.f32.xlu0 %v1426
        %v1428 = vpop.xlane.xlu0 %1427
        %v1429 = vsel %vm1241, %v1329, -inf
        %1430 = vmax.xlane.f32.xlu0 %v1429
        %v1431 = vpop.xlane.xlu0 %1430
        %v1432 = vsel %vm1241, %v1375, -inf
        %1433 = vmax.xlane.f32.xlu0 %v1432
        %v1434 = vpop.xlane.xlu0 %1433
        %v1435 = vsel %vm1241, %v1421, -inf
        %1436 = vmax.xlane.f32.xlu0 %v1435
        %v1437 = vpop.xlane.xlu0 %1436
        %v1438 = vsub.f32 %v1283, %v1428
        %v1439 = vsub.f32 %v1329, %v1431
        %v1440 = vsub.f32 %v1375, %v1434
        %v1441 = vsub.f32 %v1421, %v1437
        %v1442 = vmul.f32 %v1438, 1.442695
        %v1443 = vpow.pop %v1442
        %v1444 = vmul.f32 %v1439, 1.442695
        %v1445 = vpow.pop %v1444
        %v1446 = vmul.f32 %v1440, 1.442695
        %v1447 = vpow.pop %v1446
        %v1448 = vmul.f32 %v1441, 1.442695
        %v1449 = vpow.pop %v1448
        %v1450 = vsel %vm1241, %v1443, 0.0
        %1451 = vadd.xlane.f32.xlu0 %v1450
        %v1452 = vpop.xlane.xlu0 %1451
        %v1453 = vsel %vm1241, %v1445, 0.0
        %1454 = vadd.xlane.f32.xlu0 %v1453
        %v1455 = vpop.xlane.xlu0 %1454
        %v1456 = vsel %vm1241, %v1447, 0.0
        %1457 = vadd.xlane.f32.xlu0 %v1456
        %v1458 = vpop.xlane.xlu0 %1457
        %v1459 = vsel %vm1241, %v1449, 0.0
        %1460 = vadd.xlane.f32.xlu0 %v1459
        %v1461 = vpop.xlane.xlu0 %1460
        %v1462 = vrcp.pop %v1452
        %v1463 = vrcp.pop %v1455
        %v1464 = vrcp.pop %v1458
        %v1465 = vrcp.pop %v1461
        %v1466 = vmul.f32 %v1443, %v1462
        %v1467 = vmul.f32 %v1445, %v1463
        %v1468 = vmul.f32 %v1447, %v1464
        %v1469 = vmul.f32 %v1449, %v1465
        %v1470 = vpack.c.bf16 %v1466, %v1466
        %v1471 = vpack.c.bf16 %v1467, %v1467
        %v1472 = vpack.c.bf16 %v1468, %v1468
        %v1473 = vpack.c.bf16 %v1469, %v1469
        %v1474 = vpack.c.bf16 %v1121, %v1121
        %v1475 = vpack.c.bf16 %v1153, %v1153
        %v1476 = vpack.c.bf16 %v1185, %v1185
        %v1477 = vpack.c.bf16 %v1217, %v1217
        %v1479 = vsel %vm1241, %v1470, 0
        %vm1481 = vcmask 1043456
        %v1483 = vsel %vm1481, %v1474, 0
        %1485 = vmatprep.subr.bf16.mxu0 0
        %1486 = vmatpush1.bf16.msra.mxu0 %v1483
        %1487 = vmatprep.subr.bf16.mxu0 0
        %1488 = vmatpush1.bf16.msra.mxu0 0
        %1489 = vmatprep.subr.bf16.mxu0 0
        %1490 = vmatpush1.bf16.msra.mxu0 0
        %1491 = vmatprep.subr.bf16.mxu0 0
        %1492 = vmatpush1.bf16.msra.mxu0 0
        %1493 = vmatprep.subr.bf16.mxu0 0
        %1494 = vmatpush1.bf16.msra.mxu0 0
        %1495 = vmatprep.subr.bf16.mxu0 0
        %1496 = vmatpush1.bf16.msra.mxu0 0
        %1497 = vmatprep.subr.bf16.mxu0 0
        %1498 = vmatpush1.bf16.msra.mxu0 0
        %1499 = vmatprep.subr.bf16.mxu0 0
        %1500 = vmatpush1.bf16.msra.mxu0 0
        %1501 = vmatprep.subr.bf16.mxu0 0
        %1502 = vmatpush1.bf16.msra.mxu0 0
        %1503 = vmatprep.subr.bf16.mxu0 0
        %1504 = vmatpush1.bf16.msra.mxu0 0
        %1505 = vmatprep.subr.bf16.mxu0 0
        %1506 = vmatpush1.bf16.msra.mxu0 0
        %1507 = vmatprep.subr.bf16.mxu0 0
        %1508 = vmatpush1.bf16.msra.mxu0 0
        %1509 = vmatprep.subr.bf16.mxu0 0
        %1510 = vmatpush1.bf16.msra.mxu0 0
        %1511 = vmatprep.subr.bf16.mxu0 0
        %1512 = vmatpush1.bf16.msra.mxu0 0
        %1513 = vmatprep.subr.bf16.mxu0 0
        %1514 = vmatpush1.bf16.msra.mxu0 0
        %1515 = vmatprep.subr.bf16.mxu0 0
        %1516 = vmatpush1.bf16.msra.mxu0 0
        %1517 = vmatprep.mubr.bf16.mxu0 0
        %1518 = vmatmul.mubr.bf16.gmra.mrb[0].mxu0 %v1479
        %v1519 = vpop.f32.mrb[0].mxu0
        %v1520 = vadd.f32 0.0, %v1519
        %v1521 = vpop.f32.mrb[0].mxu0
        %v1522 = vpop.f32.mrb[0].mxu0
        %v1523 = vpop.f32.mrb[0].mxu0
        %1524 = vdwg.mxu0
        %v1526 = vsel %vm1241, %v1471, 0
        %v1529 = vsel %vm1481, %v1475, 0
        %1531 = vmatprep.subr.bf16.mxu0 0
        %1532 = vmatpush1.bf16.msra.mxu0 %v1529
        %1533 = vmatprep.subr.bf16.mxu0 0
        %1534 = vmatpush1.bf16.msra.mxu0 0
        %1535 = vmatprep.subr.bf16.mxu0 0
        %1536 = vmatpush1.bf16.msra.mxu0 0
        %1537 = vmatprep.subr.bf16.mxu0 0
        %1538 = vmatpush1.bf16.msra.mxu0 0
        %1539 = vmatprep.subr.bf16.mxu0 0
        %1540 = vmatpush1.bf16.msra.mxu0 0
        %1541 = vmatprep.subr.bf16.mxu0 0
        %1542 = vmatpush1.bf16.msra.mxu0 0
        %1543 = vmatprep.subr.bf16.mxu0 0
        %1544 = vmatpush1.bf16.msra.mxu0 0
        %1545 = vmatprep.subr.bf16.mxu0 0
        %1546 = vmatpush1.bf16.msra.mxu0 0
        %1547 = vmatprep.subr.bf16.mxu0 0
        %1548 = vmatpush1.bf16.msra.mxu0 0
        %1549 = vmatprep.subr.bf16.mxu0 0
        %1550 = vmatpush1.bf16.msra.mxu0 0
        %1551 = vmatprep.subr.bf16.mxu0 0
        %1552 = vmatpush1.bf16.msra.mxu0 0
        %1553 = vmatprep.subr.bf16.mxu0 0
        %1554 = vmatpush1.bf16.msra.mxu0 0
        %1555 = vmatprep.subr.bf16.mxu0 0
        %1556 = vmatpush1.bf16.msra.mxu0 0
        %1557 = vmatprep.subr.bf16.mxu0 0
        %1558 = vmatpush1.bf16.msra.mxu0 0
        %1559 = vmatprep.subr.bf16.mxu0 0
        %1560 = vmatpush1.bf16.msra.mxu0 0
        %1561 = vmatprep.subr.bf16.mxu0 0
        %1562 = vmatpush1.bf16.msra.mxu0 0
        %1563 = vmatprep.mubr.bf16.mxu0 0
        %1564 = vmatmul.mubr.bf16.gmra.mrb[0].mxu0 %v1526
        %v1565 = vpop.f32.mrb[0].mxu0
        %v1566 = vadd.f32 0.0, %v1565
        %v1567 = vpop.f32.mrb[0].mxu0
        %v1568 = vpop.f32.mrb[0].mxu0
        %v1569 = vpop.f32.mrb[0].mxu0
        %1570 = vdwg.mxu0
        %v1572 = vsel %vm1241, %v1472, 0
        %v1575 = vsel %vm1481, %v1476, 0
        %1577 = vmatprep.subr.bf16.mxu0 0
        %1578 = vmatpush1.bf16.msra.mxu0 %v1575
        %1579 = vmatprep.subr.bf16.mxu0 0
        %1580 = vmatpush1.bf16.msra.mxu0 0
        %1581 = vmatprep.subr.bf16.mxu0 0
        %1582 = vmatpush1.bf16.msra.mxu0 0
        %1583 = vmatprep.subr.bf16.mxu0 0
        %1584 = vmatpush1.bf16.msra.mxu0 0
        %1585 = vmatprep.subr.bf16.mxu0 0
        %1586 = vmatpush1.bf16.msra.mxu0 0
        %1587 = vmatprep.subr.bf16.mxu0 0
        %1588 = vmatpush1.bf16.msra.mxu0 0
        %1589 = vmatprep.subr.bf16.mxu0 0
        %1590 = vmatpush1.bf16.msra.mxu0 0
        %1591 = vmatprep.subr.bf16.mxu0 0
        %1592 = vmatpush1.bf16.msra.mxu0 0
        %1593 = vmatprep.subr.bf16.mxu0 0
        %1594 = vmatpush1.bf16.msra.mxu0 0
        %1595 = vmatprep.subr.bf16.mxu0 0
        %1596 = vmatpush1.bf16.msra.mxu0 0
        %1597 = vmatprep.subr.bf16.mxu0 0
        %1598 = vmatpush1.bf16.msra.mxu0 0
        %1599 = vmatprep.subr.bf16.mxu0 0
        %1600 = vmatpush1.bf16.msra.mxu0 0
        %1601 = vmatprep.subr.bf16.mxu0 0
        %1602 = vmatpush1.bf16.msra.mxu0 0
        %1603 = vmatprep.subr.bf16.mxu0 0
        %1604 = vmatpush1.bf16.msra.mxu0 0
        %1605 = vmatprep.subr.bf16.mxu0 0
        %1606 = vmatpush1.bf16.msra.mxu0 0
        %1607 = vmatprep.subr.bf16.mxu0 0
        %1608 = vmatpush1.bf16.msra.mxu0 0
        %1609 = vmatprep.mubr.bf16.mxu0 0
        %1610 = vmatmul.mubr.bf16.gmra.mrb[0].mxu0 %v1572
        %v1611 = vpop.f32.mrb[0].mxu0
        %v1612 = vadd.f32 0.0, %v1611
        %v1613 = vpop.f32.mrb[0].mxu0
        %v1614 = vpop.f32.mrb[0].mxu0
        %v1615 = vpop.f32.mrb[0].mxu0
        %1616 = vdwg.mxu0
        %v1618 = vsel %vm1241, %v1473, 0
        %v1621 = vsel %vm1481, %v1477, 0
        %1623 = vmatprep.subr.bf16.mxu0 0
        %1624 = vmatpush1.bf16.msra.mxu0 %v1621
        %1625 = vmatprep.subr.bf16.mxu0 0
        %1626 = vmatpush1.bf16.msra.mxu0 0
        %1627 = vmatprep.subr.bf16.mxu0 0
        %1628 = vmatpush1.bf16.msra.mxu0 0
        %1629 = vmatprep.subr.bf16.mxu0 0
        %1630 = vmatpush1.bf16.msra.mxu0 0
        %1631 = vmatprep.subr.bf16.mxu0 0
        %1632 = vmatpush1.bf16.msra.mxu0 0
        %1633 = vmatprep.subr.bf16.mxu0 0
        %1634 = vmatpush1.bf16.msra.mxu0 0
        %1635 = vmatprep.subr.bf16.mxu0 0
        %1636 = vmatpush1.bf16.msra.mxu0 0
        %1637 = vmatprep.subr.bf16.mxu0 0
        %1638 = vmatpush1.bf16.msra.mxu0 0
        %1639 = vmatprep.subr.bf16.mxu0 0
        %1640 = vmatpush1.bf16.msra.mxu0 0
        %1641 = vmatprep.subr.bf16.mxu0 0
        %1642 = vmatpush1.bf16.msra.mxu0 0
        %1643 = vmatprep.subr.bf16.mxu0 0
        %1644 = vmatpush1.bf16.msra.mxu0 0
        %1645 = vmatprep.subr.bf16.mxu0 0
        %1646 = vmatpush1.bf16.msra.mxu0 0
        %1647 = vmatprep.subr.bf16.mxu0 0
        %1648 = vmatpush1.bf16.msra.mxu0 0
        %1649 = vmatprep.subr.bf16.mxu0 0
        %1650 = vmatpush1.bf16.msra.mxu0 0
        %1651 = vmatprep.subr.bf16.mxu0 0
        %1652 = vmatpush1.bf16.msra.mxu0 0
        %1653 = vmatprep.subr.bf16.mxu0 0
        %1654 = vmatpush1.bf16.msra.mxu0 0
        %1655 = vmatprep.mubr.bf16.mxu0 0
        %1656 = vmatmul.mubr.bf16.gmra.mrb[0].mxu0 %v1618
        %v1657 = vpop.f32.mrb[0].mxu0
        %v1658 = vadd.f32 0.0, %v1657
        %v1659 = vpop.f32.mrb[0].mxu0
        %v1660 = vpop.f32.mrb[0].mxu0
        %v1661 = vpop.f32.mrb[0].mxu0
        %1662 = vdwg.mxu0
        %1663 = vxpose.xlu0.b32.start [1/16] %v1520, 128
        %1664 = vxpose.xlu0.b32.cont [2/16] 0.0, 128
        %1665 = vxpose.xlu0.b32.cont [3/16] 0.0, 128
        %1666 = vxpose.xlu0.b32.cont [4/16] 0.0, 128
        %1667 = vxpose.xlu0.b32.cont [5/16] 0.0, 128
        %1668 = vxpose.xlu0.b32.cont [6/16] 0.0, 128
        %1669 = vxpose.xlu0.b32.cont [7/16] 0.0, 128
        %1670 = vxpose.xlu0.b32.cont [8/16] 0.0, 128
        %1671 = vxpose.xlu0.b32.cont [9/16] 0.0, 128
        %1672 = vxpose.xlu0.b32.cont [10/16] 0.0, 128
        %1673 = vxpose.xlu0.b32.cont [11/16] 0.0, 128
        %1674 = vxpose.xlu0.b32.cont [12/16] 0.0, 128
        %1675 = vxpose.xlu0.b32.cont [13/16] 0.0, 128
        %1676 = vxpose.xlu0.b32.cont [14/16] 0.0, 128
        %1677 = vxpose.xlu0.b32.cont [15/16] 0.0, 128
        %1678 = vxpose.xlu0.b32.end [16/16] 0.0, 128
        %v1679 = vpop.trf.xlu0
        %v1680 = vpop.trf.xlu0
        %v1681 = vpop.trf.xlu0
        %v1682 = vpop.trf.xlu0
        %v1683 = vpop.trf.xlu0
        %v1684 = vpop.trf.xlu0
        %v1685 = vpop.trf.xlu0
        %v1686 = vpop.trf.xlu0
        %v1687 = vpop.trf.xlu0
        %v1688 = vpop.trf.xlu0
        %v1689 = vpop.trf.xlu0
        %v1690 = vpop.trf.xlu0
        %v1691 = vpop.trf.xlu0
        %v1692 = vpop.trf.xlu0
        %v1693 = vpop.trf.xlu0
        %v1694 = vpop.trf.xlu0
        %1695 = vxpose.xlu0.b32.start [1/16] %v1566, 128
        %1696 = vxpose.xlu0.b32.cont [2/16] 0.0, 128
        %1697 = vxpose.xlu0.b32.cont [3/16] 0.0, 128
        %1698 = vxpose.xlu0.b32.cont [4/16] 0.0, 128
        %1699 = vxpose.xlu0.b32.cont [5/16] 0.0, 128
        %1700 = vxpose.xlu0.b32.cont [6/16] 0.0, 128
        %1701 = vxpose.xlu0.b32.cont [7/16] 0.0, 128
        %1702 = vxpose.xlu0.b32.cont [8/16] 0.0, 128
        %1703 = vxpose.xlu0.b32.cont [9/16] 0.0, 128
        %1704 = vxpose.xlu0.b32.cont [10/16] 0.0, 128
        %1705 = vxpose.xlu0.b32.cont [11/16] 0.0, 128
        %1706 = vxpose.xlu0.b32.cont [12/16] 0.0, 128
        %1707 = vxpose.xlu0.b32.cont [13/16] 0.0, 128
        %1708 = vxpose.xlu0.b32.cont [14/16] 0.0, 128
        %1709 = vxpose.xlu0.b32.cont [15/16] 0.0, 128
        %1710 = vxpose.xlu0.b32.end [16/16] 0.0, 128
        %v1711 = vpop.trf.xlu0
        %v1712 = vpop.trf.xlu0
        %v1713 = vpop.trf.xlu0
        %v1714 = vpop.trf.xlu0
        %v1715 = vpop.trf.xlu0
        %v1716 = vpop.trf.xlu0
        %v1717 = vpop.trf.xlu0
        %v1718 = vpop.trf.xlu0
        %v1719 = vpop.trf.xlu0
        %v1720 = vpop.trf.xlu0
        %v1721 = vpop.trf.xlu0
        %v1722 = vpop.trf.xlu0
        %v1723 = vpop.trf.xlu0
        %v1724 = vpop.trf.xlu0
        %v1725 = vpop.trf.xlu0
        %v1726 = vpop.trf.xlu0
        %1727 = vxpose.xlu0.b32.start [1/16] %v1612, 128
        %1728 = vxpose.xlu0.b32.cont [2/16] 0.0, 128
        %1729 = vxpose.xlu0.b32.cont [3/16] 0.0, 128
        %1730 = vxpose.xlu0.b32.cont [4/16] 0.0, 128
        %1731 = vxpose.xlu0.b32.cont [5/16] 0.0, 128
        %1732 = vxpose.xlu0.b32.cont [6/16] 0.0, 128
        %1733 = vxpose.xlu0.b32.cont [7/16] 0.0, 128
        %1734 = vxpose.xlu0.b32.cont [8/16] 0.0, 128
        %1735 = vxpose.xlu0.b32.cont [9/16] 0.0, 128
        %1736 = vxpose.xlu0.b32.cont [10/16] 0.0, 128
        %1737 = vxpose.xlu0.b32.cont [11/16] 0.0, 128
        %1738 = vxpose.xlu0.b32.cont [12/16] 0.0, 128
        %1739 = vxpose.xlu0.b32.cont [13/16] 0.0, 128
        %1740 = vxpose.xlu0.b32.cont [14/16] 0.0, 128
        %1741 = vxpose.xlu0.b32.cont [15/16] 0.0, 128
        %1742 = vxpose.xlu0.b32.end [16/16] 0.0, 128
        %v1743 = vpop.trf.xlu0
        %v1744 = vpop.trf.xlu0
        %v1745 = vpop.trf.xlu0
        %v1746 = vpop.trf.xlu0
        %v1747 = vpop.trf.xlu0
        %v1748 = vpop.trf.xlu0
        %v1749 = vpop.trf.xlu0
        %v1750 = vpop.trf.xlu0
        %v1751 = vpop.trf.xlu0
        %v1752 = vpop.trf.xlu0
        %v1753 = vpop.trf.xlu0
        %v1754 = vpop.trf.xlu0
        %v1755 = vpop.trf.xlu0
        %v1756 = vpop.trf.xlu0
        %v1757 = vpop.trf.xlu0
        %v1758 = vpop.trf.xlu0
        %1759 = vxpose.xlu0.b32.start [1/16] %v1658, 128
        %1760 = vxpose.xlu0.b32.cont [2/16] 0.0, 128
        %1761 = vxpose.xlu0.b32.cont [3/16] 0.0, 128
        %1762 = vxpose.xlu0.b32.cont [4/16] 0.0, 128
        %1763 = vxpose.xlu0.b32.cont [5/16] 0.0, 128
        %1764 = vxpose.xlu0.b32.cont [6/16] 0.0, 128
        %1765 = vxpose.xlu0.b32.cont [7/16] 0.0, 128
        %1766 = vxpose.xlu0.b32.cont [8/16] 0.0, 128
        %1767 = vxpose.xlu0.b32.cont [9/16] 0.0, 128
        %1768 = vxpose.xlu0.b32.cont [10/16] 0.0, 128
        %1769 = vxpose.xlu0.b32.cont [11/16] 0.0, 128
        %1770 = vxpose.xlu0.b32.cont [12/16] 0.0, 128
        %1771 = vxpose.xlu0.b32.cont [13/16] 0.0, 128
        %1772 = vxpose.xlu0.b32.cont [14/16] 0.0, 128
        %1773 = vxpose.xlu0.b32.cont [15/16] 0.0, 128
        %1774 = vxpose.xlu0.b32.end [16/16] 0.0, 128
        %v1775 = vpop.trf.xlu0
        %v1776 = vpop.trf.xlu0
        %v1777 = vpop.trf.xlu0
        %v1778 = vpop.trf.xlu0
        %v1779 = vpop.trf.xlu0
        %v1780 = vpop.trf.xlu0
        %v1781 = vpop.trf.xlu0
        %v1782 = vpop.trf.xlu0
        %v1783 = vpop.trf.xlu0
        %v1784 = vpop.trf.xlu0
        %v1785 = vpop.trf.xlu0
        %v1786 = vpop.trf.xlu0
        %v1787 = vpop.trf.xlu0
        %v1788 = vpop.trf.xlu0
        %v1789 = vpop.trf.xlu0
        %v1790 = vpop.trf.xlu0
        %1791 = vxpose.xlu0.b32.start [1/16] %v1679, 128
        %1792 = vxpose.xlu0.b32.cont [2/16] %v1711, 128
        %1793 = vxpose.xlu0.b32.cont [3/16] %v1743, 128
        %1794 = vxpose.xlu0.b32.cont [4/16] %v1775, 128
        %1795 = vxpose.xlu0.b32.cont [5/16] 0.0, 128
        %1796 = vxpose.xlu0.b32.cont [6/16] 0.0, 128
        %1797 = vxpose.xlu0.b32.cont [7/16] 0.0, 128
        %1798 = vxpose.xlu0.b32.cont [8/16] 0.0, 128
        %1799 = vxpose.xlu0.b32.cont [9/16] 0.0, 128
        %1800 = vxpose.xlu0.b32.cont [10/16] 0.0, 128
        %1801 = vxpose.xlu0.b32.cont [11/16] 0.0, 128
        %1802 = vxpose.xlu0.b32.cont [12/16] 0.0, 128
        %1803 = vxpose.xlu0.b32.cont [13/16] 0.0, 128
        %1804 = vxpose.xlu0.b32.cont [14/16] 0.0, 128
        %1805 = vxpose.xlu0.b32.cont [15/16] 0.0, 128
        %1806 = vxpose.xlu0.b32.end [16/16] 0.0, 128
        %v1807 = vpop.trf.xlu0
        %v1808 = vpop.trf.xlu0
        %v1809 = vpop.trf.xlu0
        %v1810 = vpop.trf.xlu0
        %v1811 = vpop.trf.xlu0
        %v1812 = vpop.trf.xlu0
        %v1813 = vpop.trf.xlu0
        %v1814 = vpop.trf.xlu0
        %v1815 = vpop.trf.xlu0
        %v1816 = vpop.trf.xlu0
        %v1817 = vpop.trf.xlu0
        %v1818 = vpop.trf.xlu0
        %v1819 = vpop.trf.xlu0
        %v1820 = vpop.trf.xlu0
        %v1821 = vpop.trf.xlu0
        %v1822 = vpop.trf.xlu0
        %v1823 = vpack.c.bf16 %v1807, %v1807
        %v1824 = vld [vmem:[%s4] sm:$0xf]
        %v1825 = vld [vmem:[%s4 + $0x4] sm:$0xf]
        %v1826 = vld [vmem:[%s4 + $0x8] sm:$0xf]
        %v1827 = vld [vmem:[%s4 + $0xc] sm:$0xf]
        %v1828 = vld [vmem:[#allocation5] sm:$0x1]
        %v1830 = vlaneseq
        %v1831 = vshrl.u32 %v1830, 7
        %v1832 = vsub.s32 0, %v1831
        %v1833 = vrot.slane %v1828, %v1832
        %v1839 = vunpack.c.l.b16 %v1824
        %v1840 = vunpack.c.l.b16 %v1825
        %v1841 = vunpack.c.l.b16 %v1826
        %v1842 = vunpack.c.l.b16 %v1827
        %v1843 = vpack.c.b16 %v1840, %v1839
        %v1844 = vpack.c.b16 %v1842, %v1841
        %v1848 = vsel %vm773, %v1823, 0
        %1850 = vmatprep.subr.bf16.mxu0 0
        %1851 = vmatpush1.bf16.msra.mxu0 %v1843
        %1852 = vmatprep.subr.bf16.mxu0 0
        %1853 = vmatpush1.bf16.msra.mxu0 %v1844
        %1854 = vmatprep.subr.bf16.mxu0 0
        %1855 = vmatpush1.bf16.msra.mxu0 0
        %1856 = vmatprep.subr.bf16.mxu0 0
        %1857 = vmatpush1.bf16.msra.mxu0 0
        %1858 = vmatprep.subr.bf16.mxu0 0
        %1859 = vmatpush1.bf16.msra.mxu0 0
        %1860 = vmatprep.subr.bf16.mxu0 0
        %1861 = vmatpush1.bf16.msra.mxu0 0
        %1862 = vmatprep.subr.bf16.mxu0 0
        %1863 = vmatpush1.bf16.msra.mxu0 0
        %1864 = vmatprep.subr.bf16.mxu0 0
        %1865 = vmatpush1.bf16.msra.mxu0 0
        %1866 = vmatprep.subr.bf16.mxu0 0
        %1867 = vmatpush1.bf16.msra.mxu0 0
        %1868 = vmatprep.subr.bf16.mxu0 0
        %1869 = vmatpush1.bf16.msra.mxu0 0
        %1870 = vmatprep.subr.bf16.mxu0 0
        %1871 = vmatpush1.bf16.msra.mxu0 0
        %1872 = vmatprep.subr.bf16.mxu0 0
        %1873 = vmatpush1.bf16.msra.mxu0 0
        %1874 = vmatprep.subr.bf16.mxu0 0
        %1875 = vmatpush1.bf16.msra.mxu0 0
        %1876 = vmatprep.subr.bf16.mxu0 0
        %1877 = vmatpush1.bf16.msra.mxu0 0
        %1878 = vmatprep.subr.bf16.mxu0 0
        %1879 = vmatpush1.bf16.msra.mxu0 0
        %1880 = vmatprep.subr.bf16.mxu0 0
        %1881 = vmatpush1.bf16.msra.mxu0 0
        %1882 = vmatprep.mubr.bf16.mxu0 0
        %1883 = vmatmul.mubr.bf16.gmra.mrb[0].mxu0 %v1848
        %v1884 = vpop.f32.mrb[0].mxu0
        %v1885 = vadd.f32 %v1833, %v1884
        %v1886 = vpop.f32.mrb[0].mxu0
        %v1887 = vpop.f32.mrb[0].mxu0
        %v1888 = vpop.f32.mrb[0].mxu0
        %1889 = vdwg.mxu0
        %v1890 = vadd.f32 %v740, %v1885
        %v1891 = vld [vmem:[%s12] sm:$0x1]
        %v1892 = vld [vmem:[%s13] sm:$0x1]
        %v1893 = vsel %vm773, %v1890, 0.0
        %1894 = vadd.xlane.f32.xlu0 %v1893
        %v1895 = vpop.xlane.xlu0 %1894
        %v1896 = vrcp.pop 32.0
        %v1897 = vmul.f32 %v1895, %v1896
        %v1898 = vsub.f32 %v1890, %v1897
        %v1899 = vmul.f32 %v1898, %v1898
        %v1900 = vsel %vm773, %v1899, 0.0
        %1901 = vadd.xlane.f32.xlu0 %v1900
        %v1902 = vpop.xlane.xlu0 %1901
        %v1903 = vmul.f32 %v1902, %v1896
        %v1904 = vadd.f32 %v1903, 1e-05
        %v1905 = vrsqrt.pop %v1904
        %v1906 = vmul.f32 %v1898, %v1905
        %v1908 = vlaneseq
        %v1909 = vshrl.u32 %v1908, 7
        %v1910 = vsub.s32 0, %v1909
        %v1911 = vrot.slane %v1891, %v1910
        %v1913 = vmul.f32 %v1906, %v1911
        %v1915 = vlaneseq
        %v1916 = vshrl.u32 %v1915, 7
        %v1917 = vsub.s32 0, %v1916
        %v1918 = vrot.slane %v1892, %v1917
        %v1920 = vadd.f32 %v1913, %v1918
        %v1921 = vpack.c.bf16 %v1920, %v1920
        %v1922 = vld [vmem:[%s6] sm:$0xf]
        %v1923 = vld [vmem:[%s6 + $0x4] sm:$0xf]
        %v1924 = vld [vmem:[%s6 + $0x8] sm:$0xf]
        %v1925 = vld [vmem:[%s6 + $0xc] sm:$0xf]
        %v1926 = vld [vmem:[%s7] sm:$0x1]
        %v1928 = vlaneseq
        %v1929 = vshrl.u32 %v1928, 7
        %v1930 = vsub.s32 0, %v1929
        %v1931 = vrot.slane %v1926, %v1930
        %v1937 = vunpack.c.l.b16 %v1922
        %v1938 = vunpack.c.l.b16 %v1923
        %v1939 = vunpack.c.l.b16 %v1924
        %v1940 = vunpack.c.l.b16 %v1925
        %v1941 = vpack.c.b16 %v1938, %v1937
        %v1942 = vpack.c.b16 %v1940, %v1939
        %v1946 = vsel %vm773, %v1921, 0
        %1948 = vmatprep.subr.bf16.mxu0 0
        %1949 = vmatpush1.bf16.msra.mxu0 %v1941
        %1950 = vmatprep.subr.bf16.mxu0 0
        %1951 = vmatpush1.bf16.msra.mxu0 %v1942
        %1952 = vmatprep.subr.bf16.mxu0 0
        %1953 = vmatpush1.bf16.msra.mxu0 0
        %1954 = vmatprep.subr.bf16.mxu0 0
        %1955 = vmatpush1.bf16.msra.mxu0 0
        %1956 = vmatprep.subr.bf16.mxu0 0
        %1957 = vmatpush1.bf16.msra.mxu0 0
        %1958 = vmatprep.subr.bf16.mxu0 0
        %1959 = vmatpush1.bf16.msra.mxu0 0
        %1960 = vmatprep.subr.bf16.mxu0 0
        %1961 = vmatpush1.bf16.msra.mxu0 0
        %1962 = vmatprep.subr.bf16.mxu0 0
        %1963 = vmatpush1.bf16.msra.mxu0 0
        %1964 = vmatprep.subr.bf16.mxu0 0
        %1965 = vmatpush1.bf16.msra.mxu0 0
        %1966 = vmatprep.subr.bf16.mxu0 0
        %1967 = vmatpush1.bf16.msra.mxu0 0
        %1968 = vmatprep.subr.bf16.mxu0 0
        %1969 = vmatpush1.bf16.msra.mxu0 0
        %1970 = vmatprep.subr.bf16.mxu0 0
        %1971 = vmatpush1.bf16.msra.mxu0 0
        %1972 = vmatprep.subr.bf16.mxu0 0
        %1973 = vmatpush1.bf16.msra.mxu0 0
        %1974 = vmatprep.subr.bf16.mxu0 0
        %1975 = vmatpush1.bf16.msra.mxu0 0
        %1976 = vmatprep.subr.bf16.mxu0 0
        %1977 = vmatpush1.bf16.msra.mxu0 0
        %1978 = vmatprep.subr.bf16.mxu0 0
        %1979 = vmatpush1.bf16.msra.mxu0 0
        %1980 = vmatprep.mubr.bf16.mxu0 0
        %1981 = vmatmul.mubr.bf16.gmra.mrb[0].mxu0 %v1946
        %v1982 = vpop.f32.mrb[0].mxu0
        %v1983 = vadd.f32 %v1931, %v1982
        %v1984 = vpop.f32.mrb[0].mxu0
        %v1985 = vpop.f32.mrb[0].mxu0
        %v1986 = vpop.f32.mrb[0].mxu0
        %1987 = vdwg.mxu0
        %1988 = vxpose.xlu0.b32.start [1/16] %v1983, 128
        %1989 = vxpose.xlu0.b32.cont [2/16] 0.0, 128
        %1990 = vxpose.xlu0.b32.cont [3/16] 0.0, 128
        %1991 = vxpose.xlu0.b32.cont [4/16] 0.0, 128
        %1992 = vxpose.xlu0.b32.cont [5/16] 0.0, 128
        %1993 = vxpose.xlu0.b32.cont [6/16] 0.0, 128
        %1994 = vxpose.xlu0.b32.cont [7/16] 0.0, 128
        %1995 = vxpose.xlu0.b32.cont [8/16] 0.0, 128
        %1996 = vxpose.xlu0.b32.cont [9/16] 0.0, 128
        %1997 = vxpose.xlu0.b32.cont [10/16] 0.0, 128
        %1998 = vxpose.xlu0.b32.cont [11/16] 0.0, 128
        %1999 = vxpose.xlu0.b32.cont [12/16] 0.0, 128
        %2000 = vxpose.xlu0.b32.cont [13/16] 0.0, 128
        %2001 = vxpose.xlu0.b32.cont [14/16] 0.0, 128
        %2002 = vxpose.xlu0.b32.cont [15/16] 0.0, 128
        %2003 = vxpose.xlu0.b32.end [16/16] 0.0, 128
        %v2004 = vpop.trf.xlu0
        %v2005 = vpop.trf.xlu0
        %v2006 = vpop.trf.xlu0
        %v2007 = vpop.trf.xlu0
        %v2008 = vpop.trf.xlu0
        %v2009 = vpop.trf.xlu0
        %v2010 = vpop.trf.xlu0
        %v2011 = vpop.trf.xlu0
        %v2012 = vpop.trf.xlu0
        %v2013 = vpop.trf.xlu0
        %v2014 = vpop.trf.xlu0
        %v2015 = vpop.trf.xlu0
        %v2016 = vpop.trf.xlu0
        %v2017 = vpop.trf.xlu0
        %v2018 = vpop.trf.xlu0
        %v2019 = vpop.trf.xlu0
        %v2020 = vld [vmem:[%s8] sm:$0xf]
        %v2021 = vld [vmem:[%s8 + $0x4] sm:$0xf]
        %v2022 = vld [vmem:[%s8 + $0x8] sm:$0xf]
        %v2023 = vld [vmem:[%s8 + $0xc] sm:$0xf]
        %v2024 = vld [vmem:[%s9] sm:$0x1]
        %v2026 = vlaneseq
        %v2027 = vshrl.u32 %v2026, 7
        %v2028 = vsub.s32 0, %v2027
        %v2029 = vrot.slane %v2024, %v2028
        %v2033 = vunpack.c.l.b16 %v741
        %v2034 = vunpack.c.l.b16 %v742
        %v2035 = vpack.c.b16 %v2034, %v2033
        %v2040 = vunpack.c.l.b16 %v2020
        %v2041 = vunpack.c.l.b16 %v2021
        %v2042 = vunpack.c.l.b16 %v2022
        %v2043 = vunpack.c.l.b16 %v2023
        %v2044 = vpack.c.b16 %v2041, %v2040
        %v2045 = vpack.c.b16 %v2043, %v2042
        %v2049 = vsel %vm773, %v2035, 0
        %2051 = vmatprep.subr.bf16.mxu0 0
        %2052 = vmatpush1.bf16.msra.mxu0 %v2044
        %2053 = vmatprep.subr.bf16.mxu0 0
        %2054 = vmatpush1.bf16.msra.mxu0 %v2045
        %2055 = vmatprep.subr.bf16.mxu0 0
        %2056 = vmatpush1.bf16.msra.mxu0 0
        %2057 = vmatprep.subr.bf16.mxu0 0
        %2058 = vmatpush1.bf16.msra.mxu0 0
        %2059 = vmatprep.subr.bf16.mxu0 0
        %2060 = vmatpush1.bf16.msra.mxu0 0
        %2061 = vmatprep.subr.bf16.mxu0 0
        %2062 = vmatpush1.bf16.msra.mxu0 0
        %2063 = vmatprep.subr.bf16.mxu0 0
        %2064 = vmatpush1.bf16.msra.mxu0 0
        %2065 = vmatprep.subr.bf16.mxu0 0
        %2066 = vmatpush1.bf16.msra.mxu0 0
        %2067 = vmatprep.subr.bf16.mxu0 0
        %2068 = vmatpush1.bf16.msra.mxu0 0
        %2069 = vmatprep.subr.bf16.mxu0 0
        %2070 = vmatpush1.bf16.msra.mxu0 0
        %2071 = vmatprep.subr.bf16.mxu0 0
        %2072 = vmatpush1.bf16.msra.mxu0 0
        %2073 = vmatprep.subr.bf16.mxu0 0
        %2074 = vmatpush1.bf16.msra.mxu0 0
        %2075 = vmatprep.subr.bf16.mxu0 0
        %2076 = vmatpush1.bf16.msra.mxu0 0
        %2077 = vmatprep.subr.bf16.mxu0 0
        %2078 = vmatpush1.bf16.msra.mxu0 0
        %2079 = vmatprep.subr.bf16.mxu0 0
        %2080 = vmatpush1.bf16.msra.mxu0 0
        %2081 = vmatprep.subr.bf16.mxu0 0
        %2082 = vmatpush1.bf16.msra.mxu0 0
        %2083 = vmatprep.mubr.bf16.mxu0 0
        %2084 = vmatmul.mubr.bf16.gmra.mrb[0].mxu0 %v2049
        %v2085 = vpop.f32.mrb[0].mxu0
        %v2086 = vadd.f32 %v2029, %v2085
        %v2087 = vpop.f32.mrb[0].mxu0
        %v2088 = vpop.f32.mrb[0].mxu0
        %v2089 = vadd.f32 %v2029, %v2088
        %v2090 = vpop.f32.mrb[0].mxu0
        %2091 = vdwg.mxu0
        %2092 = vxpose.xlu0.b32.start [1/16] %v2086, 128
        %2093 = vxpose.xlu0.b32.cont [2/16] %v2089, 128
        %2094 = vxpose.xlu0.b32.cont [3/16] 0.0, 128
        %2095 = vxpose.xlu0.b32.cont [4/16] 0.0, 128
        %2096 = vxpose.xlu0.b32.cont [5/16] 0.0, 128
        %2097 = vxpose.xlu0.b32.cont [6/16] 0.0, 128
        %2098 = vxpose.xlu0.b32.cont [7/16] 0.0, 128
        %2099 = vxpose.xlu0.b32.cont [8/16] 0.0, 128
        %2100 = vxpose.xlu0.b32.cont [9/16] 0.0, 128
        %2101 = vxpose.xlu0.b32.cont [10/16] 0.0, 128
        %2102 = vxpose.xlu0.b32.cont [11/16] 0.0, 128
        %2103 = vxpose.xlu0.b32.cont [12/16] 0.0, 128
        %2104 = vxpose.xlu0.b32.cont [13/16] 0.0, 128
        %2105 = vxpose.xlu0.b32.cont [14/16] 0.0, 128
        %2106 = vxpose.xlu0.b32.cont [15/16] 0.0, 128
        %2107 = vxpose.xlu0.b32.end [16/16] 0.0, 128
        %v2108 = vpop.trf.xlu0
        %v2109 = vpop.trf.xlu0
        %v2110 = vpop.trf.xlu0
        %v2111 = vpop.trf.xlu0
        %v2112 = vpop.trf.xlu0
        %v2113 = vpop.trf.xlu0
        %v2114 = vpop.trf.xlu0
        %v2115 = vpop.trf.xlu0
        %v2116 = vpop.trf.xlu0
        %v2117 = vpop.trf.xlu0
        %v2118 = vpop.trf.xlu0
        %v2119 = vpop.trf.xlu0
        %v2120 = vpop.trf.xlu0
        %v2121 = vpop.trf.xlu0
        %v2122 = vpop.trf.xlu0
        %v2123 = vpop.trf.xlu0
        %2124 = vxpose.xlu0.b32.start [1/16] %v2004, 128
        %2125 = vxpose.xlu0.b32.cont [2/16] 0.0, 128
        %2126 = vxpose.xlu0.b32.cont [3/16] 0.0, 128
        %2127 = vxpose.xlu0.b32.cont [4/16] 0.0, 128
        %2128 = vxpose.xlu0.b32.cont [5/16] 0.0, 128
        %2129 = vxpose.xlu0.b32.cont [6/16] 0.0, 128
        %2130 = vxpose.xlu0.b32.cont [7/16] 0.0, 128
        %2131 = vxpose.xlu0.b32.cont [8/16] 0.0, 128
        %2132 = vxpose.xlu0.b32.cont [9/16] 0.0, 128
        %2133 = vxpose.xlu0.b32.cont [10/16] 0.0, 128
        %2134 = vxpose.xlu0.b32.cont [11/16] 0.0, 128
        %2135 = vxpose.xlu0.b32.cont [12/16] 0.0, 128
        %2136 = vxpose.xlu0.b32.cont [13/16] 0.0, 128
        %2137 = vxpose.xlu0.b32.cont [14/16] 0.0, 128
        %2138 = vxpose.xlu0.b32.cont [15/16] 0.0, 128
        %2139 = vxpose.xlu0.b32.end [16/16] 0.0, 128
        %v2140 = vpop.trf.xlu0
        %v2141 = vpop.trf.xlu0
        %v2142 = vpop.trf.xlu0
        %v2143 = vpop.trf.xlu0
        %v2144 = vpop.trf.xlu0
        %v2145 = vpop.trf.xlu0
        %v2146 = vpop.trf.xlu0
        %v2147 = vpop.trf.xlu0
        %v2148 = vpop.trf.xlu0
        %v2149 = vpop.trf.xlu0
        %v2150 = vpop.trf.xlu0
        %v2151 = vpop.trf.xlu0
        %v2152 = vpop.trf.xlu0
        %v2153 = vpop.trf.xlu0
        %v2154 = vpop.trf.xlu0
        %v2155 = vpop.trf.xlu0
        %2156 = vxpose.xlu0.b32.start [1/16] %v2005, 128
        %2157 = vxpose.xlu0.b32.cont [2/16] 0.0, 128
        %2158 = vxpose.xlu0.b32.cont [3/16] 0.0, 128
        %2159 = vxpose.xlu0.b32.cont [4/16] 0.0, 128
        %2160 = vxpose.xlu0.b32.cont [5/16] 0.0, 128
        %2161 = vxpose.xlu0.b32.cont [6/16] 0.0, 128
        %2162 = vxpose.xlu0.b32.cont [7/16] 0.0, 128
        %2163 = vxpose.xlu0.b32.cont [8/16] 0.0, 128
        %2164 = vxpose.xlu0.b32.cont [9/16] 0.0, 128
        %2165 = vxpose.xlu0.b32.cont [10/16] 0.0, 128
        %2166 = vxpose.xlu0.b32.cont [11/16] 0.0, 128
        %2167 = vxpose.xlu0.b32.cont [12/16] 0.0, 128
        %2168 = vxpose.xlu0.b32.cont [13/16] 0.0, 128
        %2169 = vxpose.xlu0.b32.cont [14/16] 0.0, 128
        %2170 = vxpose.xlu0.b32.cont [15/16] 0.0, 128
        %2171 = vxpose.xlu0.b32.end [16/16] 0.0, 128
        %v2172 = vpop.trf.xlu0
        %v2173 = vpop.trf.xlu0
        %v2174 = vpop.trf.xlu0
        %v2175 = vpop.trf.xlu0
        %v2176 = vpop.trf.xlu0
        %v2177 = vpop.trf.xlu0
        %v2178 = vpop.trf.xlu0
        %v2179 = vpop.trf.xlu0
        %v2180 = vpop.trf.xlu0
        %v2181 = vpop.trf.xlu0
        %v2182 = vpop.trf.xlu0
        %v2183 = vpop.trf.xlu0
        %v2184 = vpop.trf.xlu0
        %v2185 = vpop.trf.xlu0
        %v2186 = vpop.trf.xlu0
        %v2187 = vpop.trf.xlu0
        %2188 = vxpose.xlu0.b32.start [1/16] %v2006, 128
        %2189 = vxpose.xlu0.b32.cont [2/16] 0.0, 128
        %2190 = vxpose.xlu0.b32.cont [3/16] 0.0, 128
        %2191 = vxpose.xlu0.b32.cont [4/16] 0.0, 128
        %2192 = vxpose.xlu0.b32.cont [5/16] 0.0, 128
        %2193 = vxpose.xlu0.b32.cont [6/16] 0.0, 128
        %2194 = vxpose.xlu0.b32.cont [7/16] 0.0, 128
        %2195 = vxpose.xlu0.b32.cont [8/16] 0.0, 128
        %2196 = vxpose.xlu0.b32.cont [9/16] 0.0, 128
        %2197 = vxpose.xlu0.b32.cont [10/16] 0.0, 128
        %2198 = vxpose.xlu0.b32.cont [11/16] 0.0, 128
        %2199 = vxpose.xlu0.b32.cont [12/16] 0.0, 128
        %2200 = vxpose.xlu0.b32.cont [13/16] 0.0, 128
        %2201 = vxpose.xlu0.b32.cont [14/16] 0.0, 128
        %2202 = vxpose.xlu0.b32.cont [15/16] 0.0, 128
        %2203 = vxpose.xlu0.b32.end [16/16] 0.0, 128
        %v2204 = vpop.trf.xlu0
        %v2205 = vpop.trf.xlu0
        %v2206 = vpop.trf.xlu0
        %v2207 = vpop.trf.xlu0
        %v2208 = vpop.trf.xlu0
        %v2209 = vpop.trf.xlu0
        %v2210 = vpop.trf.xlu0
        %v2211 = vpop.trf.xlu0
        %v2212 = vpop.trf.xlu0
        %v2213 = vpop.trf.xlu0
        %v2214 = vpop.trf.xlu0
        %v2215 = vpop.trf.xlu0
        %v2216 = vpop.trf.xlu0
        %v2217 = vpop.trf.xlu0
        %v2218 = vpop.trf.xlu0
        %v2219 = vpop.trf.xlu0
        %2220 = vxpose.xlu0.b32.start [1/16] %v2007, 128
        %2221 = vxpose.xlu0.b32.cont [2/16] 0.0, 128
        %2222 = vxpose.xlu0.b32.cont [3/16] 0.0, 128
        %2223 = vxpose.xlu0.b32.cont [4/16] 0.0, 128
        %2224 = vxpose.xlu0.b32.cont [5/16] 0.0, 128
        %2225 = vxpose.xlu0.b32.cont [6/16] 0.0, 128
        %2226 = vxpose.xlu0.b32.cont [7/16] 0.0, 128
        %2227 = vxpose.xlu0.b32.cont [8/16] 0.0, 128
        %2228 = vxpose.xlu0.b32.cont [9/16] 0.0, 128
        %2229 = vxpose.xlu0.b32.cont [10/16] 0.0, 128
        %2230 = vxpose.xlu0.b32.cont [11/16] 0.0, 128
        %2231 = vxpose.xlu0.b32.cont [12/16] 0.0, 128
        %2232 = vxpose.xlu0.b32.cont [13/16] 0.0, 128
        %2233 = vxpose.xlu0.b32.cont [14/16] 0.0, 128
        %2234 = vxpose.xlu0.b32.cont [15/16] 0.0, 128
        %2235 = vxpose.xlu0.b32.end [16/16] 0.0, 128
        %v2236 = vpop.trf.xlu0
        %v2237 = vpop.trf.xlu0
        %v2238 = vpop.trf.xlu0
        %v2239 = vpop.trf.xlu0
        %v2240 = vpop.trf.xlu0
        %v2241 = vpop.trf.xlu0
        %v2242 = vpop.trf.xlu0
        %v2243 = vpop.trf.xlu0
        %v2244 = vpop.trf.xlu0
        %v2245 = vpop.trf.xlu0
        %v2246 = vpop.trf.xlu0
        %v2247 = vpop.trf.xlu0
        %v2248 = vpop.trf.xlu0
        %v2249 = vpop.trf.xlu0
        %v2250 = vpop.trf.xlu0
        %v2251 = vpop.trf.xlu0
        %2252 = vxpose.xlu0.b32.start [1/16] %v2108, 128
        %2253 = vxpose.xlu0.b32.cont [2/16] 0.0, 128
        %2254 = vxpose.xlu0.b32.cont [3/16] 0.0, 128
        %2255 = vxpose.xlu0.b32.cont [4/16] 0.0, 128
        %2256 = vxpose.xlu0.b32.cont [5/16] 0.0, 128
        %2257 = vxpose.xlu0.b32.cont [6/16] 0.0, 128
        %2258 = vxpose.xlu0.b32.cont [7/16] 0.0, 128
        %2259 = vxpose.xlu0.b32.cont [8/16] 0.0, 128
        %2260 = vxpose.xlu0.b32.cont [9/16] 0.0, 128
        %2261 = vxpose.xlu0.b32.cont [10/16] 0.0, 128
        %2262 = vxpose.xlu0.b32.cont [11/16] 0.0, 128
        %2263 = vxpose.xlu0.b32.cont [12/16] 0.0, 128
        %2264 = vxpose.xlu0.b32.cont [13/16] 0.0, 128
        %2265 = vxpose.xlu0.b32.cont [14/16] 0.0, 128
        %2266 = vxpose.xlu0.b32.cont [15/16] 0.0, 128
        %2267 = vxpose.xlu0.b32.end [16/16] 0.0, 128
        %v2268 = vpop.trf.xlu0
        %v2269 = vpop.trf.xlu0
        %v2270 = vpop.trf.xlu0
        %v2271 = vpop.trf.xlu0
        %v2272 = vpop.trf.xlu0
        %v2273 = vpop.trf.xlu0
        %v2274 = vpop.trf.xlu0
        %v2275 = vpop.trf.xlu0
        %v2276 = vpop.trf.xlu0
        %v2277 = vpop.trf.xlu0
        %v2278 = vpop.trf.xlu0
        %v2279 = vpop.trf.xlu0
        %v2280 = vpop.trf.xlu0
        %v2281 = vpop.trf.xlu0
        %v2282 = vpop.trf.xlu0
        %v2283 = vpop.trf.xlu0
        %2284 = vxpose.xlu0.b32.start [1/16] %v2109, 128
        %2285 = vxpose.xlu0.b32.cont [2/16] 0.0, 128
        %2286 = vxpose.xlu0.b32.cont [3/16] 0.0, 128
        %2287 = vxpose.xlu0.b32.cont [4/16] 0.0, 128
        %2288 = vxpose.xlu0.b32.cont [5/16] 0.0, 128
        %2289 = vxpose.xlu0.b32.cont [6/16] 0.0, 128
        %2290 = vxpose.xlu0.b32.cont [7/16] 0.0, 128
        %2291 = vxpose.xlu0.b32.cont [8/16] 0.0, 128
        %2292 = vxpose.xlu0.b32.cont [9/16] 0.0, 128
        %2293 = vxpose.xlu0.b32.cont [10/16] 0.0, 128
        %2294 = vxpose.xlu0.b32.cont [11/16] 0.0, 128
        %2295 = vxpose.xlu0.b32.cont [12/16] 0.0, 128
        %2296 = vxpose.xlu0.b32.cont [13/16] 0.0, 128
        %2297 = vxpose.xlu0.b32.cont [14/16] 0.0, 128
        %2298 = vxpose.xlu0.b32.cont [15/16] 0.0, 128
        %2299 = vxpose.xlu0.b32.end [16/16] 0.0, 128
        %v2300 = vpop.trf.xlu0
        %v2301 = vpop.trf.xlu0
        %v2302 = vpop.trf.xlu0
        %v2303 = vpop.trf.xlu0
        %v2304 = vpop.trf.xlu0
        %v2305 = vpop.trf.xlu0
        %v2306 = vpop.trf.xlu0
        %v2307 = vpop.trf.xlu0
        %v2308 = vpop.trf.xlu0
        %v2309 = vpop.trf.xlu0
        %v2310 = vpop.trf.xlu0
        %v2311 = vpop.trf.xlu0
        %v2312 = vpop.trf.xlu0
        %v2313 = vpop.trf.xlu0
        %v2314 = vpop.trf.xlu0
        %v2315 = vpop.trf.xlu0
        %2316 = vxpose.xlu0.b32.start [1/16] %v2110, 128
        %2317 = vxpose.xlu0.b32.cont [2/16] 0.0, 128
        %2318 = vxpose.xlu0.b32.cont [3/16] 0.0, 128
        %2319 = vxpose.xlu0.b32.cont [4/16] 0.0, 128
        %2320 = vxpose.xlu0.b32.cont [5/16] 0.0, 128
        %2321 = vxpose.xlu0.b32.cont [6/16] 0.0, 128
        %2322 = vxpose.xlu0.b32.cont [7/16] 0.0, 128
        %2323 = vxpose.xlu0.b32.cont [8/16] 0.0, 128
        %2324 = vxpose.xlu0.b32.cont [9/16] 0.0, 128
        %2325 = vxpose.xlu0.b32.cont [10/16] 0.0, 128
        %2326 = vxpose.xlu0.b32.cont [11/16] 0.0, 128
        %2327 = vxpose.xlu0.b32.cont [12/16] 0.0, 128
        %2328 = vxpose.xlu0.b32.cont [13/16] 0.0, 128
        %2329 = vxpose.xlu0.b32.cont [14/16] 0.0, 128
        %2330 = vxpose.xlu0.b32.cont [15/16] 0.0, 128
        %2331 = vxpose.xlu0.b32.end [16/16] 0.0, 128
        %v2332 = vpop.trf.xlu0
        %v2333 = vpop.trf.xlu0
        %v2334 = vpop.trf.xlu0
        %v2335 = vpop.trf.xlu0
        %v2336 = vpop.trf.xlu0
        %v2337 = vpop.trf.xlu0
        %v2338 = vpop.trf.xlu0
        %v2339 = vpop.trf.xlu0
        %v2340 = vpop.trf.xlu0
        %v2341 = vpop.trf.xlu0
        %v2342 = vpop.trf.xlu0
        %v2343 = vpop.trf.xlu0
        %v2344 = vpop.trf.xlu0
        %v2345 = vpop.trf.xlu0
        %v2346 = vpop.trf.xlu0
        %v2347 = vpop.trf.xlu0
        %2348 = vxpose.xlu0.b32.start [1/16] %v2111, 128
        %2349 = vxpose.xlu0.b32.cont [2/16] 0.0, 128
        %2350 = vxpose.xlu0.b32.cont [3/16] 0.0, 128
        %2351 = vxpose.xlu0.b32.cont [4/16] 0.0, 128
        %2352 = vxpose.xlu0.b32.cont [5/16] 0.0, 128
        %2353 = vxpose.xlu0.b32.cont [6/16] 0.0, 128
        %2354 = vxpose.xlu0.b32.cont [7/16] 0.0, 128
        %2355 = vxpose.xlu0.b32.cont [8/16] 0.0, 128
        %2356 = vxpose.xlu0.b32.cont [9/16] 0.0, 128
        %2357 = vxpose.xlu0.b32.cont [10/16] 0.0, 128
        %2358 = vxpose.xlu0.b32.cont [11/16] 0.0, 128
        %2359 = vxpose.xlu0.b32.cont [12/16] 0.0, 128
        %2360 = vxpose.xlu0.b32.cont [13/16] 0.0, 128
        %2361 = vxpose.xlu0.b32.cont [14/16] 0.0, 128
        %2362 = vxpose.xlu0.b32.cont [15/16] 0.0, 128
        %2363 = vxpose.xlu0.b32.end [16/16] 0.0, 128
        %v2364 = vpop.trf.xlu0
        %v2365 = vpop.trf.xlu0
        %v2366 = vpop.trf.xlu0
        %v2367 = vpop.trf.xlu0
        %v2368 = vpop.trf.xlu0
        %v2369 = vpop.trf.xlu0
        %v2370 = vpop.trf.xlu0
        %v2371 = vpop.trf.xlu0
        %v2372 = vpop.trf.xlu0
        %v2373 = vpop.trf.xlu0
        %v2374 = vpop.trf.xlu0
        %v2375 = vpop.trf.xlu0
        %v2376 = vpop.trf.xlu0
        %v2377 = vpop.trf.xlu0
        %v2378 = vpop.trf.xlu0
        %v2379 = vpop.trf.xlu0
        %2380 = vxpose.xlu0.b32.start [1/16] %v2112, 128
        %2381 = vxpose.xlu0.b32.cont [2/16] 0.0, 128
        %2382 = vxpose.xlu0.b32.cont [3/16] 0.0, 128
        %2383 = vxpose.xlu0.b32.cont [4/16] 0.0, 128
        %2384 = vxpose.xlu0.b32.cont [5/16] 0.0, 128
        %2385 = vxpose.xlu0.b32.cont [6/16] 0.0, 128
        %2386 = vxpose.xlu0.b32.cont [7/16] 0.0, 128
        %2387 = vxpose.xlu0.b32.cont [8/16] 0.0, 128
        %2388 = vxpose.xlu0.b32.cont [9/16] 0.0, 128
        %2389 = vxpose.xlu0.b32.cont [10/16] 0.0, 128
        %2390 = vxpose.xlu0.b32.cont [11/16] 0.0, 128
        %2391 = vxpose.xlu0.b32.cont [12/16] 0.0, 128
        %2392 = vxpose.xlu0.b32.cont [13/16] 0.0, 128
        %2393 = vxpose.xlu0.b32.cont [14/16] 0.0, 128
        %2394 = vxpose.xlu0.b32.cont [15/16] 0.0, 128
        %2395 = vxpose.xlu0.b32.end [16/16] 0.0, 128
        %v2396 = vpop.trf.xlu0
        %v2397 = vpop.trf.xlu0
        %v2398 = vpop.trf.xlu0
        %v2399 = vpop.trf.xlu0
        %v2400 = vpop.trf.xlu0
        %v2401 = vpop.trf.xlu0
        %v2402 = vpop.trf.xlu0
        %v2403 = vpop.trf.xlu0
        %v2404 = vpop.trf.xlu0
        %v2405 = vpop.trf.xlu0
        %v2406 = vpop.trf.xlu0
        %v2407 = vpop.trf.xlu0
        %v2408 = vpop.trf.xlu0
        %v2409 = vpop.trf.xlu0
        %v2410 = vpop.trf.xlu0
        %v2411 = vpop.trf.xlu0
        %2412 = vxpose.xlu0.b32.start [1/16] %v2113, 128
        %2413 = vxpose.xlu0.b32.cont [2/16] 0.0, 128
        %2414 = vxpose.xlu0.b32.cont [3/16] 0.0, 128
        %2415 = vxpose.xlu0.b32.cont [4/16] 0.0, 128
        %2416 = vxpose.xlu0.b32.cont [5/16] 0.0, 128
        %2417 = vxpose.xlu0.b32.cont [6/16] 0.0, 128
        %2418 = vxpose.xlu0.b32.cont [7/16] 0.0, 128
        %2419 = vxpose.xlu0.b32.cont [8/16] 0.0, 128
        %2420 = vxpose.xlu0.b32.cont [9/16] 0.0, 128
        %2421 = vxpose.xlu0.b32.cont [10/16] 0.0, 128
        %2422 = vxpose.xlu0.b32.cont [11/16] 0.0, 128
        %2423 = vxpose.xlu0.b32.cont [12/16] 0.0, 128
        %2424 = vxpose.xlu0.b32.cont [13/16] 0.0, 128
        %2425 = vxpose.xlu0.b32.cont [14/16] 0.0, 128
        %2426 = vxpose.xlu0.b32.cont [15/16] 0.0, 128
        %2427 = vxpose.xlu0.b32.end [16/16] 0.0, 128
        %v2428 = vpop.trf.xlu0
        %v2429 = vpop.trf.xlu0
        %v2430 = vpop.trf.xlu0
        %v2431 = vpop.trf.xlu0
        %v2432 = vpop.trf.xlu0
        %v2433 = vpop.trf.xlu0
        %v2434 = vpop.trf.xlu0
        %v2435 = vpop.trf.xlu0
        %v2436 = vpop.trf.xlu0
        %v2437 = vpop.trf.xlu0
        %v2438 = vpop.trf.xlu0
        %v2439 = vpop.trf.xlu0
        %v2440 = vpop.trf.xlu0
        %v2441 = vpop.trf.xlu0
        %v2442 = vpop.trf.xlu0
        %v2443 = vpop.trf.xlu0
        %2444 = vxpose.xlu0.b32.start [1/16] %v2114, 128
        %2445 = vxpose.xlu0.b32.cont [2/16] 0.0, 128
        %2446 = vxpose.xlu0.b32.cont [3/16] 0.0, 128
        %2447 = vxpose.xlu0.b32.cont [4/16] 0.0, 128
        %2448 = vxpose.xlu0.b32.cont [5/16] 0.0, 128
        %2449 = vxpose.xlu0.b32.cont [6/16] 0.0, 128
        %2450 = vxpose.xlu0.b32.cont [7/16] 0.0, 128
        %2451 = vxpose.xlu0.b32.cont [8/16] 0.0, 128
        %2452 = vxpose.xlu0.b32.cont [9/16] 0.0, 128
        %2453 = vxpose.xlu0.b32.cont [10/16] 0.0, 128
        %2454 = vxpose.xlu0.b32.cont [11/16] 0.0, 128
        %2455 = vxpose.xlu0.b32.cont [12/16] 0.0, 128
        %2456 = vxpose.xlu0.b32.cont [13/16] 0.0, 128
        %2457 = vxpose.xlu0.b32.cont [14/16] 0.0, 128
        %2458 = vxpose.xlu0.b32.cont [15/16] 0.0, 128
        %2459 = vxpose.xlu0.b32.end [16/16] 0.0, 128
        %v2460 = vpop.trf.xlu0
        %v2461 = vpop.trf.xlu0
        %v2462 = vpop.trf.xlu0
        %v2463 = vpop.trf.xlu0
        %v2464 = vpop.trf.xlu0
        %v2465 = vpop.trf.xlu0
        %v2466 = vpop.trf.xlu0
        %v2467 = vpop.trf.xlu0
        %v2468 = vpop.trf.xlu0
        %v2469 = vpop.trf.xlu0
        %v2470 = vpop.trf.xlu0
        %v2471 = vpop.trf.xlu0
        %v2472 = vpop.trf.xlu0
        %v2473 = vpop.trf.xlu0
        %v2474 = vpop.trf.xlu0
        %v2475 = vpop.trf.xlu0
        %2476 = vxpose.xlu0.b32.start [1/16] %v2115, 128
        %2477 = vxpose.xlu0.b32.cont [2/16] 0.0, 128
        %2478 = vxpose.xlu0.b32.cont [3/16] 0.0, 128
        %2479 = vxpose.xlu0.b32.cont [4/16] 0.0, 128
        %2480 = vxpose.xlu0.b32.cont [5/16] 0.0, 128
        %2481 = vxpose.xlu0.b32.cont [6/16] 0.0, 128
        %2482 = vxpose.xlu0.b32.cont [7/16] 0.0, 128
        %2483 = vxpose.xlu0.b32.cont [8/16] 0.0, 128
        %2484 = vxpose.xlu0.b32.cont [9/16] 0.0, 128
        %2485 = vxpose.xlu0.b32.cont [10/16] 0.0, 128
        %2486 = vxpose.xlu0.b32.cont [11/16] 0.0, 128
        %2487 = vxpose.xlu0.b32.cont [12/16] 0.0, 128
        %2488 = vxpose.xlu0.b32.cont [13/16] 0.0, 128
        %2489 = vxpose.xlu0.b32.cont [14/16] 0.0, 128
        %2490 = vxpose.xlu0.b32.cont [15/16] 0.0, 128
        %2491 = vxpose.xlu0.b32.end [16/16] 0.0, 128
        %v2492 = vpop.trf.xlu0
        %v2493 = vpop.trf.xlu0
        %v2494 = vpop.trf.xlu0
        %v2495 = vpop.trf.xlu0
        %v2496 = vpop.trf.xlu0
        %v2497 = vpop.trf.xlu0
        %v2498 = vpop.trf.xlu0
        %v2499 = vpop.trf.xlu0
        %v2500 = vpop.trf.xlu0
        %v2501 = vpop.trf.xlu0
        %v2502 = vpop.trf.xlu0
        %v2503 = vpop.trf.xlu0
        %v2504 = vpop.trf.xlu0
        %v2505 = vpop.trf.xlu0
        %v2506 = vpop.trf.xlu0
        %v2507 = vpop.trf.xlu0
        %v2508 = vpack.c.bf16 %v2140, %v2140
        %v2509 = vpack.c.bf16 %v2172, %v2172
        %v2510 = vpack.c.bf16 %v2204, %v2204
        %v2511 = vpack.c.bf16 %v2236, %v2236
        %v2512 = vpack.c.bf16 %v2269, %v2268
        %v2513 = vpack.c.bf16 %v2301, %v2300
        %v2514 = vpack.c.bf16 %v2333, %v2332
        %v2515 = vpack.c.bf16 %v2365, %v2364
        %v2517 = vsel %vm1241, %v2508, 0
        %v2520 = vsel %vm1241, %v2512, 0
        %2522 = vmatprep.subr.bf16.mxu0 0
        %2523 = vmatpush1.bf16.xpose.msra.mxu0 %v2520
        %2524 = vmatprep.subr.bf16.mxu0 0
        %2525 = vmatpush1.bf16.xpose.msra.mxu0 0
        %2526 = vmatprep.subr.bf16.mxu0 0
        %2527 = vmatpush1.bf16.xpose.msra.mxu0 0
        %2528 = vmatprep.subr.bf16.mxu0 0
        %2529 = vmatpush1.bf16.xpose.msra.mxu0 0
        %2530 = vmatprep.subr.bf16.mxu0 0
        %2531 = vmatpush1.bf16.xpose.msra.mxu0 0
        %2532 = vmatprep.subr.bf16.mxu0 0
        %2533 = vmatpush1.bf16.xpose.msra.mxu0 0
        %2534 = vmatprep.subr.bf16.mxu0 0
        %2535 = vmatpush1.bf16.xpose.msra.mxu0 0
        %2536 = vmatprep.subr.bf16.mxu0 0
        %2537 = vmatpush1.bf16.xpose.msra.mxu0 0
        %2538 = vmatprep.subr.bf16.mxu0 0
        %2539 = vmatpush1.bf16.xpose.msra.mxu0 0
        %2540 = vmatprep.subr.bf16.mxu0 0
        %2541 = vmatpush1.bf16.xpose.msra.mxu0 0
        %2542 = vmatprep.subr.bf16.mxu0 0
        %2543 = vmatpush1.bf16.xpose.msra.mxu0 0
        %2544 = vmatprep.subr.bf16.mxu0 0
        %2545 = vmatpush1.bf16.xpose.msra.mxu0 0
        %2546 = vmatprep.subr.bf16.mxu0 0
        %2547 = vmatpush1.bf16.xpose.msra.mxu0 0
        %2548 = vmatprep.subr.bf16.mxu0 0
        %2549 = vmatpush1.bf16.xpose.msra.mxu0 0
        %2550 = vmatprep.subr.bf16.mxu0 0
        %2551 = vmatpush1.bf16.xpose.msra.mxu0 0
        %2552 = vmatprep.subr.bf16.mxu0 0
        %2553 = vmatpush1.bf16.xpose.msra.mxu0 0
        %2554 = vmatprep.mubr.bf16.mxu0 0
        %2555 = vmatmul.mubr.bf16.gmra.mrb[0].mxu0 %v2517
        %v2556 = vpop.f32.mrb[0].mxu0
        %v2557 = vadd.f32 0.0, %v2556
        %v2558 = vpop.f32.mrb[0].mxu0
        %v2559 = vpop.f32.mrb[0].mxu0
        %v2560 = vpop.f32.mrb[0].mxu0
        %2561 = vdwg.mxu0
        %v2563 = vsel %vm1241, %v2509, 0
        %v2566 = vsel %vm1241, %v2513, 0
        %2568 = vmatprep.subr.bf16.mxu0 0
        %2569 = vmatpush1.bf16.xpose.msra.mxu0 %v2566
        %2570 = vmatprep.subr.bf16.mxu0 0
        %2571 = vmatpush1.bf16.xpose.msra.mxu0 0
        %2572 = vmatprep.subr.bf16.mxu0 0
        %2573 = vmatpush1.bf16.xpose.msra.mxu0 0
        %2574 = vmatprep.subr.bf16.mxu0 0
        %2575 = vmatpush1.bf16.xpose.msra.mxu0 0
        %2576 = vmatprep.subr.bf16.mxu0 0
        %2577 = vmatpush1.bf16.xpose.msra.mxu0 0
        %2578 = vmatprep.subr.bf16.mxu0 0
        %2579 = vmatpush1.bf16.xpose.msra.mxu0 0
        %2580 = vmatprep.subr.bf16.mxu0 0
        %2581 = vmatpush1.bf16.xpose.msra.mxu0 0
        %2582 = vmatprep.subr.bf16.mxu0 0
        %2583 = vmatpush1.bf16.xpose.msra.mxu0 0
        %2584 = vmatprep.subr.bf16.mxu0 0
        %2585 = vmatpush1.bf16.xpose.msra.mxu0 0
        %2586 = vmatprep.subr.bf16.mxu0 0
        %2587 = vmatpush1.bf16.xpose.msra.mxu0 0
        %2588 = vmatprep.subr.bf16.mxu0 0
        %2589 = vmatpush1.bf16.xpose.msra.mxu0 0
        %2590 = vmatprep.subr.bf16.mxu0 0
        %2591 = vmatpush1.bf16.xpose.msra.mxu0 0
        %2592 = vmatprep.subr.bf16.mxu0 0
        %2593 = vmatpush1.bf16.xpose.msra.mxu0 0
        %2594 = vmatprep.subr.bf16.mxu0 0
        %2595 = vmatpush1.bf16.xpose.msra.mxu0 0
        %2596 = vmatprep.subr.bf16.mxu0 0
        %2597 = vmatpush1.bf16.xpose.msra.mxu0 0
        %2598 = vmatprep.subr.bf16.mxu0 0
        %2599 = vmatpush1.bf16.xpose.msra.mxu0 0
        %2600 = vmatprep.mubr.bf16.mxu0 0
        %2601 = vmatmul.mubr.bf16.gmra.mrb[0].mxu0 %v2563
        %v2602 = vpop.f32.mrb[0].mxu0
        %v2603 = vadd.f32 0.0, %v2602
        %v2604 = vpop.f32.mrb[0].mxu0
        %v2605 = vpop.f32.mrb[0].mxu0
        %v2606 = vpop.f32.mrb[0].mxu0
        %2607 = vdwg.mxu0
        %v2609 = vsel %vm1241, %v2510, 0
        %v2612 = vsel %vm1241, %v2514, 0
        %2614 = vmatprep.subr.bf16.mxu0 0
        %2615 = vmatpush1.bf16.xpose.msra.mxu0 %v2612
        %2616 = vmatprep.subr.bf16.mxu0 0
        %2617 = vmatpush1.bf16.xpose.msra.mxu0 0
        %2618 = vmatprep.subr.bf16.mxu0 0
        %2619 = vmatpush1.bf16.xpose.msra.mxu0 0
        %2620 = vmatprep.subr.bf16.mxu0 0
        %2621 = vmatpush1.bf16.xpose.msra.mxu0 0
        %2622 = vmatprep.subr.bf16.mxu0 0
        %2623 = vmatpush1.bf16.xpose.msra.mxu0 0
        %2624 = vmatprep.subr.bf16.mxu0 0
        %2625 = vmatpush1.bf16.xpose.msra.mxu0 0
        %2626 = vmatprep.subr.bf16.mxu0 0
        %2627 = vmatpush1.bf16.xpose.msra.mxu0 0
        %2628 = vmatprep.subr.bf16.mxu0 0
        %2629 = vmatpush1.bf16.xpose.msra.mxu0 0
        %2630 = vmatprep.subr.bf16.mxu0 0
        %2631 = vmatpush1.bf16.xpose.msra.mxu0 0
        %2632 = vmatprep.subr.bf16.mxu0 0
        %2633 = vmatpush1.bf16.xpose.msra.mxu0 0
        %2634 = vmatprep.subr.bf16.mxu0 0
        %2635 = vmatpush1.bf16.xpose.msra.mxu0 0
        %2636 = vmatprep.subr.bf16.mxu0 0
        %2637 = vmatpush1.bf16.xpose.msra.mxu0 0
        %2638 = vmatprep.subr.bf16.mxu0 0
        %2639 = vmatpush1.bf16.xpose.msra.mxu0 0
        %2640 = vmatprep.subr.bf16.mxu0 0
        %2641 = vmatpush1.bf16.xpose.msra.mxu0 0
        %2642 = vmatprep.subr.bf16.mxu0 0
        %2643 = vmatpush1.bf16.xpose.msra.mxu0 0
        %2644 = vmatprep.subr.bf16.mxu0 0
        %2645 = vmatpush1.bf16.xpose.msra.mxu0 0
        %2646 = vmatprep.mubr.bf16.mxu0 0
        %2647 = vmatmul.mubr.bf16.gmra.mrb[0].mxu0 %v2609
        %v2648 = vpop.f32.mrb[0].mxu0
        %v2649 = vadd.f32 0.0, %v2648
        %v2650 = vpop.f32.mrb[0].mxu0
        %v2651 = vpop.f32.mrb[0].mxu0
        %v2652 = vpop.f32.mrb[0].mxu0
        %2653 = vdwg.mxu0
        %v2655 = vsel %vm1241, %v2511, 0
        %v2658 = vsel %vm1241, %v2515, 0
        %2660 = vmatprep.subr.bf16.mxu0 0
        %2661 = vmatpush1.bf16.xpose.msra.mxu0 %v2658
        %2662 = vmatprep.subr.bf16.mxu0 0
        %2663 = vmatpush1.bf16.xpose.msra.mxu0 0
        %2664 = vmatprep.subr.bf16.mxu0 0
        %2665 = vmatpush1.bf16.xpose.msra.mxu0 0
        %2666 = vmatprep.subr.bf16.mxu0 0
        %2667 = vmatpush1.bf16.xpose.msra.mxu0 0
        %2668 = vmatprep.subr.bf16.mxu0 0
        %2669 = vmatpush1.bf16.xpose.msra.mxu0 0
        %2670 = vmatprep.subr.bf16.mxu0 0
        %2671 = vmatpush1.bf16.xpose.msra.mxu0 0
        %2672 = vmatprep.subr.bf16.mxu0 0
        %2673 = vmatpush1.bf16.xpose.msra.mxu0 0
        %2674 = vmatprep.subr.bf16.mxu0 0
        %2675 = vmatpush1.bf16.xpose.msra.mxu0 0
        %2676 = vmatprep.subr.bf16.mxu0 0
        %2677 = vmatpush1.bf16.xpose.msra.mxu0 0
        %2678 = vmatprep.subr.bf16.mxu0 0
        %2679 = vmatpush1.bf16.xpose.msra.mxu0 0
        %2680 = vmatprep.subr.bf16.mxu0 0
        %2681 = vmatpush1.bf16.xpose.msra.mxu0 0
        %2682 = vmatprep.subr.bf16.mxu0 0
        %2683 = vmatpush1.bf16.xpose.msra.mxu0 0
        %2684 = vmatprep.subr.bf16.mxu0 0
        %2685 = vmatpush1.bf16.xpose.msra.mxu0 0
        %2686 = vmatprep.subr.bf16.mxu0 0
        %2687 = vmatpush1.bf16.xpose.msra.mxu0 0
        %2688 = vmatprep.subr.bf16.mxu0 0
        %2689 = vmatpush1.bf16.xpose.msra.mxu0 0
        %2690 = vmatprep.subr.bf16.mxu0 0
        %2691 = vmatpush1.bf16.xpose.msra.mxu0 0
        %2692 = vmatprep.mubr.bf16.mxu0 0
        %2693 = vmatmul.mubr.bf16.gmra.mrb[0].mxu0 %v2655
        %v2694 = vpop.f32.mrb[0].mxu0
        %v2695 = vadd.f32 0.0, %v2694
        %v2696 = vpop.f32.mrb[0].mxu0
        %v2697 = vpop.f32.mrb[0].mxu0
        %v2698 = vpop.f32.mrb[0].mxu0
        %2699 = vdwg.mxu0
        %vm2700 = vcmask 80896
        %v2701 = vsel %vm2700, %v2557, -inf
        %2702 = vmax.xlane.f32.xlu0 %v2701
        %v2703 = vpop.xlane.xlu0 %2702
        %v2704 = vsel %vm2700, %v2603, -inf
        %2705 = vmax.xlane.f32.xlu0 %v2704
        %v2706 = vpop.xlane.xlu0 %2705
        %v2707 = vsel %vm2700, %v2649, -inf
        %2708 = vmax.xlane.f32.xlu0 %v2707
        %v2709 = vpop.xlane.xlu0 %2708
        %v2710 = vsel %vm2700, %v2695, -inf
        %2711 = vmax.xlane.f32.xlu0 %v2710
        %v2712 = vpop.xlane.xlu0 %2711
        %v2713 = vsub.f32 %v2557, %v2703
        %v2714 = vsub.f32 %v2603, %v2706
        %v2715 = vsub.f32 %v2649, %v2709
        %v2716 = vsub.f32 %v2695, %v2712
        %v2717 = vmul.f32 %v2713, 1.442695
        %v2718 = vpow.pop %v2717
        %v2719 = vmul.f32 %v2714, 1.442695
        %v2720 = vpow.pop %v2719
        %v2721 = vmul.f32 %v2715, 1.442695
        %v2722 = vpow.pop %v2721
        %v2723 = vmul.f32 %v2716, 1.442695
        %v2724 = vpow.pop %v2723
        %v2725 = vsel %vm2700, %v2718, 0.0
        %2726 = vadd.xlane.f32.xlu0 %v2725
        %v2727 = vpop.xlane.xlu0 %2726
        %v2728 = vsel %vm2700, %v2720, 0.0
        %2729 = vadd.xlane.f32.xlu0 %v2728
        %v2730 = vpop.xlane.xlu0 %2729
        %v2731 = vsel %vm2700, %v2722, 0.0
        %2732 = vadd.xlane.f32.xlu0 %v2731
        %v2733 = vpop.xlane.xlu0 %2732
        %v2734 = vsel %vm2700, %v2724, 0.0
        %2735 = vadd.xlane.f32.xlu0 %v2734
        %v2736 = vpop.xlane.xlu0 %2735
        %v2737 = vrcp.pop %v2727
        %v2738 = vrcp.pop %v2730
        %v2739 = vrcp.pop %v2733
        %v2740 = vrcp.pop %v2736
        %v2741 = vmul.f32 %v2718, %v2737
        %v2742 = vmul.f32 %v2720, %v2738
        %v2743 = vmul.f32 %v2722, %v2739
        %v2744 = vmul.f32 %v2724, %v2740
        %v2745 = vpack.c.bf16 %v2741, %v2741
        %v2746 = vpack.c.bf16 %v2742, %v2742
        %v2747 = vpack.c.bf16 %v2743, %v2743
        %v2748 = vpack.c.bf16 %v2744, %v2744
        %v2749 = vpack.c.bf16 %v2397, %v2396
        %v2750 = vpack.c.bf16 %v2429, %v2428
        %v2751 = vpack.c.bf16 %v2461, %v2460
        %v2752 = vpack.c.bf16 %v2493, %v2492
        %v2754 = vsel %vm2700, %v2745, 0
        %vm2756 = vcmask 1044480
        %v2758 = vsel %vm2756, %v2749, 0
        %2760 = vmatprep.subr.bf16.mxu0 0
        %2761 = vmatpush1.bf16.msra.mxu0 %v2758
        %2762 = vmatprep.subr.bf16.mxu0 0
        %2763 = vmatpush1.bf16.msra.mxu0 0
        %2764 = vmatprep.subr.bf16.mxu0 0
        %2765 = vmatpush1.bf16.msra.mxu0 0
        %2766 = vmatprep.subr.bf16.mxu0 0
        %2767 = vmatpush1.bf16.msra.mxu0 0
        %2768 = vmatprep.subr.bf16.mxu0 0
        %2769 = vmatpush1.bf16.msra.mxu0 0
        %2770 = vmatprep.subr.bf16.mxu0 0
        %2771 = vmatpush1.bf16.msra.mxu0 0
        %2772 = vmatprep.subr.bf16.mxu0 0
        %2773 = vmatpush1.bf16.msra.mxu0 0
        %2774 = vmatprep.subr.bf16.mxu0 0
        %2775 = vmatpush1.bf16.msra.mxu0 0
        %2776 = vmatprep.subr.bf16.mxu0 0
        %2777 = vmatpush1.bf16.msra.mxu0 0
        %2778 = vmatprep.subr.bf16.mxu0 0
        %2779 = vmatpush1.bf16.msra.mxu0 0
        %2780 = vmatprep.subr.bf16.mxu0 0
        %2781 = vmatpush1.bf16.msra.mxu0 0
        %2782 = vmatprep.subr.bf16.mxu0 0
        %2783 = vmatpush1.bf16.msra.mxu0 0
        %2784 = vmatprep.subr.bf16.mxu0 0
        %2785 = vmatpush1.bf16.msra.mxu0 0
        %2786 = vmatprep.subr.bf16.mxu0 0
        %2787 = vmatpush1.bf16.msra.mxu0 0
        %2788 = vmatprep.subr.bf16.mxu0 0
        %2789 = vmatpush1.bf16.msra.mxu0 0
        %2790 = vmatprep.subr.bf16.mxu0 0
        %2791 = vmatpush1.bf16.msra.mxu0 0
        %2792 = vmatprep.mubr.bf16.mxu0 0
        %2793 = vmatmul.mubr.bf16.gmra.mrb[0].mxu0 %v2754
        %v2794 = vpop.f32.mrb[0].mxu0
        %v2795 = vadd.f32 0.0, %v2794
        %v2796 = vpop.f32.mrb[0].mxu0
        %v2797 = vpop.f32.mrb[0].mxu0
        %v2798 = vpop.f32.mrb[0].mxu0
        %2799 = vdwg.mxu0
        %v2801 = vsel %vm2700, %v2746, 0
        %v2804 = vsel %vm2756, %v2750, 0
        %2806 = vmatprep.subr.bf16.mxu0 0
        %2807 = vmatpush1.bf16.msra.mxu0 %v2804
        %2808 = vmatprep.subr.bf16.mxu0 0
        %2809 = vmatpush1.bf16.msra.mxu0 0
        %2810 = vmatprep.subr.bf16.mxu0 0
        %2811 = vmatpush1.bf16.msra.mxu0 0
        %2812 = vmatprep.subr.bf16.mxu0 0
        %2813 = vmatpush1.bf16.msra.mxu0 0
        %2814 = vmatprep.subr.bf16.mxu0 0
        %2815 = vmatpush1.bf16.msra.mxu0 0
        %2816 = vmatprep.subr.bf16.mxu0 0
        %2817 = vmatpush1.bf16.msra.mxu0 0
        %2818 = vmatprep.subr.bf16.mxu0 0
        %2819 = vmatpush1.bf16.msra.mxu0 0
        %2820 = vmatprep.subr.bf16.mxu0 0
        %2821 = vmatpush1.bf16.msra.mxu0 0
        %2822 = vmatprep.subr.bf16.mxu0 0
        %2823 = vmatpush1.bf16.msra.mxu0 0
        %2824 = vmatprep.subr.bf16.mxu0 0
        %2825 = vmatpush1.bf16.msra.mxu0 0
        %2826 = vmatprep.subr.bf16.mxu0 0
        %2827 = vmatpush1.bf16.msra.mxu0 0
        %2828 = vmatprep.subr.bf16.mxu0 0
        %2829 = vmatpush1.bf16.msra.mxu0 0
        %2830 = vmatprep.subr.bf16.mxu0 0
        %2831 = vmatpush1.bf16.msra.mxu0 0
        %2832 = vmatprep.subr.bf16.mxu0 0
        %2833 = vmatpush1.bf16.msra.mxu0 0
        %2834 = vmatprep.subr.bf16.mxu0 0
        %2835 = vmatpush1.bf16.msra.mxu0 0
        %2836 = vmatprep.subr.bf16.mxu0 0
        %2837 = vmatpush1.bf16.msra.mxu0 0
        %2838 = vmatprep.mubr.bf16.mxu0 0
        %2839 = vmatmul.mubr.bf16.gmra.mrb[0].mxu0 %v2801
        %v2840 = vpop.f32.mrb[0].mxu0
        %v2841 = vadd.f32 0.0, %v2840
        %v2842 = vpop.f32.mrb[0].mxu0
        %v2843 = vpop.f32.mrb[0].mxu0
        %v2844 = vpop.f32.mrb[0].mxu0
        %2845 = vdwg.mxu0
        %v2847 = vsel %vm2700, %v2747, 0
        %v2850 = vsel %vm2756, %v2751, 0
        %2852 = vmatprep.subr.bf16.mxu0 0
        %2853 = vmatpush1.bf16.msra.mxu0 %v2850
        %2854 = vmatprep.subr.bf16.mxu0 0
        %2855 = vmatpush1.bf16.msra.mxu0 0
        %2856 = vmatprep.subr.bf16.mxu0 0
        %2857 = vmatpush1.bf16.msra.mxu0 0
        %2858 = vmatprep.subr.bf16.mxu0 0
        %2859 = vmatpush1.bf16.msra.mxu0 0
        %2860 = vmatprep.subr.bf16.mxu0 0
        %2861 = vmatpush1.bf16.msra.mxu0 0
        %2862 = vmatprep.subr.bf16.mxu0 0
        %2863 = vmatpush1.bf16.msra.mxu0 0
        %2864 = vmatprep.subr.bf16.mxu0 0
        %2865 = vmatpush1.bf16.msra.mxu0 0
        %2866 = vmatprep.subr.bf16.mxu0 0
        %2867 = vmatpush1.bf16.msra.mxu0 0
        %2868 = vmatprep.subr.bf16.mxu0 0
        %2869 = vmatpush1.bf16.msra.mxu0 0
        %2870 = vmatprep.subr.bf16.mxu0 0
        %2871 = vmatpush1.bf16.msra.mxu0 0
        %2872 = vmatprep.subr.bf16.mxu0 0
        %2873 = vmatpush1.bf16.msra.mxu0 0
        %2874 = vmatprep.subr.bf16.mxu0 0
        %2875 = vmatpush1.bf16.msra.mxu0 0
        %2876 = vmatprep.subr.bf16.mxu0 0
        %2877 = vmatpush1.bf16.msra.mxu0 0
        %2878 = vmatprep.subr.bf16.mxu0 0
        %2879 = vmatpush1.bf16.msra.mxu0 0
        %2880 = vmatprep.subr.bf16.mxu0 0
        %2881 = vmatpush1.bf16.msra.mxu0 0
        %2882 = vmatprep.subr.bf16.mxu0 0
        %2883 = vmatpush1.bf16.msra.mxu0 0
        %2884 = vmatprep.mubr.bf16.mxu0 0
        %2885 = vmatmul.mubr.bf16.gmra.mrb[0].mxu0 %v2847
        %v2886 = vpop.f32.mrb[0].mxu0
        %v2887 = vadd.f32 0.0, %v2886
        %v2888 = vpop.f32.mrb[0].mxu0
        %v2889 = vpop.f32.mrb[0].mxu0
        %v2890 = vpop.f32.mrb[0].mxu0
        %2891 = vdwg.mxu0
        %v2893 = vsel %vm2700, %v2748, 0
        %v2896 = vsel %vm2756, %v2752, 0
        %2898 = vmatprep.subr.bf16.mxu0 0
        %2899 = vmatpush1.bf16.msra.mxu0 %v2896
        %2900 = vmatprep.subr.bf16.mxu0 0
        %2901 = vmatpush1.bf16.msra.mxu0 0
        %2902 = vmatprep.subr.bf16.mxu0 0
        %2903 = vmatpush1.bf16.msra.mxu0 0
        %2904 = vmatprep.subr.bf16.mxu0 0
        %2905 = vmatpush1.bf16.msra.mxu0 0
        %2906 = vmatprep.subr.bf16.mxu0 0
        %2907 = vmatpush1.bf16.msra.mxu0 0
        %2908 = vmatprep.subr.bf16.mxu0 0
        %2909 = vmatpush1.bf16.msra.mxu0 0
        %2910 = vmatprep.subr.bf16.mxu0 0
        %2911 = vmatpush1.bf16.msra.mxu0 0
        %2912 = vmatprep.subr.bf16.mxu0 0
        %2913 = vmatpush1.bf16.msra.mxu0 0
        %2914 = vmatprep.subr.bf16.mxu0 0
        %2915 = vmatpush1.bf16.msra.mxu0 0
        %2916 = vmatprep.subr.bf16.mxu0 0
        %2917 = vmatpush1.bf16.msra.mxu0 0
        %2918 = vmatprep.subr.bf16.mxu0 0
        %2919 = vmatpush1.bf16.msra.mxu0 0
        %2920 = vmatprep.subr.bf16.mxu0 0
        %2921 = vmatpush1.bf16.msra.mxu0 0
        %2922 = vmatprep.subr.bf16.mxu0 0
        %2923 = vmatpush1.bf16.msra.mxu0 0
        %2924 = vmatprep.subr.bf16.mxu0 0
        %2925 = vmatpush1.bf16.msra.mxu0 0
        %2926 = vmatprep.subr.bf16.mxu0 0
        %2927 = vmatpush1.bf16.msra.mxu0 0
        %2928 = vmatprep.subr.bf16.mxu0 0
        %2929 = vmatpush1.bf16.msra.mxu0 0
        %2930 = vmatprep.mubr.bf16.mxu0 0
        %2931 = vmatmul.mubr.bf16.gmra.mrb[0].mxu0 %v2893
        %v2932 = vpop.f32.mrb[0].mxu0
        %v2933 = vadd.f32 0.0, %v2932
        %v2934 = vpop.f32.mrb[0].mxu0
        %v2935 = vpop.f32.mrb[0].mxu0
        %v2936 = vpop.f32.mrb[0].mxu0
        %2937 = vdwg.mxu0
        %2938 = vxpose.xlu0.b32.start [1/16] %v2795, 128
        %2939 = vxpose.xlu0.b32.cont [2/16] 0.0, 128
        %2940 = vxpose.xlu0.b32.cont [3/16] 0.0, 128
        %2941 = vxpose.xlu0.b32.cont [4/16] 0.0, 128
        %2942 = vxpose.xlu0.b32.cont [5/16] 0.0, 128
        %2943 = vxpose.xlu0.b32.cont [6/16] 0.0, 128
        %2944 = vxpose.xlu0.b32.cont [7/16] 0.0, 128
        %2945 = vxpose.xlu0.b32.cont [8/16] 0.0, 128
        %2946 = vxpose.xlu0.b32.cont [9/16] 0.0, 128
        %2947 = vxpose.xlu0.b32.cont [10/16] 0.0, 128
        %2948 = vxpose.xlu0.b32.cont [11/16] 0.0, 128
        %2949 = vxpose.xlu0.b32.cont [12/16] 0.0, 128
        %2950 = vxpose.xlu0.b32.cont [13/16] 0.0, 128
        %2951 = vxpose.xlu0.b32.cont [14/16] 0.0, 128
        %2952 = vxpose.xlu0.b32.cont [15/16] 0.0, 128
        %2953 = vxpose.xlu0.b32.end [16/16] 0.0, 128
        %v2954 = vpop.trf.xlu0
        %v2955 = vpop.trf.xlu0
        %v2956 = vpop.trf.xlu0
        %v2957 = vpop.trf.xlu0
        %v2958 = vpop.trf.xlu0
        %v2959 = vpop.trf.xlu0
        %v2960 = vpop.trf.xlu0
        %v2961 = vpop.trf.xlu0
        %v2962 = vpop.trf.xlu0
        %v2963 = vpop.trf.xlu0
        %v2964 = vpop.trf.xlu0
        %v2965 = vpop.trf.xlu0
        %v2966 = vpop.trf.xlu0
        %v2967 = vpop.trf.xlu0
        %v2968 = vpop.trf.xlu0
        %v2969 = vpop.trf.xlu0
        %2970 = vxpose.xlu0.b32.start [1/16] %v2841, 128
        %2971 = vxpose.xlu0.b32.cont [2/16] 0.0, 128
        %2972 = vxpose.xlu0.b32.cont [3/16] 0.0, 128
        %2973 = vxpose.xlu0.b32.cont [4/16] 0.0, 128
        %2974 = vxpose.xlu0.b32.cont [5/16] 0.0, 128
        %2975 = vxpose.xlu0.b32.cont [6/16] 0.0, 128
        %2976 = vxpose.xlu0.b32.cont [7/16] 0.0, 128
        %2977 = vxpose.xlu0.b32.cont [8/16] 0.0, 128
        %2978 = vxpose.xlu0.b32.cont [9/16] 0.0, 128
        %2979 = vxpose.xlu0.b32.cont [10/16] 0.0, 128
        %2980 = vxpose.xlu0.b32.cont [11/16] 0.0, 128
        %2981 = vxpose.xlu0.b32.cont [12/16] 0.0, 128
        %2982 = vxpose.xlu0.b32.cont [13/16] 0.0, 128
        %2983 = vxpose.xlu0.b32.cont [14/16] 0.0, 128
        %2984 = vxpose.xlu0.b32.cont [15/16] 0.0, 128
        %2985 = vxpose.xlu0.b32.end [16/16] 0.0, 128
        %v2986 = vpop.trf.xlu0
        %v2987 = vpop.trf.xlu0
        %v2988 = vpop.trf.xlu0
        %v2989 = vpop.trf.xlu0
        %v2990 = vpop.trf.xlu0
        %v2991 = vpop.trf.xlu0
        %v2992 = vpop.trf.xlu0
        %v2993 = vpop.trf.xlu0
        %v2994 = vpop.trf.xlu0
        %v2995 = vpop.trf.xlu0
        %v2996 = vpop.trf.xlu0
        %v2997 = vpop.trf.xlu0
        %v2998 = vpop.trf.xlu0
        %v2999 = vpop.trf.xlu0
        %v3000 = vpop.trf.xlu0
        %v3001 = vpop.trf.xlu0
        %3002 = vxpose.xlu0.b32.start [1/16] %v2887, 128
        %3003 = vxpose.xlu0.b32.cont [2/16] 0.0, 128
        %3004 = vxpose.xlu0.b32.cont [3/16] 0.0, 128
        %3005 = vxpose.xlu0.b32.cont [4/16] 0.0, 128
        %3006 = vxpose.xlu0.b32.cont [5/16] 0.0, 128
        %3007 = vxpose.xlu0.b32.cont [6/16] 0.0, 128
        %3008 = vxpose.xlu0.b32.cont [7/16] 0.0, 128
        %3009 = vxpose.xlu0.b32.cont [8/16] 0.0, 128
        %3010 = vxpose.xlu0.b32.cont [9/16] 0.0, 128
        %3011 = vxpose.xlu0.b32.cont [10/16] 0.0, 128
        %3012 = vxpose.xlu0.b32.cont [11/16] 0.0, 128
        %3013 = vxpose.xlu0.b32.cont [12/16] 0.0, 128
        %3014 = vxpose.xlu0.b32.cont [13/16] 0.0, 128
        %3015 = vxpose.xlu0.b32.cont [14/16] 0.0, 128
        %3016 = vxpose.xlu0.b32.cont [15/16] 0.0, 128
        %3017 = vxpose.xlu0.b32.end [16/16] 0.0, 128
        %v3018 = vpop.trf.xlu0
        %v3019 = vpop.trf.xlu0
        %v3020 = vpop.trf.xlu0
        %v3021 = vpop.trf.xlu0
        %v3022 = vpop.trf.xlu0
        %v3023 = vpop.trf.xlu0
        %v3024 = vpop.trf.xlu0
        %v3025 = vpop.trf.xlu0
        %v3026 = vpop.trf.xlu0
        %v3027 = vpop.trf.xlu0
        %v3028 = vpop.trf.xlu0
        %v3029 = vpop.trf.xlu0
        %v3030 = vpop.trf.xlu0
        %v3031 = vpop.trf.xlu0
        %v3032 = vpop.trf.xlu0
        %v3033 = vpop.trf.xlu0
        %3034 = vxpose.xlu0.b32.start [1/16] %v2933, 128
        %3035 = vxpose.xlu0.b32.cont [2/16] 0.0, 128
        %3036 = vxpose.xlu0.b32.cont [3/16] 0.0, 128
        %3037 = vxpose.xlu0.b32.cont [4/16] 0.0, 128
        %3038 = vxpose.xlu0.b32.cont [5/16] 0.0, 128
        %3039 = vxpose.xlu0.b32.cont [6/16] 0.0, 128
        %3040 = vxpose.xlu0.b32.cont [7/16] 0.0, 128
        %3041 = vxpose.xlu0.b32.cont [8/16] 0.0, 128
        %3042 = vxpose.xlu0.b32.cont [9/16] 0.0, 128
        %3043 = vxpose.xlu0.b32.cont [10/16] 0.0, 128
        %3044 = vxpose.xlu0.b32.cont [11/16] 0.0, 128
        %3045 = vxpose.xlu0.b32.cont [12/16] 0.0, 128
        %3046 = vxpose.xlu0.b32.cont [13/16] 0.0, 128
        %3047 = vxpose.xlu0.b32.cont [14/16] 0.0, 128
        %3048 = vxpose.xlu0.b32.cont [15/16] 0.0, 128
        %3049 = vxpose.xlu0.b32.end [16/16] 0.0, 128
        %v3050 = vpop.trf.xlu0
        %v3051 = vpop.trf.xlu0
        %v3052 = vpop.trf.xlu0
        %v3053 = vpop.trf.xlu0
        %v3054 = vpop.trf.xlu0
        %v3055 = vpop.trf.xlu0
        %v3056 = vpop.trf.xlu0
        %v3057 = vpop.trf.xlu0
        %v3058 = vpop.trf.xlu0
        %v3059 = vpop.trf.xlu0
        %v3060 = vpop.trf.xlu0
        %v3061 = vpop.trf.xlu0
        %v3062 = vpop.trf.xlu0
        %v3063 = vpop.trf.xlu0
        %v3064 = vpop.trf.xlu0
        %v3065 = vpop.trf.xlu0
        %3066 = vxpose.xlu0.b32.start [1/16] %v2954, 128
        %3067 = vxpose.xlu0.b32.cont [2/16] %v2986, 128
        %3068 = vxpose.xlu0.b32.cont [3/16] %v3018, 128
        %3069 = vxpose.xlu0.b32.cont [4/16] %v3050, 128
        %3070 = vxpose.xlu0.b32.cont [5/16] 0.0, 128
        %3071 = vxpose.xlu0.b32.cont [6/16] 0.0, 128
        %3072 = vxpose.xlu0.b32.cont [7/16] 0.0, 128
        %3073 = vxpose.xlu0.b32.cont [8/16] 0.0, 128
        %3074 = vxpose.xlu0.b32.cont [9/16] 0.0, 128
        %3075 = vxpose.xlu0.b32.cont [10/16] 0.0, 128
        %3076 = vxpose.xlu0.b32.cont [11/16] 0.0, 128
        %3077 = vxpose.xlu0.b32.cont [12/16] 0.0, 128
        %3078 = vxpose.xlu0.b32.cont [13/16] 0.0, 128
        %3079 = vxpose.xlu0.b32.cont [14/16] 0.0, 128
        %3080 = vxpose.xlu0.b32.cont [15/16] 0.0, 128
        %3081 = vxpose.xlu0.b32.end [16/16] 0.0, 128
        %v3082 = vpop.trf.xlu0
        %v3083 = vpop.trf.xlu0
        %v3084 = vpop.trf.xlu0
        %v3085 = vpop.trf.xlu0
        %v3086 = vpop.trf.xlu0
        %v3087 = vpop.trf.xlu0
        %v3088 = vpop.trf.xlu0
        %v3089 = vpop.trf.xlu0
        %v3090 = vpop.trf.xlu0
        %v3091 = vpop.trf.xlu0
        %v3092 = vpop.trf.xlu0
        %v3093 = vpop.trf.xlu0
        %v3094 = vpop.trf.xlu0
        %v3095 = vpop.trf.xlu0
        %v3096 = vpop.trf.xlu0
        %v3097 = vpop.trf.xlu0
        %v3098 = vpack.c.bf16 %v3082, %v3082
        %v3099 = vld [vmem:[#allocation7] sm:$0xf]
        %v3100 = vld [vmem:[#allocation7 + $0x4] sm:$0xf]
        %v3101 = vld [vmem:[#allocation7 + $0x8] sm:$0xf]
        %v3102 = vld [vmem:[#allocation7 + $0xc] sm:$0xf]
        %v3103 = vld [vmem:[%s11] sm:$0x1]
        %v3105 = vlaneseq
        %v3106 = vshrl.u32 %v3105, 7
        %v3107 = vsub.s32 0, %v3106
        %v3108 = vrot.slane %v3103, %v3107
        %v3114 = vunpack.c.l.b16 %v3099
        %v3115 = vunpack.c.l.b16 %v3100
        %v3116 = vunpack.c.l.b16 %v3101
        %v3117 = vunpack.c.l.b16 %v3102
        %v3118 = vpack.c.b16 %v3115, %v3114
        %v3119 = vpack.c.b16 %v3117, %v3116
        %v3123 = vsel %vm773, %v3098, 0
        %3125 = vmatprep.subr.bf16.mxu0 0
        %3126 = vmatpush1.bf16.msra.mxu0 %v3118
        %3127 = vmatprep.subr.bf16.mxu0 0
        %3128 = vmatpush1.bf16.msra.mxu0 %v3119
        %3129 = vmatprep.subr.bf16.mxu0 0
        %3130 = vmatpush1.bf16.msra.mxu0 0
        %3131 = vmatprep.subr.bf16.mxu0 0
        %3132 = vmatpush1.bf16.msra.mxu0 0
        %3133 = vmatprep.subr.bf16.mxu0 0
        %3134 = vmatpush1.bf16.msra.mxu0 0
        %3135 = vmatprep.subr.bf16.mxu0 0
        %3136 = vmatpush1.bf16.msra.mxu0 0
        %3137 = vmatprep.subr.bf16.mxu0 0
        %3138 = vmatpush1.bf16.msra.mxu0 0
        %3139 = vmatprep.subr.bf16.mxu0 0
        %3140 = vmatpush1.bf16.msra.mxu0 0
        %3141 = vmatprep.subr.bf16.mxu0 0
        %3142 = vmatpush1.bf16.msra.mxu0 0
        %3143 = vmatprep.subr.bf16.mxu0 0
        %3144 = vmatpush1.bf16.msra.mxu0 0
        %3145 = vmatprep.subr.bf16.mxu0 0
        %3146 = vmatpush1.bf16.msra.mxu0 0
        %3147 = vmatprep.subr.bf16.mxu0 0
        %3148 = vmatpush1.bf16.msra.mxu0 0
        %3149 = vmatprep.subr.bf16.mxu0 0
        %3150 = vmatpush1.bf16.msra.mxu0 0
        %3151 = vmatprep.subr.bf16.mxu0 0
        %3152 = vmatpush1.bf16.msra.mxu0 0
        %3153 = vmatprep.subr.bf16.mxu0 0
        %3154 = vmatpush1.bf16.msra.mxu0 0
        %3155 = vmatprep.subr.bf16.mxu0 0
        %3156 = vmatpush1.bf16.msra.mxu0 0
        %3157 = vmatprep.mubr.bf16.mxu0 0
        %3158 = vmatmul.mubr.bf16.gmra.mrb[0].mxu0 %v3123
        %v3159 = vpop.f32.mrb[0].mxu0
        %v3160 = vadd.f32 %v3108, %v3159
        %v3161 = vpop.f32.mrb[0].mxu0
        %v3162 = vpop.f32.mrb[0].mxu0
        %v3163 = vpop.f32.mrb[0].mxu0
        %3164 = vdwg.mxu0
        %v3165 = vadd.f32 %v1920, %v3160
        %v3166 = vld [vmem:[%s14] sm:$0x1]
        %v3167 = vld [vmem:[%s15] sm:$0x1]
        %v3168 = vsel %vm773, %v3165, 0.0
        %3169 = vadd.xlane.f32.xlu0 %v3168
        %v3170 = vpop.xlane.xlu0 %3169
        %v3171 = vmul.f32 %v3170, %v1896
        %v3172 = vsub.f32 %v3165, %v3171
        %v3173 = vmul.f32 %v3172, %v3172
        %v3174 = vsel %vm773, %v3173, 0.0
        %3175 = vadd.xlane.f32.xlu0 %v3174
        %v3176 = vpop.xlane.xlu0 %3175
        %v3177 = vmul.f32 %v3176, %v1896
        %v3178 = vadd.f32 %v3177, 1e-05
        %v3179 = vrsqrt.pop %v3178
        %v3180 = vmul.f32 %v3172, %v3179
        %v3182 = vlaneseq
        %v3183 = vshrl.u32 %v3182, 7
        %v3184 = vsub.s32 0, %v3183
        %v3185 = vrot.slane %v3166, %v3184
        %v3187 = vmul.f32 %v3180, %v3185
        %v3189 = vlaneseq
        %v3190 = vshrl.u32 %v3189, 7
        %v3191 = vsub.s32 0, %v3190
        %v3192 = vrot.slane %v3167, %v3191
        %v3194 = vadd.f32 %v3187, %v3192
        %v3195 = vpack.c.bf16 %v3194, %v3194
        %v3196 = vld [vmem:[%s18] sm:$0xf]
        %v3197 = vld [vmem:[%s18 + $0x4] sm:$0xf]
        %v3198 = vld [vmem:[%s18 + $0x8] sm:$0xf]
        %v3199 = vld [vmem:[%s18 + $0xc] sm:$0xf]
        %v3200 = vld [vmem:[%s19] sm:$0x1]
        %v3202 = vlaneseq
        %v3203 = vshrl.u32 %v3202, 7
        %v3204 = vsub.s32 0, %v3203
        %v3205 = vrot.slane %v3200, %v3204
        %v3211 = vunpack.c.l.b16 %v3196
        %v3212 = vunpack.c.l.b16 %v3197
        %v3213 = vunpack.c.l.b16 %v3198
        %v3214 = vunpack.c.l.b16 %v3199
        %v3215 = vpack.c.b16 %v3212, %v3211
        %v3216 = vpack.c.b16 %v3214, %v3213
        %v3220 = vsel %vm773, %v3195, 0
        %3222 = vmatprep.subr.bf16.mxu0 0
        %3223 = vmatpush1.bf16.msra.mxu0 %v3215
        %3224 = vmatprep.subr.bf16.mxu0 0
        %3225 = vmatpush1.bf16.msra.mxu0 %v3216
        %3226 = vmatprep.subr.bf16.mxu0 0
        %3227 = vmatpush1.bf16.msra.mxu0 0
        %3228 = vmatprep.subr.bf16.mxu0 0
        %3229 = vmatpush1.bf16.msra.mxu0 0
        %3230 = vmatprep.subr.bf16.mxu0 0
        %3231 = vmatpush1.bf16.msra.mxu0 0
        %3232 = vmatprep.subr.bf16.mxu0 0
        %3233 = vmatpush1.bf16.msra.mxu0 0
        %3234 = vmatprep.subr.bf16.mxu0 0
        %3235 = vmatpush1.bf16.msra.mxu0 0
        %3236 = vmatprep.subr.bf16.mxu0 0
        %3237 = vmatpush1.bf16.msra.mxu0 0
        %3238 = vmatprep.subr.bf16.mxu0 0
        %3239 = vmatpush1.bf16.msra.mxu0 0
        %3240 = vmatprep.subr.bf16.mxu0 0
        %3241 = vmatpush1.bf16.msra.mxu0 0
        %3242 = vmatprep.subr.bf16.mxu0 0
        %3243 = vmatpush1.bf16.msra.mxu0 0
        %3244 = vmatprep.subr.bf16.mxu0 0
        %3245 = vmatpush1.bf16.msra.mxu0 0
        %3246 = vmatprep.subr.bf16.mxu0 0
        %3247 = vmatpush1.bf16.msra.mxu0 0
        %3248 = vmatprep.subr.bf16.mxu0 0
        %3249 = vmatpush1.bf16.msra.mxu0 0
        %3250 = vmatprep.subr.bf16.mxu0 0
        %3251 = vmatpush1.bf16.msra.mxu0 0
        %3252 = vmatprep.subr.bf16.mxu0 0
        %3253 = vmatpush1.bf16.msra.mxu0 0
        %3254 = vmatprep.mubr.bf16.mxu0 0
        %3255 = vmatmul.mubr.bf16.gmra.mrb[0].mxu0 %v3220
        %v3256 = vpop.f32.mrb[0].mxu0
        %v3257 = vadd.f32 %v3205, %v3256
        %v3258 = vpop.f32.mrb[0].mxu0
        %v3259 = vpop.f32.mrb[0].mxu0
        %v3260 = vpop.f32.mrb[0].mxu0
        %3261 = vdwg.mxu0
        %v3262 = vmax.f32 %v3257, 0.0
        %v3263 = vpack.c.bf16 %v3262, %v3262
        %v3264 = vld [vmem:[%s20] sm:$0xf]
        %v3265 = vld [vmem:[%s20 + $0x4] sm:$0xf]
        %v3266 = vld [vmem:[%s20 + $0x8] sm:$0xf]
        %v3267 = vld [vmem:[%s20 + $0xc] sm:$0xf]
        %v3268 = vld [vmem:[%s20 + $0x10] sm:$0xf]
        %v3269 = vld [vmem:[%s20 + $0x14] sm:$0xf]
        %v3270 = vld [vmem:[%s20 + $0x18] sm:$0xf]
        %v3271 = vld [vmem:[%s20 + $0x1c] sm:$0xf]
        %v3272 = vld [vmem:[%s21] sm:$0x1]
        %v3274 = vlaneseq
        %v3275 = vshrl.u32 %v3274, 7
        %v3276 = vsub.s32 0, %v3275
        %v3277 = vrot.slane %v3272, %v3276
        %v3287 = vunpack.c.l.b16 %v3264
        %v3288 = vunpack.c.l.b16 %v3265
        %v3289 = vunpack.c.l.b16 %v3266
        %v3290 = vunpack.c.l.b16 %v3267
        %v3291 = vunpack.c.l.b16 %v3268
        %v3292 = vunpack.c.l.b16 %v3269
        %v3293 = vunpack.c.l.b16 %v3270
        %v3294 = vunpack.c.l.b16 %v3271
        %v3295 = vpack.c.b16 %v3288, %v3287
        %v3296 = vpack.c.b16 %v3290, %v3289
        %v3297 = vpack.c.b16 %v3292, %v3291
        %v3298 = vpack.c.b16 %v3294, %v3293
        %vm3303 = vcmask 523264
        %v3305 = vsel %vm3303, %v3263, 0
        %3307 = vmatprep.subr.bf16.mxu0 0
        %3308 = vmatpush1.bf16.msra.mxu0 %v3295
        %3309 = vmatprep.subr.bf16.mxu0 0
        %3310 = vmatpush1.bf16.msra.mxu0 %v3296
        %3311 = vmatprep.subr.bf16.mxu0 0
        %3312 = vmatpush1.bf16.msra.mxu0 %v3297
        %3313 = vmatprep.subr.bf16.mxu0 0
        %3314 = vmatpush1.bf16.msra.mxu0 %v3298
        %3315 = vmatprep.subr.bf16.mxu0 0
        %3316 = vmatpush1.bf16.msra.mxu0 0
        %3317 = vmatprep.subr.bf16.mxu0 0
        %3318 = vmatpush1.bf16.msra.mxu0 0
        %3319 = vmatprep.subr.bf16.mxu0 0
        %3320 = vmatpush1.bf16.msra.mxu0 0
        %3321 = vmatprep.subr.bf16.mxu0 0
        %3322 = vmatpush1.bf16.msra.mxu0 0
        %3323 = vmatprep.subr.bf16.mxu0 0
        %3324 = vmatpush1.bf16.msra.mxu0 0
        %3325 = vmatprep.subr.bf16.mxu0 0
        %3326 = vmatpush1.bf16.msra.mxu0 0
        %3327 = vmatprep.subr.bf16.mxu0 0
        %3328 = vmatpush1.bf16.msra.mxu0 0
        %3329 = vmatprep.subr.bf16.mxu0 0
        %3330 = vmatpush1.bf16.msra.mxu0 0
        %3331 = vmatprep.subr.bf16.mxu0 0
        %3332 = vmatpush1.bf16.msra.mxu0 0
        %3333 = vmatprep.subr.bf16.mxu0 0
        %3334 = vmatpush1.bf16.msra.mxu0 0
        %3335 = vmatprep.subr.bf16.mxu0 0
        %3336 = vmatpush1.bf16.msra.mxu0 0
        %3337 = vmatprep.subr.bf16.mxu0 0
        %3338 = vmatpush1.bf16.msra.mxu0 0
        %3339 = vmatprep.mubr.bf16.mxu0 0
        %3340 = vmatmul.mubr.bf16.gmra.mrb[0].mxu0 %v3305
        %v3341 = vpop.f32.mrb[0].mxu0
        %v3342 = vadd.f32 %v3277, %v3341
        %v3343 = vpop.f32.mrb[0].mxu0
        %v3344 = vpop.f32.mrb[0].mxu0
        %v3345 = vpop.f32.mrb[0].mxu0
        %3346 = vdwg.mxu0
        %v3347 = vadd.f32 %v3194, %v3342
        %v3348 = vld [vmem:[%s16] sm:$0x1]
        %v3349 = vld [vmem:[%s17] sm:$0x1]
        %v3350 = vsel %vm773, %v3347, 0.0
        %3351 = vadd.xlane.f32.xlu0 %v3350
        %v3352 = vpop.xlane.xlu0 %3351
        %v3353 = vmul.f32 %v3352, %v1896
        %v3354 = vsub.f32 %v3347, %v3353
        %v3355 = vmul.f32 %v3354, %v3354
        %v3356 = vsel %vm773, %v3355, 0.0
        %3357 = vadd.xlane.f32.xlu0 %v3356
        %v3358 = vpop.xlane.xlu0 %3357
        %v3359 = vmul.f32 %v3358, %v1896
        %v3360 = vadd.f32 %v3359, 1e-05
        %v3361 = vrsqrt.pop %v3360
        %v3362 = vmul.f32 %v3354, %v3361
        %v3364 = vlaneseq
        %v3365 = vshrl.u32 %v3364, 7
        %v3366 = vsub.s32 0, %v3365
        %v3367 = vrot.slane %v3348, %v3366
        %v3369 = vmul.f32 %v3362, %v3367
        %v3371 = vlaneseq
        %v3372 = vshrl.u32 %v3371, 7
        %v3373 = vsub.s32 0, %v3372
        %v3374 = vrot.slane %v3349, %v3373
        %v3376 = vadd.f32 %v3369, %v3374
        %3377 = vst.msk [vmem:[%s729] sm:$0xff] %vm773, %v3376
        %s3378 = sand.u32 %s518, 1
        %s3379 = scalar_lea.sflag [#allocation4], %s3378
        %s3380 = sand.u32 %s518, 1
        %s3381 = smul.addr %s3380, 8
        %s3382 = scalar_lea.vmem [#allocation8], %s3381
        // Predicated region
        $region121: #{tpu_custom_call.1} parent=107 // pred_check
          %p3383 = pneg %p528
        $region122: #{tpu_custom_call.1} parent=107 // pred_check_branch
          %3385 = sbr.rel (%p3383) target = $region124
        $region123: #{tpu_custom_call.1} parent=107 // pred_region
          %s3387 = ssub.s32 128, 128
          %3388 = vsyncadd %s3379, %s3387
          %s3389 = smul.addr %s38, 128
          %s3390 = scalar_lea.hbm %s22, %s3389
          %s3392 = sshll.u32 %s3382, 4
          %s3393 = int_to_ptr.vmem [resolvable:$true] %s3392
          %3395 = dma.vmem_to_hbm [thread:$0]  %s3393, 128, %s3390, %s3379
        $region124: #{tpu_custom_call.1} parent=107 // pred_fallthru
          _
      $region108: #{tpu_custom_call.1} parent=5 // pred_fallthru
        _
      %p3396 = scmp.le.s32.totalorder 2, %s33
      // Predicated region
      $region125: #{tpu_custom_call.1} parent=5 // pred_check
        %p3397 = pneg %p3396
      $region126: #{tpu_custom_call.1} parent=5 // pred_check_branch
        %3399 = sbr.rel (%p3397) target = $region128
      $region127: #{tpu_custom_call.1} parent=5 // pred_region
        %s3400 = ssub.s32 %s33, 2
        // Predicated region
        $region129: #{tpu_custom_call.1} parent=127 // pred_check
          %p3401 = pneg %p534
        $region130: #{tpu_custom_call.1} parent=127 // pred_check_branch
          %3403 = sbr.rel (%p3401) target = $region132
        $region131: #{tpu_custom_call.1} parent=127 // pred_region
          %s3404 = sand.u32 %s519, 1
          %s3405 = scalar_lea.sflag [#allocation4], %s3404
          %s3406 = sand.u32 %s519, 1
          %s3407 = smul.addr %s3406, 8
          %s3408 = scalar_lea.vmem [#allocation8], %s3407
          %3409 = dma.done %s3405, 128
        $region132: #{tpu_custom_call.1} parent=127 // pred_fallthru
          _
      $region128: #{tpu_custom_call.1} parent=5 // pred_fallthru
        _
    $region6: #{tpu_custom_call.1} parent=1 // loop_footer
      %s37 = sadd.s32 1, %s33
    $region7: #{tpu_custom_call.1} parent=1 // loop_footer_branch
      %32 = sbr.rel target = $region3
    $region8: #{tpu_custom_call.1} parent=1 // loop_exit
      _
    %3410 = vsyncpa [#allocation3], 1
    %s3411 = scalar_lea.sflag [#allocation3], 1
    %3412 = vsyncpa %s3411, 1
    %3413 = vsyncpa [#allocation6], 1
    %3414 = vsyncpa [#allocation4], 1
    %s3415 = scalar_lea.sflag [#allocation4], 1
    %3416 = vsyncpa %s3415, 1

</llo_original>
